<compile_context>
chip_gen: v6e
topology: v6e:2x2x1
jax: 0.10.0
libtpu: 0.0.40
codegen_flags: <defaults>
</compile_context>

<pallas_src>
import jax
import jax.numpy as jnp
from jax import lax
from jax.experimental import pallas as pl
from jax.experimental.pallas import tpu as pltpu


# ---------------------------------------------------------------------------
# Fused conv(3x3, pad=1, stride=1) + bias + ReLU + maxpool(2x2, stride=2).
# Grid = (N,); each program handles one whole padded image:
#   one K=9*Cin matmul (in-VMEM im2col via lane-concat of the 9 shifted taps),
#   then f32 bias+ReLU into VMEM scratch, stride-2 W-pool into a second
#   scratch, and a rolled H-pool loop writing the (Ho, Wo, Cout) output.
# ---------------------------------------------------------------------------
def _conv_relu_pool_kernel(x_ref, w_ref, b_ref, o_ref, r_scr, p_scr):
    # x_ref : (1, H+2, W+2, Cin)  padded NHWC image, bf16
    # w_ref : (9*Cin, Cout)       flattened conv weight (kh, kw, cin), bf16
    # b_ref : (1, Cout)           f32
    # o_ref : (1, Ho, Wo, Cout)   pooled output, bf16
    # r_scr : (H*W, Cout)  f32    relu(conv) result
    # p_scr : (H*Wo, Cout) f32    W-pooled rows (h*Wo + wo)
    H = x_ref.shape[1] - 2
    W = x_ref.shape[2] - 2
    Ho, Wo, Cout = o_ref.shape[1], o_ref.shape[2], o_ref.shape[3]

    # in-VMEM im2col: concat the 9 shifted taps along channels -> (H, W, 9*Cin)
    taps = [x_ref[0, kh:kh + H, kw:kw + W, :]
            for kh in range(3) for kw in range(3)]
    cols = jnp.concatenate(taps, axis=-1).reshape(H * W, 9 * x_ref.shape[3])

    # single MXU matmul, f32 accumulation; bias + ReLU in f32 -> VMEM scratch
    acc = jnp.dot(cols, w_ref[...], preferred_element_type=jnp.float32)
    r_scr[...] = jnp.maximum(acc + b_ref[...], 0.0)

    # W-pool: adjacent (even/odd w) rows via static-start stride-2 reads
    p_scr[...] = jnp.maximum(r_scr[pl.ds(0, H * Wo, stride=2), :],
                             r_scr[pl.ds(1, H * Wo, stride=2), :])

    # H-pool: rolled loop over pooled rows (no Ho-way static unroll)
    def pool_h(ho, carry):
        base = pl.multiple_of(2 * ho * Wo, Wo)
        top = p_scr[pl.ds(base, Wo), :]          # h = 2*ho
        bot = p_scr[pl.ds(base + Wo, Wo), :]     # h = 2*ho + 1
        row = jnp.maximum(top, bot)              # (Wo, Cout)
        o_ref[0, pl.ds(ho, 1), :, :] = row[None].astype(o_ref.dtype)
        return carry

    lax.fori_loop(0, Ho, pool_h, 0)


def conv_relu_pool(x_nhwc, w, b):
    """x_nhwc: (N, H, W, Cin); w: (3, 3, Cin, Cout); b: (Cout,). Returns bf16."""
    N, H, W, Cin = x_nhwc.shape
    Cout = w.shape[-1]
    Ho, Wo = H // 2, W // 2
    assert H % 2 == 0 and W % 2 == 0, "pooling assumes even spatial dims"

    xpad = jnp.pad(x_nhwc, ((0, 0), (1, 1), (1, 1), (0, 0))).astype(jnp.bfloat16)
    wmat = w.reshape(9 * Cin, Cout).astype(jnp.bfloat16)
    b2d = b.reshape(1, Cout).astype(jnp.float32)

    return pl.pallas_call(
        _conv_relu_pool_kernel,
        out_shape=jax.ShapeDtypeStruct((N, Ho, Wo, Cout), jnp.bfloat16),
        grid=(N,),
        in_specs=[
            pl.BlockSpec((1, H + 2, W + 2, Cin), lambda n: (n, 0, 0, 0)),
            pl.BlockSpec((9 * Cin, Cout), lambda n: (0, 0)),
            pl.BlockSpec((1, Cout), lambda n: (0, 0)),
        ],
        out_specs=pl.BlockSpec((1, Ho, Wo, Cout), lambda n: (n, 0, 0, 0)),
        scratch_shapes=[pltpu.VMEM((H * W, Cout), jnp.float32),
                        pltpu.VMEM((H * Wo, Cout), jnp.float32)],
        compiler_params=pltpu.CompilerParams(
            dimension_semantics=("parallel",),
            vmem_limit_bytes=32 * 1024 * 1024),
    )(xpad, wmat, b2d)


# ---------------------------------------------------------------------------
# MLP head: out = relu(x @ w1 + b1) @ w2 + b2.
# Grid = (batch blocks [parallel], K blocks [arbitrary]); fc1 is K-tiled with a
# resident f32 VMEM accumulator; the tiny fc2 is fused into the last K step.
# ---------------------------------------------------------------------------
def _mlp_kernel(x_ref, w1_ref, b1_ref, w2_ref, b2_ref, o_ref, acc_ref):
    k = pl.program_id(1)

    @pl.when(k == 0)
    def _():
        acc_ref[...] = jnp.zeros_like(acc_ref)

    acc_ref[...] += jnp.dot(x_ref[...], w1_ref[...],
                            preferred_element_type=jnp.float32)

    @pl.when(k == pl.num_programs(1) - 1)
    def _():
        h = jnp.maximum(acc_ref[...] + b1_ref[...], 0.0)
        out = jnp.dot(h.astype(w2_ref.dtype), w2_ref[...],
                      preferred_element_type=jnp.float32)
        o_ref[...] = (out + b2_ref[...]).astype(o_ref.dtype)


def _pick_tk(F, Dh, bytes_per_elem=2, budget_bytes=8 * 1024 * 1024):
    """Largest multiple-of-128 divisor of F whose double-buffered (tk, Dh)
    bf16 weight tile fits the budget; falls back to F (small-F case)."""
    max_rows = max(128, budget_bytes // (2 * Dh * bytes_per_elem))
    best = 0
    tk = 128
    while tk <= min(F, max_rows):
        if F % tk == 0:
            best = tk
        tk += 128
    return best if best > 0 else F


def mlp_head(x_flat, w1, b1, w2, b2):
    N, F = x_flat.shape
    Dh = w1.shape[1]
    Do = w2.shape[1]
    tk = _pick_tk(F, Dh)
    nk = F // tk if F % tk == 0 else 1
    if F % tk != 0:
        tk = F
    tm = N if N <= 128 else 128
    nb = pl.cdiv(N, tm)

    x16 = x_flat.astype(jnp.bfloat16)
    w1_16 = w1.astype(jnp.bfloat16)
    w2_16 = w2.astype(jnp.bfloat16)

    return pl.pallas_call(
        _mlp_kernel,
        out_shape=jax.ShapeDtypeStruct((N, Do), jnp.float32),
        grid=(nb, nk),
        in_specs=[
            pl.BlockSpec((tm, tk), lambda b, k: (b, k)),
            pl.BlockSpec((tk, Dh), lambda b, k: (k, 0)),
            pl.BlockSpec((1, Dh), lambda b, k: (0, 0)),
            pl.BlockSpec((Dh, Do), lambda b, k: (0, 0)),
            pl.BlockSpec((1, Do), lambda b, k: (0, 0)),
        ],
        out_specs=pl.BlockSpec((tm, Do), lambda b, k: (b, 0)),
        scratch_shapes=[pltpu.VMEM((tm, Dh), jnp.float32)],
        compiler_params=pltpu.CompilerParams(
            dimension_semantics=("parallel", "arbitrary"),
            vmem_limit_bytes=32 * 1024 * 1024),
    )(x16, w1_16, b1.reshape(1, -1).astype(jnp.float32),
      w2_16, b2.reshape(1, -1).astype(jnp.float32))


# ---------------------------------------------------------------------------
# Parameter prep + full forward pass (PyTorch-equivalent semantics).
# ---------------------------------------------------------------------------
def prepare_params(params, H, W):
    """One-time: permute fc1 rows from torch (C,Ho,Wo) flatten order to NHWC
    flatten order (removes the per-call relayout) and cast MXU weights to bf16."""
    Ho, Wo = H // 4, W // 4
    C = params["w_conv2"].shape[-1]
    w1 = params["w_fc1"].reshape(C, Ho, Wo, -1).transpose(1, 2, 0, 3)
    w1 = w1.reshape(Ho * Wo * C, -1)
    return {
        "w_conv1": params["w_conv1"].astype(jnp.bfloat16),
        "b_conv1": params["b_conv1"].astype(jnp.float32),
        "w_conv2": params["w_conv2"].astype(jnp.bfloat16),
        "b_conv2": params["b_conv2"].astype(jnp.float32),
        "w_fc1": w1.astype(jnp.bfloat16),
        "b_fc1": params["b_fc1"].astype(jnp.float32),
        "w_fc2": params["w_fc2"].astype(jnp.bfloat16),
        "b_fc2": params["b_fc2"].astype(jnp.float32),
    }


@jax.jit
def pointnet_forward(x_nchw, kparams):
    x = jnp.transpose(x_nchw, (0, 2, 3, 1))                       # NCHW -> NHWC
    x = conv_relu_pool(x, kparams["w_conv1"], kparams["b_conv1"])  # (N, H/2, W/2, 32)
    x = conv_relu_pool(x, kparams["w_conv2"], kparams["b_conv2"])  # (N, H/4, W/4, 64)
    x = x.reshape(x.shape[0], -1)             # NHWC flatten (w_fc1 pre-permuted)
    return mlp_head(x, kparams["w_fc1"], kparams["b_fc1"],
                    kparams["w_fc2"], kparams["b_fc2"])            # (N, 12)


def _reference_forward(x_nchw, params):
    """Pure-XLA reference with identical semantics & matched bf16 numerics."""
    x = jnp.transpose(x_nchw, (0, 2, 3, 1))
    for wk, bk in (("w_conv1", "b_conv1"), ("w_conv2", "b_conv2")):
        y = lax.conv_general_dilated(
            x.astype(jnp.bfloat16), params[wk].astype(jnp.bfloat16),
            window_strides=(1, 1), padding="SAME",
            dimension_numbers=("NHWC", "HWIO", "NHWC"),
            preferred_element_type=jnp.float32)
        y = jnp.maximum(y + params[bk], 0.0)
        y = lax.reduce_window(y, -jnp.inf, lax.max,
                              (1, 2, 2, 1), (1, 2, 2, 1), "VALID")
        x = y.astype(jnp.bfloat16)
    # torch-style (C, H, W) flatten with the ORIGINAL (unpermuted) w_fc1
    xf = jnp.transpose(x, (0, 3, 1, 2)).reshape(x.shape[0], -1)
    h = jnp.dot(xf, params["w_fc1"].astype(jnp.bfloat16),
                preferred_element_type=jnp.float32) + params["b_fc1"]
    h = jnp.maximum(h, 0.0)
    out = jnp.dot(h.astype(jnp.bfloat16), params["w_fc2"].astype(jnp.bfloat16),
                  preferred_element_type=jnp.float32) + params["b_fc2"]
    return out


def init_params(key, H, W):
    F = 64 * (H // 4) * (W // 4)   # fc1 in_features (64*80*45 at original scale)
    ks = jax.random.split(key, 8)
    return {
        "w_conv1": 0.10 * jax.random.normal(ks[0], (3, 3, 3, 32), jnp.float32),
        "b_conv1": 0.01 * jax.random.normal(ks[1], (32,), jnp.float32),
        "w_conv2": 0.05 * jax.random.normal(ks[2], (3, 3, 32, 64), jnp.float32),
        "b_conv2": 0.01 * jax.random.normal(ks[3], (64,), jnp.float32),
        "w_fc1": 0.02 * jax.random.normal(ks[4], (F, 64), jnp.float32),
        "b_fc1": 0.01 * jax.random.normal(ks[5], (64,), jnp.float32),
        "w_fc2": 0.05 * jax.random.normal(ks[6], (64, 12), jnp.float32),
        "b_fc2": 0.01 * jax.random.normal(ks[7], (12,), jnp.float32),
    }


if __name__ == "__main__":
    key = jax.random.PRNGKey(0)
    kx, kp = jax.random.split(key)

    N, C, H, W = 2, 3, 16, 16          # small stand-in for (N, 3, 320, 180)
    x = jax.random.normal(kx, (N, C, H, W), jnp.float32)
    params = init_params(kp, H, W)
    kparams = prepare_params(params, H, W)

    out = jax.block_until_ready(pointnet_forward(x, kparams))
    assert out.shape == (N, 12) and out.dtype == jnp.float32

    ref = jax.block_until_ready(_reference_forward(x, params))
    max_err = float(jnp.max(jnp.abs(out - ref)))
    assert max_err < 1e-2, f"mismatch vs reference: {max_err}"

    print("KERNEL_OK")
</pallas_src>

<mosaic_0001>
module attributes {stable_mosaic.version = 11 : i64} {
  func.func @_conv_relu_pool_kernel(%arg0: i32, %arg1: memref<1x10x10x32xbf16, #tpu.memory_space<vmem>>, %arg2: memref<288x64xbf16, #tpu.memory_space<vmem>>, %arg3: memref<1x64xf32, #tpu.memory_space<vmem>>, %arg4: memref<1x4x4x64xbf16, #tpu.memory_space<vmem>>, %arg5: memref<64x64xf32, #tpu.memory_space<vmem>>, %arg6: memref<32x64xf32, #tpu.memory_space<vmem>>) attributes {dimension_semantics = [#tpu.dimension_semantics<parallel>], iteration_bounds = array<i64: 2>, scalar_prefetch = 0 : i64, scratch_operands = 2 : i64, tpu.core_type = #tpu.core_type<tc>, window_params = [{transform_indices = @transform_0, window_bounds = array<i64: 1, 10, 10, 32>}, {pipeline_mode = #tpu.pipeline_mode<synchronous>, transform_indices = @transform_1, window_bounds = array<i64: 288, 64>}, {pipeline_mode = #tpu.pipeline_mode<synchronous>, transform_indices = @transform_2, window_bounds = array<i64: 1, 64>}, {transform_indices = @transform_3, window_bounds = array<i64: 1, 4, 4, 64>}]} {
    %c0 = arith.constant 0 : index
    %c0_0 = arith.constant 0 : index
    %c0_1 = arith.constant 0 : index
    %c0_2 = arith.constant 0 : index
    %0 = vector.load %arg1[%c0, %c0_0, %c0_1, %c0_2] : memref<1x10x10x32xbf16, #tpu.memory_space<vmem>>, vector<1x8x8x32xbf16>
    %1 = vector.shape_cast %0 : vector<1x8x8x32xbf16> to vector<8x8x32xbf16>
    %c0_3 = arith.constant 0 : index
    %c0_4 = arith.constant 0 : index
    %c1 = arith.constant 1 : index
    %c0_5 = arith.constant 0 : index
    %2 = vector.load %arg1[%c0_3, %c0_4, %c1, %c0_5] : memref<1x10x10x32xbf16, #tpu.memory_space<vmem>>, vector<1x8x8x32xbf16>
    %3 = vector.shape_cast %2 : vector<1x8x8x32xbf16> to vector<8x8x32xbf16>
    %c0_6 = arith.constant 0 : index
    %c0_7 = arith.constant 0 : index
    %c2 = arith.constant 2 : index
    %c0_8 = arith.constant 0 : index
    %4 = vector.load %arg1[%c0_6, %c0_7, %c2, %c0_8] : memref<1x10x10x32xbf16, #tpu.memory_space<vmem>>, vector<1x8x8x32xbf16>
    %5 = vector.shape_cast %4 : vector<1x8x8x32xbf16> to vector<8x8x32xbf16>
    %c0_9 = arith.constant 0 : index
    %c1_10 = arith.constant 1 : index
    %c0_11 = arith.constant 0 : index
    %c0_12 = arith.constant 0 : index
    %6 = vector.load %arg1[%c0_9, %c1_10, %c0_11, %c0_12] : memref<1x10x10x32xbf16, #tpu.memory_space<vmem>>, vector<1x8x8x32xbf16>
    %7 = vector.shape_cast %6 : vector<1x8x8x32xbf16> to vector<8x8x32xbf16>
    %c0_13 = arith.constant 0 : index
    %c1_14 = arith.constant 1 : index
    %c1_15 = arith.constant 1 : index
    %c0_16 = arith.constant 0 : index
    %8 = vector.load %arg1[%c0_13, %c1_14, %c1_15, %c0_16] : memref<1x10x10x32xbf16, #tpu.memory_space<vmem>>, vector<1x8x8x32xbf16>
    %9 = vector.shape_cast %8 : vector<1x8x8x32xbf16> to vector<8x8x32xbf16>
    %c0_17 = arith.constant 0 : index
    %c1_18 = arith.constant 1 : index
    %c2_19 = arith.constant 2 : index
    %c0_20 = arith.constant 0 : index
    %10 = vector.load %arg1[%c0_17, %c1_18, %c2_19, %c0_20] : memref<1x10x10x32xbf16, #tpu.memory_space<vmem>>, vector<1x8x8x32xbf16>
    %11 = vector.shape_cast %10 : vector<1x8x8x32xbf16> to vector<8x8x32xbf16>
    %c0_21 = arith.constant 0 : index
    %c2_22 = arith.constant 2 : index
    %c0_23 = arith.constant 0 : index
    %c0_24 = arith.constant 0 : index
    %12 = vector.load %arg1[%c0_21, %c2_22, %c0_23, %c0_24] : memref<1x10x10x32xbf16, #tpu.memory_space<vmem>>, vector<1x8x8x32xbf16>
    %13 = vector.shape_cast %12 : vector<1x8x8x32xbf16> to vector<8x8x32xbf16>
    %c0_25 = arith.constant 0 : index
    %c2_26 = arith.constant 2 : index
    %c1_27 = arith.constant 1 : index
    %c0_28 = arith.constant 0 : index
    %14 = vector.load %arg1[%c0_25, %c2_26, %c1_27, %c0_28] : memref<1x10x10x32xbf16, #tpu.memory_space<vmem>>, vector<1x8x8x32xbf16>
    %15 = vector.shape_cast %14 : vector<1x8x8x32xbf16> to vector<8x8x32xbf16>
    %c0_29 = arith.constant 0 : index
    %c2_30 = arith.constant 2 : index
    %c2_31 = arith.constant 2 : index
    %c0_32 = arith.constant 0 : index
    %16 = vector.load %arg1[%c0_29, %c2_30, %c2_31, %c0_32] : memref<1x10x10x32xbf16, #tpu.memory_space<vmem>>, vector<1x8x8x32xbf16>
    %17 = vector.shape_cast %16 : vector<1x8x8x32xbf16> to vector<8x8x32xbf16>
    %18 = tpu.concatenate %1, %3, %5, %7, %9, %11, %13, %15, %17 in 2 : vector<8x8x32xbf16>, vector<8x8x32xbf16>, vector<8x8x32xbf16>, vector<8x8x32xbf16>, vector<8x8x32xbf16>, vector<8x8x32xbf16>, vector<8x8x32xbf16>, vector<8x8x32xbf16>, vector<8x8x32xbf16> -> vector<8x8x288xbf16>
    %19 = vector.shape_cast %18 : vector<8x8x288xbf16> to vector<64x288xbf16>
    %c0_33 = arith.constant 0 : index
    %c0_34 = arith.constant 0 : index
    %20 = vector.load %arg2[%c0_33, %c0_34] : memref<288x64xbf16, #tpu.memory_space<vmem>>, vector<288x64xbf16>
    %cst = arith.constant dense<0.000000e+00> : vector<64x64xf32>
    %21 = tpu.matmul %19, %20, %cst {dimension_numbers = #tpu.dot_dimension_numbers<[1], [0], [0], [1], [0, 0, 1, 1], [], []>} : vector<64x288xbf16>, vector<288x64xbf16>, vector<64x64xf32> -> vector<64x64xf32>
    %c0_35 = arith.constant 0 : index
    %c0_36 = arith.constant 0 : index
    %22 = vector.load %arg3[%c0_35, %c0_36] : memref<1x64xf32, #tpu.memory_space<vmem>>, vector<1x64xf32>
    %23 = vector.broadcast %22 : vector<1x64xf32> to vector<64x64xf32>
    %24 = arith.addf %21, %23 : vector<64x64xf32>
    %cst_37 = arith.constant 0.000000e+00 : f32
    %25 = vector.broadcast %cst_37 : f32 to vector<64x64xf32>
    %26 = arith.maximumf %24, %25 : vector<64x64xf32>
    %c0_38 = arith.constant 0 : index
    %c0_39 = arith.constant 0 : index
    %27 = vector.load %arg5[%c0_38, %c0_39] : memref<64x64xf32, #tpu.memory_space<vmem>>, vector<64x64xf32>
    tpu.vector_store %arg5[%c0_38, %c0_39], %26 {strides = array<i32>} : memref<64x64xf32, #tpu.memory_space<vmem>>, vector<64x64xf32>,
    %c0_40 = arith.constant 0 : index
    %c0_41 = arith.constant 0 : index
    %28 = tpu.strided_load %arg5[%c0_40, %c0_41] {strides = array<i32: 2, 1>} : memref<64x64xf32, #tpu.memory_space<vmem>>, vector<32x64xf32>
    %c1_42 = arith.constant 1 : index
    %c0_43 = arith.constant 0 : index
    %29 = tpu.strided_load %arg5[%c1_42, %c0_43] {strides = array<i32: 2, 1>} : memref<64x64xf32, #tpu.memory_space<vmem>>, vector<32x64xf32>
    %30 = arith.maximumf %28, %29 : vector<32x64xf32>
    %c0_44 = arith.constant 0 : index
    %c0_45 = arith.constant 0 : index
    %31 = vector.load %arg6[%c0_44, %c0_45] : memref<32x64xf32, #tpu.memory_space<vmem>>, vector<32x64xf32>
    tpu.vector_store %arg6[%c0_44, %c0_45], %30 {strides = array<i32>} : memref<32x64xf32, #tpu.memory_space<vmem>>, vector<32x64xf32>,
    %c0_i32 = arith.constant 0 : i32
    %c4_i32 = arith.constant 4 : i32
    %32 = arith.addi %c0_i32, %c4_i32 : i32
    %c1_i32 = arith.constant 1 : i32
    scf.for %arg7 = %c0_i32 to %32 step %c1_i32  : i32 {
      %c2_i32 = arith.constant 2 : i32
      %33 = arith.muli %c2_i32, %arg7 : i32
      %c4_i32_47 = arith.constant 4 : i32
      %34 = arith.muli %33, %c4_i32_47 : i32
      %35 = tpu.assume_multiple %34, 4 : i32
      %36 = arith.index_cast %35 : i32 to index
      %c0_48 = arith.constant 0 : index
      %37 = vector.load %arg6[%36, %c0_48] : memref<32x64xf32, #tpu.memory_space<vmem>>, vector<4x64xf32>
      %c4_i32_49 = arith.constant 4 : i32
      %38 = arith.addi %35, %c4_i32_49 : i32
      %39 = arith.index_cast %38 : i32 to index
      %c0_50 = arith.constant 0 : index
      %40 = vector.load %arg6[%39, %c0_50] : memref<32x64xf32, #tpu.memory_space<vmem>>, vector<4x64xf32>
      %41 = arith.maximumf %37, %40 : vector<4x64xf32>
      %42 = vector.shape_cast %41 : vector<4x64xf32> to vector<1x4x64xf32>
      %43 = arith.truncf %42 : vector<1x4x64xf32> to vector<1x4x64xbf16>
      %c0_51 = arith.constant 0 : index
      %44 = arith.index_cast %arg7 : i32 to index
      %c0_52 = arith.constant 0 : index
      %c0_53 = arith.constant 0 : index
      %45 = vector.load %arg4[%c0_51, %44, %c0_52, %c0_53] : memref<1x4x4x64xbf16, #tpu.memory_space<vmem>>, vector<1x1x4x64xbf16>
      %46 = vector.shape_cast %45 : vector<1x1x4x64xbf16> to vector<1x4x64xbf16>
      %47 = vector.shape_cast %43 : vector<1x4x64xbf16> to vector<1x1x4x64xbf16>
      tpu.vector_store %arg4[%c0_51, %44, %c0_52, %c0_53], %47 {strides = array<i32>} : memref<1x4x4x64xbf16, #tpu.memory_space<vmem>>, vector<1x1x4x64xbf16>,
    }
    %c4_i32_46 = arith.constant 4 : i32
    return
  }
  func.func @transform_0(%arg0: i32) -> (i32, i32, i32, i32) {
    %c0_i32 = arith.constant 0 : i32
    %c0_i32_0 = arith.constant 0 : i32
    %c0_i32_1 = arith.constant 0 : i32
    %c0_i32_2 = arith.constant 0 : i32
    return %arg0, %c0_i32, %c0_i32_0, %c0_i32_1 : i32, i32, i32, i32
  }
  func.func @transform_1(%arg0: i32) -> (i32, i32) {
    %c0_i32 = arith.constant 0 : i32
    %c0_i32_0 = arith.constant 0 : i32
    %c0_i32_1 = arith.constant 0 : i32
    return %c0_i32, %c0_i32_0 : i32, i32
  }
  func.func @transform_2(%arg0: i32) -> (i32, i32) {
    %c0_i32 = arith.constant 0 : i32
    %c0_i32_0 = arith.constant 0 : i32
    %c0_i32_1 = arith.constant 0 : i32
    return %c0_i32, %c0_i32_0 : i32, i32
  }
  func.func @transform_3(%arg0: i32) -> (i32, i32, i32, i32) {
    %c0_i32 = arith.constant 0 : i32
    %c0_i32_0 = arith.constant 0 : i32
    %c0_i32_1 = arith.constant 0 : i32
    %c0_i32_2 = arith.constant 0 : i32
    return %arg0, %c0_i32, %c0_i32_0, %c0_i32_1 : i32, i32, i32, i32
  }
}

module attributes {stable_mosaic.version = 11 : i64} {
  func.func @_conv_relu_pool_kernel(%arg0: i32, %arg1: memref<1x18x18x3xbf16, #tpu.memory_space<vmem>>, %arg2: memref<27x32xbf16, #tpu.memory_space<vmem>>, %arg3: memref<1x32xf32, #tpu.memory_space<vmem>>, %arg4: memref<1x8x8x32xbf16, #tpu.memory_space<vmem>>, %arg5: memref<256x32xf32, #tpu.memory_space<vmem>>, %arg6: memref<128x32xf32, #tpu.memory_space<vmem>>) attributes {dimension_semantics = [#tpu.dimension_semantics<parallel>], iteration_bounds = array<i64: 2>, scalar_prefetch = 0 : i64, scratch_operands = 2 : i64, tpu.core_type = #tpu.core_type<tc>, window_params = [{transform_indices = @transform_0, window_bounds = array<i64: 1, 18, 18, 3>}, {pipeline_mode = #tpu.pipeline_mode<synchronous>, transform_indices = @transform_1, window_bounds = array<i64: 27, 32>}, {pipeline_mode = #tpu.pipeline_mode<synchronous>, transform_indices = @transform_2, window_bounds = array<i64: 1, 32>}, {transform_indices = @transform_3, window_bounds = array<i64: 1, 8, 8, 32>}]} {
    %c0 = arith.constant 0 : index
    %c0_0 = arith.constant 0 : index
    %c0_1 = arith.constant 0 : index
    %c0_2 = arith.constant 0 : index
    %0 = vector.load %arg1[%c0, %c0_0, %c0_1, %c0_2] : memref<1x18x18x3xbf16, #tpu.memory_space<vmem>>, vector<1x16x16x3xbf16>
    %1 = vector.shape_cast %0 : vector<1x16x16x3xbf16> to vector<16x16x3xbf16>
    %c0_3 = arith.constant 0 : index
    %c0_4 = arith.constant 0 : index
    %c1 = arith.constant 1 : index
    %c0_5 = arith.constant 0 : index
    %2 = vector.load %arg1[%c0_3, %c0_4, %c1, %c0_5] : memref<1x18x18x3xbf16, #tpu.memory_space<vmem>>, vector<1x16x16x3xbf16>
    %3 = vector.shape_cast %2 : vector<1x16x16x3xbf16> to vector<16x16x3xbf16>
    %c0_6 = arith.constant 0 : index
    %c0_7 = arith.constant 0 : index
    %c2 = arith.constant 2 : index
    %c0_8 = arith.constant 0 : index
    %4 = vector.load %arg1[%c0_6, %c0_7, %c2, %c0_8] : memref<1x18x18x3xbf16, #tpu.memory_space<vmem>>, vector<1x16x16x3xbf16>
    %5 = vector.shape_cast %4 : vector<1x16x16x3xbf16> to vector<16x16x3xbf16>
    %c0_9 = arith.constant 0 : index
    %c1_10 = arith.constant 1 : index
    %c0_11 = arith.constant 0 : index
    %c0_12 = arith.constant 0 : index
    %6 = vector.load %arg1[%c0_9, %c1_10, %c0_11, %c0_12] : memref<1x18x18x3xbf16, #tpu.memory_space<vmem>>, vector<1x16x16x3xbf16>
    %7 = vector.shape_cast %6 : vector<1x16x16x3xbf16> to vector<16x16x3xbf16>
    %c0_13 = arith.constant 0 : index
    %c1_14 = arith.constant 1 : index
    %c1_15 = arith.constant 1 : index
    %c0_16 = arith.constant 0 : index
    %8 = vector.load %arg1[%c0_13, %c1_14, %c1_15, %c0_16] : memref<1x18x18x3xbf16, #tpu.memory_space<vmem>>, vector<1x16x16x3xbf16>
    %9 = vector.shape_cast %8 : vector<1x16x16x3xbf16> to vector<16x16x3xbf16>
    %c0_17 = arith.constant 0 : index
    %c1_18 = arith.constant 1 : index
    %c2_19 = arith.constant 2 : index
    %c0_20 = arith.constant 0 : index
    %10 = vector.load %arg1[%c0_17, %c1_18, %c2_19, %c0_20] : memref<1x18x18x3xbf16, #tpu.memory_space<vmem>>, vector<1x16x16x3xbf16>
    %11 = vector.shape_cast %10 : vector<1x16x16x3xbf16> to vector<16x16x3xbf16>
    %c0_21 = arith.constant 0 : index
    %c2_22 = arith.constant 2 : index
    %c0_23 = arith.constant 0 : index
    %c0_24 = arith.constant 0 : index
    %12 = vector.load %arg1[%c0_21, %c2_22, %c0_23, %c0_24] : memref<1x18x18x3xbf16, #tpu.memory_space<vmem>>, vector<1x16x16x3xbf16>
    %13 = vector.shape_cast %12 : vector<1x16x16x3xbf16> to vector<16x16x3xbf16>
    %c0_25 = arith.constant 0 : index
    %c2_26 = arith.constant 2 : index
    %c1_27 = arith.constant 1 : index
    %c0_28 = arith.constant 0 : index
    %14 = vector.load %arg1[%c0_25, %c2_26, %c1_27, %c0_28] : memref<1x18x18x3xbf16, #tpu.memory_space<vmem>>, vector<1x16x16x3xbf16>
    %15 = vector.shape_cast %14 : vector<1x16x16x3xbf16> to vector<16x16x3xbf16>
    %c0_29 = arith.constant 0 : index
    %c2_30 = arith.constant 2 : index
    %c2_31 = arith.constant 2 : index
    %c0_32 = arith.constant 0 : index
    %16 = vector.load %arg1[%c0_29, %c2_30, %c2_31, %c0_32] : memref<1x18x18x3xbf16, #tpu.memory_space<vmem>>, vector<1x16x16x3xbf16>
    %17 = vector.shape_cast %16 : vector<1x16x16x3xbf16> to vector<16x16x3xbf16>
    %18 = tpu.concatenate %1, %3, %5, %7, %9, %11, %13, %15, %17 in 2 : vector<16x16x3xbf16>, vector<16x16x3xbf16>, vector<16x16x3xbf16>, vector<16x16x3xbf16>, vector<16x16x3xbf16>, vector<16x16x3xbf16>, vector<16x16x3xbf16>, vector<16x16x3xbf16>, vector<16x16x3xbf16> -> vector<16x16x27xbf16>
    %19 = vector.shape_cast %18 : vector<16x16x27xbf16> to vector<256x27xbf16>
    %c0_33 = arith.constant 0 : index
    %c0_34 = arith.constant 0 : index
    %20 = vector.load %arg2[%c0_33, %c0_34] : memref<27x32xbf16, #tpu.memory_space<vmem>>, vector<27x32xbf16>
    %cst = arith.constant dense<0.000000e+00> : vector<256x32xf32>
    %21 = tpu.matmul %19, %20, %cst {dimension_numbers = #tpu.dot_dimension_numbers<[1], [0], [0], [1], [0, 0, 1, 1], [], []>} : vector<256x27xbf16>, vector<27x32xbf16>, vector<256x32xf32> -> vector<256x32xf32>
    %c0_35 = arith.constant 0 : index
    %c0_36 = arith.constant 0 : index
    %22 = vector.load %arg3[%c0_35, %c0_36] : memref<1x32xf32, #tpu.memory_space<vmem>>, vector<1x32xf32>
    %23 = vector.broadcast %22 : vector<1x32xf32> to vector<256x32xf32>
    %24 = arith.addf %21, %23 : vector<256x32xf32>
    %cst_37 = arith.constant 0.000000e+00 : f32
    %25 = vector.broadcast %cst_37 : f32 to vector<256x32xf32>
    %26 = arith.maximumf %24, %25 : vector<256x32xf32>
    %c0_38 = arith.constant 0 : index
    %c0_39 = arith.constant 0 : index
    %27 = vector.load %arg5[%c0_38, %c0_39] : memref<256x32xf32, #tpu.memory_space<vmem>>, vector<256x32xf32>
    tpu.vector_store %arg5[%c0_38, %c0_39], %26 {strides = array<i32>} : memref<256x32xf32, #tpu.memory_space<vmem>>, vector<256x32xf32>,
    %c0_40 = arith.constant 0 : index
    %c0_41 = arith.constant 0 : index
    %28 = tpu.strided_load %arg5[%c0_40, %c0_41] {strides = array<i32: 2, 1>} : memref<256x32xf32, #tpu.memory_space<vmem>>, vector<128x32xf32>
    %c1_42 = arith.constant 1 : index
    %c0_43 = arith.constant 0 : index
    %29 = tpu.strided_load %arg5[%c1_42, %c0_43] {strides = array<i32: 2, 1>} : memref<256x32xf32, #tpu.memory_space<vmem>>, vector<128x32xf32>
    %30 = arith.maximumf %28, %29 : vector<128x32xf32>
    %c0_44 = arith.constant 0 : index
    %c0_45 = arith.constant 0 : index
    %31 = vector.load %arg6[%c0_44, %c0_45] : memref<128x32xf32, #tpu.memory_space<vmem>>, vector<128x32xf32>
    tpu.vector_store %arg6[%c0_44, %c0_45], %30 {strides = array<i32>} : memref<128x32xf32, #tpu.memory_space<vmem>>, vector<128x32xf32>,
    %c0_i32 = arith.constant 0 : i32
    %c8_i32 = arith.constant 8 : i32
    %32 = arith.addi %c0_i32, %c8_i32 : i32
    %c1_i32 = arith.constant 1 : i32
    scf.for %arg7 = %c0_i32 to %32 step %c1_i32  : i32 {
      %c2_i32 = arith.constant 2 : i32
      %33 = arith.muli %c2_i32, %arg7 : i32
      %c8_i32_47 = arith.constant 8 : i32
      %34 = arith.muli %33, %c8_i32_47 : i32
      %35 = tpu.assume_multiple %34, 8 : i32
      %36 = arith.index_cast %35 : i32 to index
      %c0_48 = arith.constant 0 : index
      %37 = vector.load %arg6[%36, %c0_48] : memref<128x32xf32, #tpu.memory_space<vmem>>, vector<8x32xf32>
      %c8_i32_49 = arith.constant 8 : i32
      %38 = arith.addi %35, %c8_i32_49 : i32
      %39 = arith.index_cast %38 : i32 to index
      %c0_50 = arith.constant 0 : index
      %40 = vector.load %arg6[%39, %c0_50] : memref<128x32xf32, #tpu.memory_space<vmem>>, vector<8x32xf32>
      %41 = arith.maximumf %37, %40 : vector<8x32xf32>
      %42 = vector.shape_cast %41 : vector<8x32xf32> to vector<1x8x32xf32>
      %43 = arith.truncf %42 : vector<1x8x32xf32> to vector<1x8x32xbf16>
      %c0_51 = arith.constant 0 : index
      %44 = arith.index_cast %arg7 : i32 to index
      %c0_52 = arith.constant 0 : index
      %c0_53 = arith.constant 0 : index
      %45 = vector.load %arg4[%c0_51, %44, %c0_52, %c0_53] : memref<1x8x8x32xbf16, #tpu.memory_space<vmem>>, vector<1x1x8x32xbf16>
      %46 = vector.shape_cast %45 : vector<1x1x8x32xbf16> to vector<1x8x32xbf16>
      %47 = vector.shape_cast %43 : vector<1x8x32xbf16> to vector<1x1x8x32xbf16>
      tpu.vector_store %arg4[%c0_51, %44, %c0_52, %c0_53], %47 {strides = array<i32>} : memref<1x8x8x32xbf16, #tpu.memory_space<vmem>>, vector<1x1x8x32xbf16>,
    }
    %c8_i32_46 = arith.constant 8 : i32
    return
  }
  func.func @transform_0(%arg0: i32) -> (i32, i32, i32, i32) {
    %c0_i32 = arith.constant 0 : i32
    %c0_i32_0 = arith.constant 0 : i32
    %c0_i32_1 = arith.constant 0 : i32
    %c0_i32_2 = arith.constant 0 : i32
    return %arg0, %c0_i32, %c0_i32_0, %c0_i32_1 : i32, i32, i32, i32
  }
  func.func @transform_1(%arg0: i32) -> (i32, i32) {
    %c0_i32 = arith.constant 0 : i32
    %c0_i32_0 = arith.constant 0 : i32
    %c0_i32_1 = arith.constant 0 : i32
    return %c0_i32, %c0_i32_0 : i32, i32
  }
  func.func @transform_2(%arg0: i32) -> (i32, i32) {
    %c0_i32 = arith.constant 0 : i32
    %c0_i32_0 = arith.constant 0 : i32
    %c0_i32_1 = arith.constant 0 : i32
    return %c0_i32, %c0_i32_0 : i32, i32
  }
  func.func @transform_3(%arg0: i32) -> (i32, i32, i32, i32) {
    %c0_i32 = arith.constant 0 : i32
    %c0_i32_0 = arith.constant 0 : i32
    %c0_i32_1 = arith.constant 0 : i32
    %c0_i32_2 = arith.constant 0 : i32
    return %arg0, %c0_i32, %c0_i32_0, %c0_i32_1 : i32, i32, i32, i32
  }
}

module attributes {stable_mosaic.version = 11 : i64} {
  func.func @_mlp_kernel(%arg0: i32, %arg1: i32, %arg2: memref<2x1024xbf16, #tpu.memory_space<vmem>>, %arg3: memref<1024x64xbf16, #tpu.memory_space<vmem>>, %arg4: memref<1x64xf32, #tpu.memory_space<vmem>>, %arg5: memref<64x12xbf16, #tpu.memory_space<vmem>>, %arg6: memref<1x12xf32, #tpu.memory_space<vmem>>, %arg7: memref<2x12xf32, #tpu.memory_space<vmem>>, %arg8: memref<2x64xf32, #tpu.memory_space<vmem>>) attributes {dimension_semantics = [#tpu.dimension_semantics<parallel>, #tpu.dimension_semantics<arbitrary>], iteration_bounds = array<i64: 1, 1>, scalar_prefetch = 0 : i64, scratch_operands = 1 : i64, tpu.core_type = #tpu.core_type<tc>, window_params = [{transform_indices = @transform_0, window_bounds = array<i64: 2, 1024>}, {transform_indices = @transform_1, window_bounds = array<i64: 1024, 64>}, {pipeline_mode = #tpu.pipeline_mode<synchronous>, transform_indices = @transform_2, window_bounds = array<i64: 1, 64>}, {pipeline_mode = #tpu.pipeline_mode<synchronous>, transform_indices = @transform_3, window_bounds = array<i64: 64, 12>}, {pipeline_mode = #tpu.pipeline_mode<synchronous>, transform_indices = @transform_4, window_bounds = array<i64: 1, 12>}, {transform_indices = @transform_5, window_bounds = array<i64: 2, 12>}]} {
    %c0_i32 = arith.constant 0 : i32
    %0 = arith.cmpi eq, %arg1, %c0_i32 : i32
    %1 = arith.extui %0 : i1 to i32
    %c0_i32_0 = arith.constant 0 : i32
    %2 = arith.cmpi ne, %1, %c0_i32_0 : i32
    scf.if %2 {
      %cst_10 = arith.constant 0.000000e+00 : f32
      %12 = vector.broadcast %cst_10 : f32 to vector<2x64xf32>
      %c0_11 = arith.constant 0 : index
      %c0_12 = arith.constant 0 : index
      %13 = vector.load %arg8[%c0_11, %c0_12] : memref<2x64xf32, #tpu.memory_space<vmem>>, vector<2x64xf32>
      tpu.vector_store %arg8[%c0_11, %c0_12], %12 {strides = array<i32>} : memref<2x64xf32, #tpu.memory_space<vmem>>, vector<2x64xf32>,
    } else {
    }
    %c0 = arith.constant 0 : index
    %c0_1 = arith.constant 0 : index
    %3 = vector.load %arg8[%c0, %c0_1] : memref<2x64xf32, #tpu.memory_space<vmem>>, vector<2x64xf32>
    %c0_2 = arith.constant 0 : index
    %c0_3 = arith.constant 0 : index
    %4 = vector.load %arg2[%c0_2, %c0_3] : memref<2x1024xbf16, #tpu.memory_space<vmem>>, vector<2x1024xbf16>
    %c0_4 = arith.constant 0 : index
    %c0_5 = arith.constant 0 : index
    %5 = vector.load %arg3[%c0_4, %c0_5] : memref<1024x64xbf16, #tpu.memory_space<vmem>>, vector<1024x64xbf16>
    %cst = arith.constant dense<0.000000e+00> : vector<2x64xf32>
    %6 = tpu.matmul %4, %5, %cst {dimension_numbers = #tpu.dot_dimension_numbers<[1], [0], [0], [1], [0, 0, 1, 1], [], []>} : vector<2x1024xbf16>, vector<1024x64xbf16>, vector<2x64xf32> -> vector<2x64xf32>
    %7 = arith.addf %3, %6 : vector<2x64xf32>
    %c0_6 = arith.constant 0 : index
    %c0_7 = arith.constant 0 : index
    %8 = vector.load %arg8[%c0_6, %c0_7] : memref<2x64xf32, #tpu.memory_space<vmem>>, vector<2x64xf32>
    tpu.vector_store %arg8[%c0_6, %c0_7], %7 {strides = array<i32>} : memref<2x64xf32, #tpu.memory_space<vmem>>, vector<2x64xf32>,
    %c0_i32_8 = arith.constant 0 : i32
    %9 = arith.cmpi eq, %arg1, %c0_i32_8 : i32
    %10 = arith.extui %9 : i1 to i32
    %c0_i32_9 = arith.constant 0 : i32
    %11 = arith.cmpi ne, %10, %c0_i32_9 : i32
    scf.if %11 {
      %c0_10 = arith.constant 0 : index
      %c0_11 = arith.constant 0 : index
      %12 = vector.load %arg8[%c0_10, %c0_11] : memref<2x64xf32, #tpu.memory_space<vmem>>, vector<2x64xf32>
      %c0_12 = arith.constant 0 : index
      %c0_13 = arith.constant 0 : index
      %13 = vector.load %arg4[%c0_12, %c0_13] : memref<1x64xf32, #tpu.memory_space<vmem>>, vector<1x64xf32>
      %14 = vector.broadcast %13 : vector<1x64xf32> to vector<2x64xf32>
      %15 = arith.addf %12, %14 : vector<2x64xf32>
      %cst_14 = arith.constant 0.000000e+00 : f32
      %16 = vector.broadcast %cst_14 : f32 to vector<2x64xf32>
      %17 = arith.maximumf %15, %16 : vector<2x64xf32>
      %18 = arith.truncf %17 : vector<2x64xf32> to vector<2x64xbf16>
      %c0_15 = arith.constant 0 : index
      %c0_16 = arith.constant 0 : index
      %19 = vector.load %arg5[%c0_15, %c0_16] : memref<64x12xbf16, #tpu.memory_space<vmem>>, vector<64x12xbf16>
      %cst_17 = arith.constant dense<0.000000e+00> : vector<2x12xf32>
      %20 = tpu.matmul %18, %19, %cst_17 {dimension_numbers = #tpu.dot_dimension_numbers<[1], [0], [0], [1], [0, 0, 1, 1], [], []>} : vector<2x64xbf16>, vector<64x12xbf16>, vector<2x12xf32> -> vector<2x12xf32>
      %c0_18 = arith.constant 0 : index
      %c0_19 = arith.constant 0 : index
      %21 = vector.load %arg6[%c0_18, %c0_19] : memref<1x12xf32, #tpu.memory_space<vmem>>, vector<1x12xf32>
      %22 = vector.broadcast %21 : vector<1x12xf32> to vector<2x12xf32>
      %23 = arith.addf %20, %22 : vector<2x12xf32>
      %c0_20 = arith.constant 0 : index
      %c0_21 = arith.constant 0 : index
      %24 = vector.load %arg7[%c0_20, %c0_21] : memref<2x12xf32, #tpu.memory_space<vmem>>, vector<2x12xf32>
      tpu.vector_store %arg7[%c0_20, %c0_21], %23 {strides = array<i32>} : memref<2x12xf32, #tpu.memory_space<vmem>>, vector<2x12xf32>,
    } else {
    }
    return
  }
  func.func @transform_0(%arg0: i32, %arg1: i32) -> (i32, i32) {
    %c0_i32 = arith.constant 0 : i32
    return %arg0, %arg1 : i32, i32
  }
  func.func @transform_1(%arg0: i32, %arg1: i32) -> (i32, i32) {
    %c0_i32 = arith.constant 0 : i32
    %c0_i32_0 = arith.constant 0 : i32
    return %arg1, %c0_i32 : i32, i32
  }
  func.func @transform_2(%arg0: i32, %arg1: i32) -> (i32, i32) {
    %c0_i32 = arith.constant 0 : i32
    %c0_i32_0 = arith.constant 0 : i32
    %c0_i32_1 = arith.constant 0 : i32
    return %c0_i32, %c0_i32_0 : i32, i32
  }
  func.func @transform_3(%arg0: i32, %arg1: i32) -> (i32, i32) {
    %c0_i32 = arith.constant 0 : i32
    %c0_i32_0 = arith.constant 0 : i32
    %c0_i32_1 = arith.constant 0 : i32
    return %c0_i32, %c0_i32_0 : i32, i32
  }
  func.func @transform_4(%arg0: i32, %arg1: i32) -> (i32, i32) {
    %c0_i32 = arith.constant 0 : i32
    %c0_i32_0 = arith.constant 0 : i32
    %c0_i32_1 = arith.constant 0 : i32
    return %c0_i32, %c0_i32_0 : i32, i32
  }
  func.func @transform_5(%arg0: i32, %arg1: i32) -> (i32, i32) {
    %c0_i32 = arith.constant 0 : i32
    %c0_i32_0 = arith.constant 0 : i32
    return %arg0, %c0_i32 : i32, i32
  }
}

</mosaic_0001>

<llo_original>
// kernel: pointnet_forward.5
$region0: #{pointnet_forward.5}
  #allocation0 [shape = 'u32[]', space=smem, size = 0x4, offset = 0x4, fixed_abs, tag = 'smem constant byte address 0x4 - core index']
  #allocation1 [shape = 'u32[144,128]{1,0:T(1,128)}', space=vmem, size = 0x12000, scoped, tag = 'internal scratch']
  #allocation2 [shape = 'f32[2,64]{1,0:T(2,128)}', space=vmem, size = 0x400, scoped, tag = 'scratch operand']
  %s0 = inlined_call_operand.vmem [shape: bf16[2,1024], index: 0, kind: input, shape index: {}]
  %s1 = inlined_call_operand.vmem [shape: bf16[1024,64], index: 1, kind: input, shape index: {}]
  %s2 = inlined_call_operand.vmem [shape: f32[1,64], index: 2, kind: input, shape index: {}]
  %s3 = inlined_call_operand.vmem [shape: bf16[64,12], index: 3, kind: input, shape index: {}]
  %s4 = inlined_call_operand.vmem [shape: f32[1,12], index: 4, kind: input, shape index: {}]
  %s5 = inlined_call_operand.hbm [shape: f32[2,12], index: 5, kind: output, shape index: {}]
  %s6 = sld [smem:[#allocation0]]
  $region38: #{pointnet_forward.5} parent=0
    _
  %s8 = ssub.s32 1, %s6
  %s9 = scalar_select 0, %s8, %s6
  $region1: #{pointnet_forward.5} parent=0
    #allocation3 [shape = 'u8[1024]{0}', space=vmem, size = 0x400, scoped, tag = 'output window, operand 0, single buffered']
    #allocation4 [shape = 's32[1]{0}', space=sflag, size = 0x4, scoped, tag = 'scoped memory for pointnet_forward.5']
    %10 = vsyncpa [#allocation4], 0
    // Predicated region
    $region2: #{pointnet_forward.5} parent=1 // pred_check
      _
    $region3: #{pointnet_forward.5} parent=1 // pred_check_branch
      %12 = sbr.rel (0) target = $region5
    $region4: #{pointnet_forward.5} parent=1 // pred_region
      _
    $region5: #{pointnet_forward.5} parent=1 // pred_fallthru
      _
    // Predicated region
    $region6: #{pointnet_forward.5} parent=1 // pred_check
      _
    $region7: #{pointnet_forward.5} parent=1 // pred_check_branch
      %14 = sbr.rel (0) target = $region9
    $region8: #{pointnet_forward.5} parent=1 // pred_region
      _
    $region9: #{pointnet_forward.5} parent=1 // pred_fallthru
      _
    // Predicated region
    $region10: #{pointnet_forward.5} parent=1 // pred_check
      _
    $region11: #{pointnet_forward.5} parent=1 // pred_check_branch
      %16 = sbr.rel (0) target = $region13
    $region12: #{pointnet_forward.5} parent=1 // pred_region
      _
    $region13: #{pointnet_forward.5} parent=1 // pred_fallthru
      _
    // Predicated region
    $region14: #{pointnet_forward.5} parent=1 // pred_check
      _
    $region15: #{pointnet_forward.5} parent=1 // pred_check_branch
      %18 = sbr.rel (0) target = $region17
    $region16: #{pointnet_forward.5} parent=1 // pred_region
      _
    $region17: #{pointnet_forward.5} parent=1 // pred_fallthru
      _
    // Predicated region
    $region18: #{pointnet_forward.5} parent=1 // pred_check
      _
    $region19: #{pointnet_forward.5} parent=1 // pred_check_branch
      %20 = sbr.rel (0) target = $region21
    $region20: #{pointnet_forward.5} parent=1 // pred_region
      _
    $region21: #{pointnet_forward.5} parent=1 // pred_fallthru
      _
    %p22 = scmp.eq.s32.totalorder 0, 0
    // Predicated region
    $region22: #{pointnet_forward.5} parent=1 // pred_check
      %p23 = pneg %p22
    $region23: #{pointnet_forward.5} parent=1 // pred_check_branch
      %25 = sbr.rel (%p23) target = $region25
    $region24: #{pointnet_forward.5} parent=1 // pred_region
      %vm26 = vcmask 517120
      %27 = vst.msk [vmem:[#allocation2] sm:$0x3] %vm26, 0.0
    $region25: #{pointnet_forward.5} parent=1 // pred_fallthru
      _
    %v28 = vld [vmem:[#allocation2] sm:$0x3]
    %v29 = vld [vmem:[%s0] sm:$0xff]
    %v30 = vld [vmem:[%s1] sm:$0xf]
    %v31 = vld [vmem:[%s1 + $0x4] sm:$0xf]
    %v32 = vld [vmem:[%s1 + $0x8] sm:$0xf]
    %v33 = vld [vmem:[%s1 + $0xc] sm:$0xf]
    %v34 = vld [vmem:[%s1 + $0x10] sm:$0xf]
    %v35 = vld [vmem:[%s1 + $0x14] sm:$0xf]
    %v36 = vld [vmem:[%s1 + $0x18] sm:$0xf]
    %v37 = vld [vmem:[%s1 + $0x1c] sm:$0xf]
    %v38 = vld [vmem:[%s1 + $0x20] sm:$0xf]
    %v39 = vld [vmem:[%s1 + $0x24] sm:$0xf]
    %v40 = vld [vmem:[%s1 + $0x28] sm:$0xf]
    %v41 = vld [vmem:[%s1 + $0x2c] sm:$0xf]
    %v42 = vld [vmem:[%s1 + $0x30] sm:$0xf]
    %v43 = vld [vmem:[%s1 + $0x34] sm:$0xf]
    %v44 = vld [vmem:[%s1 + $0x38] sm:$0xf]
    %v45 = vld [vmem:[%s1 + $0x3c] sm:$0xf]
    %v46 = vld [vmem:[%s1 + $0x40] sm:$0xf]
    %v47 = vld [vmem:[%s1 + $0x44] sm:$0xf]
    %v48 = vld [vmem:[%s1 + $0x48] sm:$0xf]
    %v49 = vld [vmem:[%s1 + $0x4c] sm:$0xf]
    %v50 = vld [vmem:[%s1 + $0x50] sm:$0xf]
    %v51 = vld [vmem:[%s1 + $0x54] sm:$0xf]
    %v52 = vld [vmem:[%s1 + $0x58] sm:$0xf]
    %v53 = vld [vmem:[%s1 + $0x5c] sm:$0xf]
    %v54 = vld [vmem:[%s1 + $0x60] sm:$0xf]
    %v55 = vld [vmem:[%s1 + $0x64] sm:$0xf]
    %v56 = vld [vmem:[%s1 + $0x68] sm:$0xf]
    %v57 = vld [vmem:[%s1 + $0x6c] sm:$0xf]
    %v58 = vld [vmem:[%s1 + $0x70] sm:$0xf]
    %v59 = vld [vmem:[%s1 + $0x74] sm:$0xf]
    %v60 = vld [vmem:[%s1 + $0x78] sm:$0xf]
    %v61 = vld [vmem:[%s1 + $0x7c] sm:$0xf]
    %v62 = vld [vmem:[%s1 + $0x80] sm:$0xf]
    %v63 = vld [vmem:[%s1 + $0x84] sm:$0xf]
    %v64 = vld [vmem:[%s1 + $0x88] sm:$0xf]
    %v65 = vld [vmem:[%s1 + $0x8c] sm:$0xf]
    %v66 = vld [vmem:[%s1 + $0x90] sm:$0xf]
    %v67 = vld [vmem:[%s1 + $0x94] sm:$0xf]
    %v68 = vld [vmem:[%s1 + $0x98] sm:$0xf]
    %v69 = vld [vmem:[%s1 + $0x9c] sm:$0xf]
    %v70 = vld [vmem:[%s1 + $0xa0] sm:$0xf]
    %v71 = vld [vmem:[%s1 + $0xa4] sm:$0xf]
    %v72 = vld [vmem:[%s1 + $0xa8] sm:$0xf]
    %v73 = vld [vmem:[%s1 + $0xac] sm:$0xf]
    %v74 = vld [vmem:[%s1 + $0xb0] sm:$0xf]
    %v75 = vld [vmem:[%s1 + $0xb4] sm:$0xf]
    %v76 = vld [vmem:[%s1 + $0xb8] sm:$0xf]
    %v77 = vld [vmem:[%s1 + $0xbc] sm:$0xf]
    %v78 = vld [vmem:[%s1 + $0xc0] sm:$0xf]
    %v79 = vld [vmem:[%s1 + $0xc4] sm:$0xf]
    %v80 = vld [vmem:[%s1 + $0xc8] sm:$0xf]
    %v81 = vld [vmem:[%s1 + $0xcc] sm:$0xf]
    %v82 = vld [vmem:[%s1 + $0xd0] sm:$0xf]
    %v83 = vld [vmem:[%s1 + $0xd4] sm:$0xf]
    %v84 = vld [vmem:[%s1 + $0xd8] sm:$0xf]
    %v85 = vld [vmem:[%s1 + $0xdc] sm:$0xf]
    %v86 = vld [vmem:[%s1 + $0xe0] sm:$0xf]
    %v87 = vld [vmem:[%s1 + $0xe4] sm:$0xf]
    %v88 = vld [vmem:[%s1 + $0xe8] sm:$0xf]
    %v89 = vld [vmem:[%s1 + $0xec] sm:$0xf]
    %v90 = vld [vmem:[%s1 + $0xf0] sm:$0xf]
    %v91 = vld [vmem:[%s1 + $0xf4] sm:$0xf]
    %v92 = vld [vmem:[%s1 + $0xf8] sm:$0xf]
    %v93 = vld [vmem:[%s1 + $0xfc] sm:$0xf]
    %v94 = vld [vmem:[%s1 + $0x100] sm:$0xf]
    %v95 = vld [vmem:[%s1 + $0x104] sm:$0xf]
    %v96 = vld [vmem:[%s1 + $0x108] sm:$0xf]
    %v97 = vld [vmem:[%s1 + $0x10c] sm:$0xf]
    %v98 = vld [vmem:[%s1 + $0x110] sm:$0xf]
    %v99 = vld [vmem:[%s1 + $0x114] sm:$0xf]
    %v100 = vld [vmem:[%s1 + $0x118] sm:$0xf]
    %v101 = vld [vmem:[%s1 + $0x11c] sm:$0xf]
    %v102 = vld [vmem:[%s1 + $0x120] sm:$0xf]
    %v103 = vld [vmem:[%s1 + $0x124] sm:$0xf]
    %v104 = vld [vmem:[%s1 + $0x128] sm:$0xf]
    %v105 = vld [vmem:[%s1 + $0x12c] sm:$0xf]
    %v106 = vld [vmem:[%s1 + $0x130] sm:$0xf]
    %v107 = vld [vmem:[%s1 + $0x134] sm:$0xf]
    %v108 = vld [vmem:[%s1 + $0x138] sm:$0xf]
    %v109 = vld [vmem:[%s1 + $0x13c] sm:$0xf]
    %v110 = vld [vmem:[%s1 + $0x140] sm:$0xf]
    %v111 = vld [vmem:[%s1 + $0x144] sm:$0xf]
    %v112 = vld [vmem:[%s1 + $0x148] sm:$0xf]
    %v113 = vld [vmem:[%s1 + $0x14c] sm:$0xf]
    %v114 = vld [vmem:[%s1 + $0x150] sm:$0xf]
    %v115 = vld [vmem:[%s1 + $0x154] sm:$0xf]
    %v116 = vld [vmem:[%s1 + $0x158] sm:$0xf]
    %v117 = vld [vmem:[%s1 + $0x15c] sm:$0xf]
    %v118 = vld [vmem:[%s1 + $0x160] sm:$0xf]
    %v119 = vld [vmem:[%s1 + $0x164] sm:$0xf]
    %v120 = vld [vmem:[%s1 + $0x168] sm:$0xf]
    %v121 = vld [vmem:[%s1 + $0x16c] sm:$0xf]
    %v122 = vld [vmem:[%s1 + $0x170] sm:$0xf]
    %v123 = vld [vmem:[%s1 + $0x174] sm:$0xf]
    %v124 = vld [vmem:[%s1 + $0x178] sm:$0xf]
    %v125 = vld [vmem:[%s1 + $0x17c] sm:$0xf]
    %v126 = vld [vmem:[%s1 + $0x180] sm:$0xf]
    %v127 = vld [vmem:[%s1 + $0x184] sm:$0xf]
    %v128 = vld [vmem:[%s1 + $0x188] sm:$0xf]
    %v129 = vld [vmem:[%s1 + $0x18c] sm:$0xf]
    %v130 = vld [vmem:[%s1 + $0x190] sm:$0xf]
    %v131 = vld [vmem:[%s1 + $0x194] sm:$0xf]
    %v132 = vld [vmem:[%s1 + $0x198] sm:$0xf]
    %v133 = vld [vmem:[%s1 + $0x19c] sm:$0xf]
    %v134 = vld [vmem:[%s1 + $0x1a0] sm:$0xf]
    %v135 = vld [vmem:[%s1 + $0x1a4] sm:$0xf]
    %v136 = vld [vmem:[%s1 + $0x1a8] sm:$0xf]
    %v137 = vld [vmem:[%s1 + $0x1ac] sm:$0xf]
    %v138 = vld [vmem:[%s1 + $0x1b0] sm:$0xf]
    %v139 = vld [vmem:[%s1 + $0x1b4] sm:$0xf]
    %v140 = vld [vmem:[%s1 + $0x1b8] sm:$0xf]
    %v141 = vld [vmem:[%s1 + $0x1bc] sm:$0xf]
    %v142 = vld [vmem:[%s1 + $0x1c0] sm:$0xf]
    %v143 = vld [vmem:[%s1 + $0x1c4] sm:$0xf]
    %v144 = vld [vmem:[%s1 + $0x1c8] sm:$0xf]
    %v145 = vld [vmem:[%s1 + $0x1cc] sm:$0xf]
    %v146 = vld [vmem:[%s1 + $0x1d0] sm:$0xf]
    %v147 = vld [vmem:[%s1 + $0x1d4] sm:$0xf]
    %v148 = vld [vmem:[%s1 + $0x1d8] sm:$0xf]
    %v149 = vld [vmem:[%s1 + $0x1dc] sm:$0xf]
    %v150 = vld [vmem:[%s1 + $0x1e0] sm:$0xf]
    %v151 = vld [vmem:[%s1 + $0x1e4] sm:$0xf]
    %v152 = vld [vmem:[%s1 + $0x1e8] sm:$0xf]
    %v153 = vld [vmem:[%s1 + $0x1ec] sm:$0xf]
    %v154 = vld [vmem:[%s1 + $0x1f0] sm:$0xf]
    %v155 = vld [vmem:[%s1 + $0x1f4] sm:$0xf]
    %v156 = vld [vmem:[%s1 + $0x1f8] sm:$0xf]
    %v157 = vld [vmem:[%s1 + $0x1fc] sm:$0xf]
    %v159 = vcombine.high %v29, %v29
    %v161 = vunpack.c.l.s4 1966171168
    %v162 = vunpack.c.0.s8 %v161
    %v163 = vlaneseq
    %v164 = vshrl.u32 %v163, 7
    %v165 = vsub.s32 %v162, %v164
    %v166 = vrot.slane %v29, %v165
    %v168 = vunpack.c.l.s4 1966171168
    %v169 = vunpack.c.0.s8 %v168
    %v170 = vlaneseq
    %v171 = vshrl.u32 %v170, 7
    %v172 = vsub.s32 %v169, %v171
    %v173 = vrot.slane %v159, %v172
    %v174 = vcombine.high %v166, %v166
    %v175 = vcombine.high %v173, %v173
    %v177 = vunpack.c.l.s4 1966171168
    %v178 = vunpack.c.0.s8 %v177
    %v179 = vlaneseq
    %v180 = vshrl.u32 %v179, 7
    %v181 = vsub.s32 %v178, %v180
    %v182 = vrot.slane %v166, %v181
    %v184 = vunpack.c.l.s4 1966171168
    %v185 = vunpack.c.0.s8 %v184
    %v186 = vlaneseq
    %v187 = vshrl.u32 %v186, 7
    %v188 = vsub.s32 %v185, %v187
    %v189 = vrot.slane %v173, %v188
    %v191 = vunpack.c.l.s4 1966171168
    %v192 = vunpack.c.0.s8 %v191
    %v193 = vlaneseq
    %v194 = vshrl.u32 %v193, 7
    %v195 = vsub.s32 %v192, %v194
    %v196 = vrot.slane %v174, %v195
    %v198 = vunpack.c.l.s4 1966171168
    %v199 = vunpack.c.0.s8 %v198
    %v200 = vlaneseq
    %v201 = vshrl.u32 %v200, 7
    %v202 = vsub.s32 %v199, %v201
    %v203 = vrot.slane %v175, %v202
    %v204 = vcombine.high %v182, %v182
    %v205 = vcombine.high %v189, %v189
    %v206 = vcombine.high %v196, %v196
    %v207 = vcombine.high %v203, %v203
    %v344 = vunpack.c.l.b16 %v30
    %v345 = vunpack.c.l.b16 %v31
    %v346 = vunpack.c.l.b16 %v32
    %v347 = vunpack.c.l.b16 %v33
    %v348 = vunpack.c.l.b16 %v34
    %v349 = vunpack.c.l.b16 %v35
    %v350 = vunpack.c.l.b16 %v36
    %v351 = vunpack.c.l.b16 %v37
    %v352 = vunpack.c.l.b16 %v38
    %v353 = vunpack.c.l.b16 %v39
    %v354 = vunpack.c.l.b16 %v40
    %v355 = vunpack.c.l.b16 %v41
    %v356 = vunpack.c.l.b16 %v42
    %v357 = vunpack.c.l.b16 %v43
    %v358 = vunpack.c.l.b16 %v44
    %v359 = vunpack.c.l.b16 %v45
    %v360 = vunpack.c.l.b16 %v46
    %v361 = vunpack.c.l.b16 %v47
    %v362 = vunpack.c.l.b16 %v48
    %v363 = vunpack.c.l.b16 %v49
    %v364 = vunpack.c.l.b16 %v50
    %v365 = vunpack.c.l.b16 %v51
    %v366 = vunpack.c.l.b16 %v52
    %v367 = vunpack.c.l.b16 %v53
    %v368 = vunpack.c.l.b16 %v54
    %v369 = vunpack.c.l.b16 %v55
    %v370 = vunpack.c.l.b16 %v56
    %v371 = vunpack.c.l.b16 %v57
    %v372 = vunpack.c.l.b16 %v58
    %v373 = vunpack.c.l.b16 %v59
    %v374 = vunpack.c.l.b16 %v60
    %v375 = vunpack.c.l.b16 %v61
    %v376 = vunpack.c.l.b16 %v62
    %v377 = vunpack.c.l.b16 %v63
    %v378 = vunpack.c.l.b16 %v64
    %v379 = vunpack.c.l.b16 %v65
    %v380 = vunpack.c.l.b16 %v66
    %v381 = vunpack.c.l.b16 %v67
    %v382 = vunpack.c.l.b16 %v68
    %v383 = vunpack.c.l.b16 %v69
    %v384 = vunpack.c.l.b16 %v70
    %v385 = vunpack.c.l.b16 %v71
    %v386 = vunpack.c.l.b16 %v72
    %v387 = vunpack.c.l.b16 %v73
    %v388 = vunpack.c.l.b16 %v74
    %v389 = vunpack.c.l.b16 %v75
    %v390 = vunpack.c.l.b16 %v76
    %v391 = vunpack.c.l.b16 %v77
    %v392 = vunpack.c.l.b16 %v78
    %v393 = vunpack.c.l.b16 %v79
    %v394 = vunpack.c.l.b16 %v80
    %v395 = vunpack.c.l.b16 %v81
    %v396 = vunpack.c.l.b16 %v82
    %v397 = vunpack.c.l.b16 %v83
    %v398 = vunpack.c.l.b16 %v84
    %v399 = vunpack.c.l.b16 %v85
    %v400 = vunpack.c.l.b16 %v86
    %v401 = vunpack.c.l.b16 %v87
    %v402 = vunpack.c.l.b16 %v88
    %v403 = vunpack.c.l.b16 %v89
    %v404 = vunpack.c.l.b16 %v90
    %v405 = vunpack.c.l.b16 %v91
    %v406 = vunpack.c.l.b16 %v92
    %v407 = vunpack.c.l.b16 %v93
    %v408 = vunpack.c.l.b16 %v94
    %v409 = vunpack.c.l.b16 %v95
    %v410 = vunpack.c.l.b16 %v96
    %v411 = vunpack.c.l.b16 %v97
    %v412 = vunpack.c.l.b16 %v98
    %v413 = vunpack.c.l.b16 %v99
    %v414 = vunpack.c.l.b16 %v100
    %v415 = vunpack.c.l.b16 %v101
    %v416 = vunpack.c.l.b16 %v102
    %v417 = vunpack.c.l.b16 %v103
    %v418 = vunpack.c.l.b16 %v104
    %v419 = vunpack.c.l.b16 %v105
    %v420 = vunpack.c.l.b16 %v106
    %v421 = vunpack.c.l.b16 %v107
    %v422 = vunpack.c.l.b16 %v108
    %v423 = vunpack.c.l.b16 %v109
    %v424 = vunpack.c.l.b16 %v110
    %v425 = vunpack.c.l.b16 %v111
    %v426 = vunpack.c.l.b16 %v112
    %v427 = vunpack.c.l.b16 %v113
    %v428 = vunpack.c.l.b16 %v114
    %v429 = vunpack.c.l.b16 %v115
    %v430 = vunpack.c.l.b16 %v116
    %v431 = vunpack.c.l.b16 %v117
    %v432 = vunpack.c.l.b16 %v118
    %v433 = vunpack.c.l.b16 %v119
    %v434 = vunpack.c.l.b16 %v120
    %v435 = vunpack.c.l.b16 %v121
    %v436 = vunpack.c.l.b16 %v122
    %v437 = vunpack.c.l.b16 %v123
    %v438 = vunpack.c.l.b16 %v124
    %v439 = vunpack.c.l.b16 %v125
    %v440 = vunpack.c.l.b16 %v126
    %v441 = vunpack.c.l.b16 %v127
    %v442 = vunpack.c.l.b16 %v128
    %v443 = vunpack.c.l.b16 %v129
    %v444 = vunpack.c.l.b16 %v130
    %v445 = vunpack.c.l.b16 %v131
    %v446 = vunpack.c.l.b16 %v132
    %v447 = vunpack.c.l.b16 %v133
    %v448 = vunpack.c.l.b16 %v134
    %v449 = vunpack.c.l.b16 %v135
    %v450 = vunpack.c.l.b16 %v136
    %v451 = vunpack.c.l.b16 %v137
    %v452 = vunpack.c.l.b16 %v138
    %v453 = vunpack.c.l.b16 %v139
    %v454 = vunpack.c.l.b16 %v140
    %v455 = vunpack.c.l.b16 %v141
    %v456 = vunpack.c.l.b16 %v142
    %v457 = vunpack.c.l.b16 %v143
    %v458 = vunpack.c.l.b16 %v144
    %v459 = vunpack.c.l.b16 %v145
    %v460 = vunpack.c.l.b16 %v146
    %v461 = vunpack.c.l.b16 %v147
    %v462 = vunpack.c.l.b16 %v148
    %v463 = vunpack.c.l.b16 %v149
    %v464 = vunpack.c.l.b16 %v150
    %v465 = vunpack.c.l.b16 %v151
    %v466 = vunpack.c.l.b16 %v152
    %v467 = vunpack.c.l.b16 %v153
    %v468 = vunpack.c.l.b16 %v154
    %v469 = vunpack.c.l.b16 %v155
    %v470 = vunpack.c.l.b16 %v156
    %v471 = vunpack.c.l.b16 %v157
    %v472 = vpack.c.b16 %v345, %v344
    %v473 = vpack.c.b16 %v347, %v346
    %v474 = vpack.c.b16 %v349, %v348
    %v475 = vpack.c.b16 %v351, %v350
    %v476 = vpack.c.b16 %v353, %v352
    %v477 = vpack.c.b16 %v355, %v354
    %v478 = vpack.c.b16 %v357, %v356
    %v479 = vpack.c.b16 %v359, %v358
    %v480 = vpack.c.b16 %v361, %v360
    %v481 = vpack.c.b16 %v363, %v362
    %v482 = vpack.c.b16 %v365, %v364
    %v483 = vpack.c.b16 %v367, %v366
    %v484 = vpack.c.b16 %v369, %v368
    %v485 = vpack.c.b16 %v371, %v370
    %v486 = vpack.c.b16 %v373, %v372
    %v487 = vpack.c.b16 %v375, %v374
    %v488 = vpack.c.b16 %v377, %v376
    %v489 = vpack.c.b16 %v379, %v378
    %v490 = vpack.c.b16 %v381, %v380
    %v491 = vpack.c.b16 %v383, %v382
    %v492 = vpack.c.b16 %v385, %v384
    %v493 = vpack.c.b16 %v387, %v386
    %v494 = vpack.c.b16 %v389, %v388
    %v495 = vpack.c.b16 %v391, %v390
    %v496 = vpack.c.b16 %v393, %v392
    %v497 = vpack.c.b16 %v395, %v394
    %v498 = vpack.c.b16 %v397, %v396
    %v499 = vpack.c.b16 %v399, %v398
    %v500 = vpack.c.b16 %v401, %v400
    %v501 = vpack.c.b16 %v403, %v402
    %v502 = vpack.c.b16 %v405, %v404
    %v503 = vpack.c.b16 %v407, %v406
    %v504 = vpack.c.b16 %v409, %v408
    %v505 = vpack.c.b16 %v411, %v410
    %v506 = vpack.c.b16 %v413, %v412
    %v507 = vpack.c.b16 %v415, %v414
    %v508 = vpack.c.b16 %v417, %v416
    %v509 = vpack.c.b16 %v419, %v418
    %v510 = vpack.c.b16 %v421, %v420
    %v511 = vpack.c.b16 %v423, %v422
    %v512 = vpack.c.b16 %v425, %v424
    %v513 = vpack.c.b16 %v427, %v426
    %v514 = vpack.c.b16 %v429, %v428
    %v515 = vpack.c.b16 %v431, %v430
    %v516 = vpack.c.b16 %v433, %v432
    %v517 = vpack.c.b16 %v435, %v434
    %v518 = vpack.c.b16 %v437, %v436
    %v519 = vpack.c.b16 %v439, %v438
    %v520 = vpack.c.b16 %v441, %v440
    %v521 = vpack.c.b16 %v443, %v442
    %v522 = vpack.c.b16 %v445, %v444
    %v523 = vpack.c.b16 %v447, %v446
    %v524 = vpack.c.b16 %v449, %v448
    %v525 = vpack.c.b16 %v451, %v450
    %v526 = vpack.c.b16 %v453, %v452
    %v527 = vpack.c.b16 %v455, %v454
    %v528 = vpack.c.b16 %v457, %v456
    %v529 = vpack.c.b16 %v459, %v458
    %v530 = vpack.c.b16 %v461, %v460
    %v531 = vpack.c.b16 %v463, %v462
    %v532 = vpack.c.b16 %v465, %v464
    %v533 = vpack.c.b16 %v467, %v466
    %v534 = vpack.c.b16 %v469, %v468
    %v535 = vpack.c.b16 %v471, %v470
    %600 = vmatprep.subr.bf16.mxu0 0
    %601 = vmatpush1.bf16.msra.mxu0 %v479
    %602 = vmatprep.subr.bf16.mxu0 0
    %603 = vmatpush1.bf16.msra.mxu0 %v478
    %604 = vmatprep.subr.bf16.mxu0 0
    %605 = vmatpush1.bf16.msra.mxu0 %v477
    %606 = vmatprep.subr.bf16.mxu0 0
    %607 = vmatpush1.bf16.msra.mxu0 %v476
    %608 = vmatprep.subr.bf16.mxu0 0
    %609 = vmatpush1.bf16.msra.mxu0 %v475
    %610 = vmatprep.subr.bf16.mxu0 0
    %611 = vmatpush1.bf16.msra.mxu0 %v474
    %612 = vmatprep.subr.bf16.mxu0 0
    %613 = vmatpush1.bf16.msra.mxu0 %v473
    %614 = vmatprep.subr.bf16.mxu0 0
    %615 = vmatpush1.bf16.msra.mxu0 %v472
    %616 = vmatprep.subr.bf16.mxu0 0
    %617 = vmatpush2.bf16.msra.mxu0 %v487
    %618 = vmatprep.subr.bf16.mxu0 0
    %619 = vmatpush2.bf16.msra.mxu0 %v486
    %620 = vmatprep.subr.bf16.mxu0 0
    %621 = vmatpush2.bf16.msra.mxu0 %v485
    %622 = vmatprep.subr.bf16.mxu0 0
    %623 = vmatpush2.bf16.msra.mxu0 %v484
    %624 = vmatprep.subr.bf16.mxu0 0
    %625 = vmatpush2.bf16.msra.mxu0 %v483
    %626 = vmatprep.subr.bf16.mxu0 0
    %627 = vmatpush2.bf16.msra.mxu0 %v482
    %628 = vmatprep.subr.bf16.mxu0 0
    %629 = vmatpush2.bf16.msra.mxu0 %v481
    %630 = vmatprep.subr.bf16.mxu0 0
    %631 = vmatpush2.bf16.msra.mxu0 %v480
    %632 = vmatprep.mubr.bf16.mxu0 %v196
    %633 = vmatmul.mubr.bf16.gmra.mxu0 %v182
    %v634 = vpop.f32.mrf.mxu0
    %v635 = vadd.f32 0.0, %v634
    %v636 = vpop.f32.mrf.mxu0
    %v637 = vpop.f32.mrf.mxu0
    %v638 = vpop.f32.mrf.mxu0
    %639 = vdwg.mxu0
    %640 = vmatprep.subr.bf16.mxu0 0
    %641 = vmatpush1.bf16.msra.mxu0 %v495
    %642 = vmatprep.subr.bf16.mxu0 0
    %643 = vmatpush1.bf16.msra.mxu0 %v494
    %644 = vmatprep.subr.bf16.mxu0 0
    %645 = vmatpush1.bf16.msra.mxu0 %v493
    %646 = vmatprep.subr.bf16.mxu0 0
    %647 = vmatpush1.bf16.msra.mxu0 %v492
    %648 = vmatprep.subr.bf16.mxu0 0
    %649 = vmatpush1.bf16.msra.mxu0 %v491
    %650 = vmatprep.subr.bf16.mxu0 0
    %651 = vmatpush1.bf16.msra.mxu0 %v490
    %652 = vmatprep.subr.bf16.mxu0 0
    %653 = vmatpush1.bf16.msra.mxu0 %v489
    %654 = vmatprep.subr.bf16.mxu0 0
    %655 = vmatpush1.bf16.msra.mxu0 %v488
    %656 = vmatprep.subr.bf16.mxu0 0
    %657 = vmatpush2.bf16.msra.mxu0 %v503
    %658 = vmatprep.subr.bf16.mxu0 0
    %659 = vmatpush2.bf16.msra.mxu0 %v502
    %660 = vmatprep.subr.bf16.mxu0 0
    %661 = vmatpush2.bf16.msra.mxu0 %v501
    %662 = vmatprep.subr.bf16.mxu0 0
    %663 = vmatpush2.bf16.msra.mxu0 %v500
    %664 = vmatprep.subr.bf16.mxu0 0
    %665 = vmatpush2.bf16.msra.mxu0 %v499
    %666 = vmatprep.subr.bf16.mxu0 0
    %667 = vmatpush2.bf16.msra.mxu0 %v498
    %668 = vmatprep.subr.bf16.mxu0 0
    %669 = vmatpush2.bf16.msra.mxu0 %v497
    %670 = vmatprep.subr.bf16.mxu0 0
    %671 = vmatpush2.bf16.msra.mxu0 %v496
    %672 = vmatprep.mubr.bf16.mxu0 %v206
    %673 = vmatmul.mubr.bf16.gmra.mxu0 %v204
    %v674 = vpop.f32.mrf.mxu0
    %v675 = vadd.f32 %v635, %v674
    %v676 = vpop.f32.mrf.mxu0
    %v677 = vpop.f32.mrf.mxu0
    %v678 = vpop.f32.mrf.mxu0
    %679 = vdwg.mxu0
    %680 = vmatprep.subr.bf16.mxu0 0
    %681 = vmatpush1.bf16.msra.mxu0 %v511
    %682 = vmatprep.subr.bf16.mxu0 0
    %683 = vmatpush1.bf16.msra.mxu0 %v510
    %684 = vmatprep.subr.bf16.mxu0 0
    %685 = vmatpush1.bf16.msra.mxu0 %v509
    %686 = vmatprep.subr.bf16.mxu0 0
    %687 = vmatpush1.bf16.msra.mxu0 %v508
    %688 = vmatprep.subr.bf16.mxu0 0
    %689 = vmatpush1.bf16.msra.mxu0 %v507
    %690 = vmatprep.subr.bf16.mxu0 0
    %691 = vmatpush1.bf16.msra.mxu0 %v506
    %692 = vmatprep.subr.bf16.mxu0 0
    %693 = vmatpush1.bf16.msra.mxu0 %v505
    %694 = vmatprep.subr.bf16.mxu0 0
    %695 = vmatpush1.bf16.msra.mxu0 %v504
    %696 = vmatprep.subr.bf16.mxu0 0
    %697 = vmatpush2.bf16.msra.mxu0 %v519
    %698 = vmatprep.subr.bf16.mxu0 0
    %699 = vmatpush2.bf16.msra.mxu0 %v518
    %700 = vmatprep.subr.bf16.mxu0 0
    %701 = vmatpush2.bf16.msra.mxu0 %v517
    %702 = vmatprep.subr.bf16.mxu0 0
    %703 = vmatpush2.bf16.msra.mxu0 %v516
    %704 = vmatprep.subr.bf16.mxu0 0
    %705 = vmatpush2.bf16.msra.mxu0 %v515
    %706 = vmatprep.subr.bf16.mxu0 0
    %707 = vmatpush2.bf16.msra.mxu0 %v514
    %708 = vmatprep.subr.bf16.mxu0 0
    %709 = vmatpush2.bf16.msra.mxu0 %v513
    %710 = vmatprep.subr.bf16.mxu0 0
    %711 = vmatpush2.bf16.msra.mxu0 %v512
    %712 = vmatprep.mubr.bf16.mxu0 %v203
    %713 = vmatmul.mubr.bf16.gmra.mxu0 %v189
    %v714 = vpop.f32.mrf.mxu0
    %v715 = vadd.f32 %v675, %v714
    %v716 = vpop.f32.mrf.mxu0
    %v717 = vpop.f32.mrf.mxu0
    %v718 = vpop.f32.mrf.mxu0
    %719 = vdwg.mxu0
    %720 = vmatprep.subr.bf16.mxu0 0
    %721 = vmatpush1.bf16.msra.mxu0 %v527
    %722 = vmatprep.subr.bf16.mxu0 0
    %723 = vmatpush1.bf16.msra.mxu0 %v526
    %724 = vmatprep.subr.bf16.mxu0 0
    %725 = vmatpush1.bf16.msra.mxu0 %v525
    %726 = vmatprep.subr.bf16.mxu0 0
    %727 = vmatpush1.bf16.msra.mxu0 %v524
    %728 = vmatprep.subr.bf16.mxu0 0
    %729 = vmatpush1.bf16.msra.mxu0 %v523
    %730 = vmatprep.subr.bf16.mxu0 0
    %731 = vmatpush1.bf16.msra.mxu0 %v522
    %732 = vmatprep.subr.bf16.mxu0 0
    %733 = vmatpush1.bf16.msra.mxu0 %v521
    %734 = vmatprep.subr.bf16.mxu0 0
    %735 = vmatpush1.bf16.msra.mxu0 %v520
    %736 = vmatprep.subr.bf16.mxu0 0
    %737 = vmatpush2.bf16.msra.mxu0 %v535
    %738 = vmatprep.subr.bf16.mxu0 0
    %739 = vmatpush2.bf16.msra.mxu0 %v534
    %740 = vmatprep.subr.bf16.mxu0 0
    %741 = vmatpush2.bf16.msra.mxu0 %v533
    %742 = vmatprep.subr.bf16.mxu0 0
    %743 = vmatpush2.bf16.msra.mxu0 %v532
    %744 = vmatprep.subr.bf16.mxu0 0
    %745 = vmatpush2.bf16.msra.mxu0 %v531
    %746 = vmatprep.subr.bf16.mxu0 0
    %747 = vmatpush2.bf16.msra.mxu0 %v530
    %748 = vmatprep.subr.bf16.mxu0 0
    %749 = vmatpush2.bf16.msra.mxu0 %v529
    %750 = vmatprep.subr.bf16.mxu0 0
    %751 = vmatpush2.bf16.msra.mxu0 %v528
    %752 = vmatprep.mubr.bf16.mxu0 %v207
    %753 = vmatmul.mubr.bf16.gmra.mxu0 %v205
    %v754 = vpop.f32.mrf.mxu0
    %v755 = vadd.f32 %v715, %v754
    %v756 = vpop.f32.mrf.mxu0
    %v757 = vpop.f32.mrf.mxu0
    %v758 = vpop.f32.mrf.mxu0
    %759 = vdwg.mxu0
    %v760 = vadd.f32 %v28, %v755
    %vm761 = vcmask 517120
    %762 = vst.msk [vmem:[#allocation2] sm:$0x3] %vm761, %v760
    // Predicated region
    $region26: #{pointnet_forward.5} parent=1 // pred_check
      %p763 = pneg %p22
    $region27: #{pointnet_forward.5} parent=1 // pred_check_branch
      %765 = sbr.rel (%p763) target = $region29
    $region28: #{pointnet_forward.5} parent=1 // pred_region
      %v766 = vld [vmem:[#allocation2] sm:$0x3]
      %v767 = vld [vmem:[%s2] sm:$0x1]
      %v769 = vlaneseq
      %v770 = vshrl.u32 %v769, 7
      %v771 = vsub.s32 0, %v770
      %v772 = vrot.slane %v767, %v771
      %v774 = vadd.f32 %v766, %v772
      %v775 = vmax.f32 %v774, 0.0
      %v776 = vpack.c.bf16 %v775, %v775
      %v777 = vld [vmem:[%s3] sm:$0xf]
      %v778 = vld [vmem:[%s3 + $0x4] sm:$0xf]
      %v779 = vld [vmem:[%s3 + $0x8] sm:$0xf]
      %v780 = vld [vmem:[%s3 + $0xc] sm:$0xf]
      %v781 = vld [vmem:[%s3 + $0x10] sm:$0xf]
      %v782 = vld [vmem:[%s3 + $0x14] sm:$0xf]
      %v783 = vld [vmem:[%s3 + $0x18] sm:$0xf]
      %v784 = vld [vmem:[%s3 + $0x1c] sm:$0xf]
      %v785 = vld [vmem:[%s4] sm:$0x1]
      %v787 = vlaneseq
      %v788 = vshrl.u32 %v787, 7
      %v789 = vsub.s32 0, %v788
      %v790 = vrot.slane %v785, %v789
      %v800 = vunpack.c.l.b16 %v777
      %v801 = vunpack.c.l.b16 %v778
      %v802 = vunpack.c.l.b16 %v779
      %v803 = vunpack.c.l.b16 %v780
      %v804 = vunpack.c.l.b16 %v781
      %v805 = vunpack.c.l.b16 %v782
      %v806 = vunpack.c.l.b16 %v783
      %v807 = vunpack.c.l.b16 %v784
      %v808 = vpack.c.b16 %v801, %v800
      %v809 = vpack.c.b16 %v803, %v802
      %v810 = vpack.c.b16 %v805, %v804
      %v811 = vpack.c.b16 %v807, %v806
      %vm816 = vcmask 523264
      %v818 = vsel %vm816, %v776, 0
      %820 = vmatprep.subr.bf16.mxu0 0
      %821 = vmatpush1.bf16.msra.mxu0 0
      %822 = vmatprep.subr.bf16.mxu0 0
      %823 = vmatpush1.bf16.msra.mxu0 0
      %824 = vmatprep.subr.bf16.mxu0 0
      %825 = vmatpush1.bf16.msra.mxu0 0
      %826 = vmatprep.subr.bf16.mxu0 0
      %827 = vmatpush1.bf16.msra.mxu0 0
      %828 = vmatprep.subr.bf16.mxu0 0
      %829 = vmatpush1.bf16.msra.mxu0 %v811
      %830 = vmatprep.subr.bf16.mxu0 0
      %831 = vmatpush1.bf16.msra.mxu0 %v810
      %832 = vmatprep.subr.bf16.mxu0 0
      %833 = vmatpush1.bf16.msra.mxu0 %v809
      %834 = vmatprep.subr.bf16.mxu0 0
      %835 = vmatpush1.bf16.msra.mxu0 %v808
      %836 = vmatprep.subr.bf16.mxu0 0
      %837 = vmatpush2.bf16.msra.mxu0 0
      %838 = vmatprep.subr.bf16.mxu0 0
      %839 = vmatpush2.bf16.msra.mxu0 0
      %840 = vmatprep.subr.bf16.mxu0 0
      %841 = vmatpush2.bf16.msra.mxu0 0
      %842 = vmatprep.subr.bf16.mxu0 0
      %843 = vmatpush2.bf16.msra.mxu0 0
      %844 = vmatprep.subr.bf16.mxu0 0
      %845 = vmatpush2.bf16.msra.mxu0 0
      %846 = vmatprep.subr.bf16.mxu0 0
      %847 = vmatpush2.bf16.msra.mxu0 0
      %848 = vmatprep.subr.bf16.mxu0 0
      %849 = vmatpush2.bf16.msra.mxu0 0
      %850 = vmatprep.subr.bf16.mxu0 0
      %851 = vmatpush2.bf16.msra.mxu0 0
      %852 = vmatprep.mubr.bf16.mxu0 0
      %853 = vmatmul.mubr.bf16.gmra.mxu0 %v818
      %v854 = vpop.f32.mrf.mxu0
      %v855 = vadd.f32 %v790, %v854
      %v856 = vpop.f32.mrf.mxu0
      %v857 = vpop.f32.mrf.mxu0
      %v858 = vpop.f32.mrf.mxu0
      %859 = vdwg.mxu0
      %vm860 = vcmask 91136
      %861 = vst.msk [vmem:[#allocation3] sm:$0x3] %vm860, %v855
    $region29: #{pointnet_forward.5} parent=1 // pred_fallthru
      _
    // Predicated region
    $region30: #{pointnet_forward.5} parent=1 // pred_check
      _
    $region31: #{pointnet_forward.5} parent=1 // pred_check_branch
      %863 = sbr.rel (0) target = $region33
    $region32: #{pointnet_forward.5} parent=1 // pred_region
      %s865 = ssub.s32 32, 32
      %866 = vsyncadd [#allocation4], %s865
      %s868 = sshll.u32 [#allocation3], 4
      %s869 = int_to_ptr.vmem [resolvable:$true] %s868
      %871 = dma.vmem_to_hbm [thread:$0]  %s869, 32, %s5, [#allocation4]
    $region33: #{pointnet_forward.5} parent=1 // pred_fallthru
      _
    // Predicated region
    $region34: #{pointnet_forward.5} parent=1 // pred_check
      _
    $region35: #{pointnet_forward.5} parent=1 // pred_check_branch
      %873 = sbr.rel (0) target = $region37
    $region36: #{pointnet_forward.5} parent=1 // pred_region
      %874 = dma.done [#allocation4], 32
    $region37: #{pointnet_forward.5} parent=1 // pred_fallthru
      _
    %875 = vsyncpa [#allocation4], 1

// kernel: pointnet_forward.4
$region0: #{pointnet_forward.4}
  #allocation0 [shape = 'u32[]', space=smem, size = 0x4, offset = 0x4, fixed_abs, tag = 'smem constant byte address 0x4 - core index']
  #allocation1 [shape = 'u32[144,128]{1,0:T(1,128)}', space=vmem, size = 0x12000, scoped, tag = 'internal scratch']
  #allocation2 [shape = 'f32[64,64]{1,0:T(8,128)}', space=vmem, size = 0x8000, scoped, tag = 'scratch operand']
  #allocation3 [shape = 'f32[32,64]{1,0:T(8,128)}', space=vmem, size = 0x4000, scoped, tag = 'scratch operand']
  %s0 = inlined_call_operand.vmem [shape: bf16[2,10,10,32], index: 0, kind: input, shape index: {}]
  %s1 = inlined_call_operand.vmem [shape: bf16[288,64], index: 1, kind: input, shape index: {}]
  %s2 = inlined_call_operand.vmem [shape: f32[1,64], index: 2, kind: input, shape index: {}]
  %s3 = inlined_call_operand.vmem [shape: bf16[2,4,4,64], index: 3, kind: output, shape index: {}]
  %s4 = sld [smem:[#allocation0]]
  $region52: #{pointnet_forward.4} parent=0
    _
  %s6 = ssub.s32 1, %s4
  %s7 = scalar_select 0, %s6, %s4
  loop: start=0, step=1, limit=4
  $region2: #{pointnet_forward.4} parent=0 // loop_pre_header
    _
  $region3: #{pointnet_forward.4} parent=0 // loop_header
    %s9 = sphi 0, %s13
    %p10 = scmp.ge.s32.totalorder %s9, 4
    %s19 = sphi 0, %s21
    %s22 = sphi 0, %s19
    %s23 = sphi 0, %s22
    %s39 = sphi 0, %s23
    %s43 = sphi 0, %s43
    %s45 = sphi 0, %s43
    %s46 = sphi 0, %s45
    %s60 = sphi 0, %s46
    %s64 = sphi 0, %s64
    %s66 = sphi 0, %s64
    %s67 = sphi 0, %s66
    %s81 = sphi 0, %s67
    %s87 = sphi 0, %s89
    %s90 = sphi 0, %s87
    %s91 = sphi 0, %s90
    %s107 = sphi 0, %s91
  $region4: #{pointnet_forward.4} parent=0 // loop_header_branch
    %12 = sbr.rel (%p10) target = $region8
  $region5: #{pointnet_forward.4} parent=0 // loop_body
    %s14 = ssub.s32 %s9, 1
    %s15 = ssub.s32 %s9, 2
    %s16 = sadd.s32 %s9, 1
    %s17 = ssub.s32 %s9, %s16
    %p18 = scmp.eq.s32.totalorder %s17, 0
    %s20 = sadd.s32 %s19, 1
    %s21 = scalar_select %p18, %s19, %s20
    %p24 = pneg %p18
    %p25 = scmp.eq.s32.totalorder %s9, 1
    %p26 = por %p24, %p25
    %p27 = scmp.ne.s32.totalorder %s19, %s22
    %p28 = scmp.eq.s32.totalorder %s9, 0
    %p29 = por %p27, %p28
    %p30 = scmp.ne.s32.totalorder %s19, %s22
    %p31 = scmp.eq.s32.totalorder %s14, 1
    %p32 = por %p30, %p31
    %p33 = scmp.ne.s32.totalorder %s22, %s23
    %p34 = scmp.eq.s32.totalorder %s14, 0
    %p35 = por %p33, %p34
    %p36 = scmp.ne.s32.totalorder %s22, %s23
    %p37 = scmp.eq.s32.totalorder %s15, 1
    %p38 = por %p36, %p37
    %p40 = scmp.ne.s32.totalorder %s23, %s39
    %p41 = scmp.eq.s32.totalorder %s15, 0
    %p42 = por %p40, %p41
    %s44 = sadd.s32 %s43, 1
    %p47 = scmp.eq.s32.totalorder %s9, 1
    %p48 = scmp.ne.s32.totalorder %s43, %s45
    %p49 = scmp.eq.s32.totalorder %s9, 0
    %p50 = por %p48, %p49
    %p51 = scmp.ne.s32.totalorder %s43, %s45
    %p52 = scmp.eq.s32.totalorder %s14, 1
    %p53 = por %p51, %p52
    %p54 = scmp.ne.s32.totalorder %s45, %s46
    %p55 = scmp.eq.s32.totalorder %s14, 0
    %p56 = por %p54, %p55
    %p57 = scmp.ne.s32.totalorder %s45, %s46
    %p58 = scmp.eq.s32.totalorder %s15, 1
    %p59 = por %p57, %p58
    %p61 = scmp.ne.s32.totalorder %s46, %s60
    %p62 = scmp.eq.s32.totalorder %s15, 0
    %p63 = por %p61, %p62
    %s65 = sadd.s32 %s64, 1
    %p68 = scmp.eq.s32.totalorder %s9, 1
    %p69 = scmp.ne.s32.totalorder %s64, %s66
    %p70 = scmp.eq.s32.totalorder %s9, 0
    %p71 = por %p69, %p70
    %p72 = scmp.ne.s32.totalorder %s64, %s66
    %p73 = scmp.eq.s32.totalorder %s14, 1
    %p74 = por %p72, %p73
    %p75 = scmp.ne.s32.totalorder %s66, %s67
    %p76 = scmp.eq.s32.totalorder %s14, 0
    %p77 = por %p75, %p76
    %p78 = scmp.ne.s32.totalorder %s66, %s67
    %p79 = scmp.eq.s32.totalorder %s15, 1
    %p80 = por %p78, %p79
    %p82 = scmp.ne.s32.totalorder %s67, %s81
    %p83 = scmp.eq.s32.totalorder %s15, 0
    %p84 = por %p82, %p83
    %s85 = ssub.s32 %s9, %s16
    %p86 = scmp.eq.s32.totalorder %s85, 0
    %s88 = sadd.s32 %s87, 1
    %s89 = scalar_select %p86, %s87, %s88
    %p92 = pneg %p86
    %p93 = scmp.eq.s32.totalorder %s9, 1
    %p94 = por %p92, %p93
    %p95 = scmp.ne.s32.totalorder %s87, %s90
    %p96 = scmp.eq.s32.totalorder %s9, 0
    %p97 = por %p95, %p96
    %p98 = scmp.ne.s32.totalorder %s87, %s90
    %p99 = scmp.eq.s32.totalorder %s14, 1
    %p100 = por %p98, %p99
    %p101 = scmp.ne.s32.totalorder %s90, %s91
    %p102 = scmp.eq.s32.totalorder %s14, 0
    %p103 = por %p101, %p102
    %p104 = scmp.ne.s32.totalorder %s90, %s91
    %p105 = scmp.eq.s32.totalorder %s15, 1
    %p106 = por %p104, %p105
    %p108 = scmp.ne.s32.totalorder %s91, %s107
    %p109 = scmp.eq.s32.totalorder %s15, 0
    %p110 = por %p108, %p109
    %p111 = scmp.le.s32.totalorder 1, %s9
    %p112 = scmp.lt.s32.totalorder %s9, 3
    %p113 = pnand %p111, %p112
    %p114 = pneg %p113
    // Predicated region
    $region9: #{pointnet_forward.4} parent=5 // pred_check
      _
    $region10: #{pointnet_forward.4} parent=5 // pred_check_branch
      %116 = sbr.rel (%p113) target = $region12
    $region11: #{pointnet_forward.4} parent=5 // pred_region
      %s117 = ssub.s32 %s9, 1
      // Predicated region
      $region13: #{pointnet_forward.4} parent=11 // pred_check
        %p118 = pneg %p56
      $region14: #{pointnet_forward.4} parent=11 // pred_check_branch
        %120 = sbr.rel (%p118) target = $region16
      $region15: #{pointnet_forward.4} parent=11 // pred_region
        _
      $region16: #{pointnet_forward.4} parent=11 // pred_fallthru
        _
      // Predicated region
      $region17: #{pointnet_forward.4} parent=11 // pred_check
        %p121 = pneg %p77
      $region18: #{pointnet_forward.4} parent=11 // pred_check_branch
        %123 = sbr.rel (%p121) target = $region20
      $region19: #{pointnet_forward.4} parent=11 // pred_region
        _
      $region20: #{pointnet_forward.4} parent=11 // pred_fallthru
        _
    $region12: #{pointnet_forward.4} parent=5 // pred_fallthru
      _
    %p124 = scmp.lt.s32.totalorder %s9, 2
    // Predicated region
    $region21: #{pointnet_forward.4} parent=5 // pred_check
      %p125 = pneg %p124
    $region22: #{pointnet_forward.4} parent=5 // pred_check_branch
      %127 = sbr.rel (%p125) target = $region24
    $region23: #{pointnet_forward.4} parent=5 // pred_region
      // Predicated region
      $region25: #{pointnet_forward.4} parent=23 // pred_check
        %p128 = pneg %p29
      $region26: #{pointnet_forward.4} parent=23 // pred_check_branch
        %130 = sbr.rel (%p128) target = $region28
      $region27: #{pointnet_forward.4} parent=23 // pred_region
        %p131 = scmp.lt.s32.totalorder %s9, 1
        %s132 = scalar_select %p131, %s9, 1
        %s133 = smul.addr %s132, 20
        %s134 = smul.addr %s133, 4
        %s135 = scalar_lea.vmem %s0, %s134
      $region28: #{pointnet_forward.4} parent=23 // pred_fallthru
        _
    $region24: #{pointnet_forward.4} parent=5 // pred_fallthru
      _
    %p136 = scmp.le.s32.totalorder 1, %s9
    %p137 = scmp.lt.s32.totalorder %s9, 3
    %p138 = pnand %p136, %p137
    %p139 = pneg %p138
    // Predicated region
    $region29: #{pointnet_forward.4} parent=5 // pred_check
      _
    $region30: #{pointnet_forward.4} parent=5 // pred_check_branch
      %141 = sbr.rel (%p138) target = $region32
    $region31: #{pointnet_forward.4} parent=5 // pred_region
      %s142 = ssub.s32 %s9, 1
      %p143 = scmp.lt.s32.totalorder %s14, 1
      %s144 = scalar_select %p143, %s14, 1
      %s145 = smul.addr %s144, 20
      %s146 = smul.addr %s145, 4
      %s147 = scalar_lea.vmem %s0, %s146
      %p148 = pneg %p35
      %p149 = pneg %p32
      %p150 = pneg %p56
      %p151 = pneg %p53
      %p152 = pneg %p77
      %p153 = pneg %p74
      %p154 = pneg %p103
      %p155 = pneg %p100
      %p156 = scmp.lt.s32.totalorder %s14, 1
      %s157 = scalar_select %p156, %s14, 1
      %s158 = smul.addr %s157, 4
      %s159 = smul.addr %s158, 2
      %s160 = scalar_lea.vmem %s3, %s159
      %p161 = scmp.lt.s32.totalorder %s14, 1
      %s162 = scalar_select %p161, %s14, 1
      %s163 = smul.addr %s162, 20
      %s164 = smul.addr %s163, 4
      %s165 = scalar_lea.vmem %s0, %s164
      %p166 = scmp.lt.s32.totalorder %s14, 1
      %s167 = scalar_select %p166, %s14, 1
      %s168 = smul.addr %s167, 4
      %s169 = smul.addr %s168, 2
      %s170 = scalar_lea.vmem %s3, %s169
      %v172 = vld [vmem:[%s165] sm:$0xf]
      %v173 = vld [vmem:[%s165 + $0x8] sm:$0xf]
      %v174 = vld [vmem:[%s165 + $0x10] sm:$0xf]
      %v175 = vld [vmem:[%s165 + $0x18] sm:$0xf]
      %v176 = vld [vmem:[%s165 + $0x20] sm:$0xf]
      %v177 = vld [vmem:[%s165 + $0x28] sm:$0xf]
      %v178 = vld [vmem:[%s165 + $0x30] sm:$0xf]
      %v179 = vld [vmem:[%s165 + $0x38] sm:$0xf]
      %v180 = vld [vmem:[%s165 + $0x4] sm:$0x1]
      %v181 = vld [vmem:[%s165 + $0xc] sm:$0x1]
      %v182 = vld [vmem:[%s165 + $0x14] sm:$0x1]
      %v183 = vld [vmem:[%s165 + $0x1c] sm:$0x1]
      %v184 = vld [vmem:[%s165 + $0x24] sm:$0x1]
      %v185 = vld [vmem:[%s165 + $0x2c] sm:$0x1]
      %v186 = vld [vmem:[%s165 + $0x34] sm:$0x1]
      %v187 = vld [vmem:[%s165 + $0x3c] sm:$0x1]
      %v188 = vld [vmem:[%s165] sm:$0xe]
      %v189 = vld [vmem:[%s165 + $0x8] sm:$0xe]
      %v190 = vld [vmem:[%s165 + $0x10] sm:$0xe]
      %v191 = vld [vmem:[%s165 + $0x18] sm:$0xe]
      %v192 = vld [vmem:[%s165 + $0x20] sm:$0xe]
      %v193 = vld [vmem:[%s165 + $0x28] sm:$0xe]
      %v194 = vld [vmem:[%s165 + $0x30] sm:$0xe]
      %v195 = vld [vmem:[%s165 + $0x38] sm:$0xe]
      %s196 = scalar_lea.vmem %s165, 8
      %v197 = vld [vmem:[%s196] sm:$0xf]
      %v198 = vld [vmem:[%s196 + $0x8] sm:$0xf]
      %v199 = vld [vmem:[%s196 + $0x10] sm:$0xf]
      %v200 = vld [vmem:[%s196 + $0x18] sm:$0xf]
      %v201 = vld [vmem:[%s196 + $0x20] sm:$0xf]
      %v202 = vld [vmem:[%s196 + $0x28] sm:$0xf]
      %v203 = vld [vmem:[%s196 + $0x30] sm:$0xf]
      %v204 = vld [vmem:[%s196 + $0x38] sm:$0xf]
      %v205 = vld [vmem:[%s196 + $0x4] sm:$0x1]
      %v206 = vld [vmem:[%s196 + $0xc] sm:$0x1]
      %v207 = vld [vmem:[%s196 + $0x14] sm:$0x1]
      %v208 = vld [vmem:[%s196 + $0x1c] sm:$0x1]
      %v209 = vld [vmem:[%s196 + $0x24] sm:$0x1]
      %v210 = vld [vmem:[%s196 + $0x2c] sm:$0x1]
      %v211 = vld [vmem:[%s196 + $0x34] sm:$0x1]
      %v212 = vld [vmem:[%s196 + $0x3c] sm:$0x1]
      %v213 = vld [vmem:[%s196] sm:$0xe]
      %v214 = vld [vmem:[%s196 + $0x8] sm:$0xe]
      %v215 = vld [vmem:[%s196 + $0x10] sm:$0xe]
      %v216 = vld [vmem:[%s196 + $0x18] sm:$0xe]
      %v217 = vld [vmem:[%s196 + $0x20] sm:$0xe]
      %v218 = vld [vmem:[%s196 + $0x28] sm:$0xe]
      %v219 = vld [vmem:[%s196 + $0x30] sm:$0xe]
      %v220 = vld [vmem:[%s196 + $0x38] sm:$0xe]
      %s221 = scalar_lea.vmem %s165, 16
      %v222 = vld [vmem:[%s221] sm:$0xf]
      %v223 = vld [vmem:[%s221 + $0x8] sm:$0xf]
      %v224 = vld [vmem:[%s221 + $0x10] sm:$0xf]
      %v225 = vld [vmem:[%s221 + $0x18] sm:$0xf]
      %v226 = vld [vmem:[%s221 + $0x20] sm:$0xf]
      %v227 = vld [vmem:[%s221 + $0x28] sm:$0xf]
      %v228 = vld [vmem:[%s221 + $0x30] sm:$0xf]
      %v229 = vld [vmem:[%s221 + $0x38] sm:$0xf]
      %v230 = vld [vmem:[%s221 + $0x4] sm:$0x1]
      %v231 = vld [vmem:[%s221 + $0xc] sm:$0x1]
      %v232 = vld [vmem:[%s221 + $0x14] sm:$0x1]
      %v233 = vld [vmem:[%s221 + $0x1c] sm:$0x1]
      %v234 = vld [vmem:[%s221 + $0x24] sm:$0x1]
      %v235 = vld [vmem:[%s221 + $0x2c] sm:$0x1]
      %v236 = vld [vmem:[%s221 + $0x34] sm:$0x1]
      %v237 = vld [vmem:[%s221 + $0x3c] sm:$0x1]
      %v238 = vld [vmem:[%s221] sm:$0xe]
      %v239 = vld [vmem:[%s221 + $0x8] sm:$0xe]
      %v240 = vld [vmem:[%s221 + $0x10] sm:$0xe]
      %v241 = vld [vmem:[%s221 + $0x18] sm:$0xe]
      %v242 = vld [vmem:[%s221 + $0x20] sm:$0xe]
      %v243 = vld [vmem:[%s221 + $0x28] sm:$0xe]
      %v244 = vld [vmem:[%s221 + $0x30] sm:$0xe]
      %v245 = vld [vmem:[%s221 + $0x38] sm:$0xe]
      %v262 = vunpack.c.l.b16 %v172
      %v263 = vunpack.c.l.b16 %v180
      %v264 = vunpack.c.l.b16 %v173
      %v265 = vunpack.c.l.b16 %v181
      %v266 = vunpack.c.l.b16 %v174
      %v267 = vunpack.c.l.b16 %v182
      %v268 = vunpack.c.l.b16 %v175
      %v269 = vunpack.c.l.b16 %v183
      %v270 = vunpack.c.l.b16 %v176
      %v271 = vunpack.c.l.b16 %v184
      %v272 = vunpack.c.l.b16 %v177
      %v273 = vunpack.c.l.b16 %v185
      %v274 = vunpack.c.l.b16 %v178
      %v275 = vunpack.c.l.b16 %v186
      %v276 = vunpack.c.l.b16 %v179
      %v277 = vunpack.c.l.b16 %v187
      %v278 = vpack.c.b16 %v263, %v262
      %v279 = vpack.c.b16 %v265, %v264
      %v280 = vpack.c.b16 %v267, %v266
      %v281 = vpack.c.b16 %v269, %v268
      %v282 = vpack.c.b16 %v271, %v270
      %v283 = vpack.c.b16 %v273, %v272
      %v284 = vpack.c.b16 %v275, %v274
      %v285 = vpack.c.b16 %v277, %v276
      %v287 = vshrl.u32 %v278, 16
      %v289 = vshll.u32 %v278, 16
      %v291 = vrot.slane %v289, 1
      %v292 = vor.u32 %v287, %v291
      %v294 = vshrl.u32 %v279, 16
      %v296 = vshll.u32 %v279, 16
      %v298 = vrot.slane %v296, 1
      %v299 = vor.u32 %v294, %v298
      %v301 = vshrl.u32 %v280, 16
      %v303 = vshll.u32 %v280, 16
      %v305 = vrot.slane %v303, 1
      %v306 = vor.u32 %v301, %v305
      %v308 = vshrl.u32 %v281, 16
      %v310 = vshll.u32 %v281, 16
      %v312 = vrot.slane %v310, 1
      %v313 = vor.u32 %v308, %v312
      %v315 = vshrl.u32 %v282, 16
      %v317 = vshll.u32 %v282, 16
      %v319 = vrot.slane %v317, 1
      %v320 = vor.u32 %v315, %v319
      %v322 = vshrl.u32 %v283, 16
      %v324 = vshll.u32 %v283, 16
      %v326 = vrot.slane %v324, 1
      %v327 = vor.u32 %v322, %v326
      %v329 = vshrl.u32 %v284, 16
      %v331 = vshll.u32 %v284, 16
      %v333 = vrot.slane %v331, 1
      %v334 = vor.u32 %v329, %v333
      %v336 = vshrl.u32 %v285, 16
      %v338 = vshll.u32 %v285, 16
      %v340 = vrot.slane %v338, 1
      %v341 = vor.u32 %v336, %v340
      %342 = vrot.lane.b32.xlu0 %v292, 32
      %v343 = vpop.permute.xlu0 %342
      %344 = vrot.lane.b32.xlu0 %v299, 32
      %v345 = vpop.permute.xlu0 %344
      %346 = vrot.lane.b32.xlu0 %v306, 32
      %v347 = vpop.permute.xlu0 %346
      %348 = vrot.lane.b32.xlu0 %v313, 32
      %v349 = vpop.permute.xlu0 %348
      %350 = vrot.lane.b32.xlu0 %v320, 32
      %v351 = vpop.permute.xlu0 %350
      %352 = vrot.lane.b32.xlu0 %v327, 32
      %v353 = vpop.permute.xlu0 %352
      %354 = vrot.lane.b32.xlu0 %v334, 32
      %v355 = vpop.permute.xlu0 %354
      %356 = vrot.lane.b32.xlu0 %v341, 32
      %v357 = vpop.permute.xlu0 %356
      %v366 = vunpack.c.l.b16 %v188
      %v367 = vunpack.c.l.b16 %v189
      %v368 = vunpack.c.l.b16 %v190
      %v369 = vunpack.c.l.b16 %v191
      %v370 = vunpack.c.l.b16 %v192
      %v371 = vunpack.c.l.b16 %v193
      %v372 = vunpack.c.l.b16 %v194
      %v373 = vunpack.c.l.b16 %v195
      %v374 = vpack.c.b16 %v263, %v366
      %v375 = vpack.c.b16 %v265, %v367
      %v376 = vpack.c.b16 %v267, %v368
      %v377 = vpack.c.b16 %v269, %v369
      %v378 = vpack.c.b16 %v271, %v370
      %v379 = vpack.c.b16 %v273, %v371
      %v380 = vpack.c.b16 %v275, %v372
      %v381 = vpack.c.b16 %v277, %v373
      %v382 = vrot.slane %v374, 1
      %v383 = vrot.slane %v375, 1
      %v384 = vrot.slane %v376, 1
      %v385 = vrot.slane %v377, 1
      %v386 = vrot.slane %v378, 1
      %v387 = vrot.slane %v379, 1
      %v388 = vrot.slane %v380, 1
      %v389 = vrot.slane %v381, 1
      %390 = vrot.lane.b32.xlu0 %v382, 64
      %v391 = vpop.permute.xlu0 %390
      %392 = vrot.lane.b32.xlu0 %v383, 64
      %v393 = vpop.permute.xlu0 %392
      %394 = vrot.lane.b32.xlu0 %v384, 64
      %v395 = vpop.permute.xlu0 %394
      %396 = vrot.lane.b32.xlu0 %v385, 64
      %v397 = vpop.permute.xlu0 %396
      %398 = vrot.lane.b32.xlu0 %v386, 64
      %v399 = vpop.permute.xlu0 %398
      %400 = vrot.lane.b32.xlu0 %v387, 64
      %v401 = vpop.permute.xlu0 %400
      %402 = vrot.lane.b32.xlu0 %v388, 64
      %v403 = vpop.permute.xlu0 %402
      %404 = vrot.lane.b32.xlu0 %v389, 64
      %v405 = vpop.permute.xlu0 %404
      %v414 = vunpack.c.l.b16 %v197
      %v415 = vunpack.c.l.b16 %v198
      %v416 = vunpack.c.l.b16 %v199
      %v417 = vunpack.c.l.b16 %v200
      %v418 = vunpack.c.l.b16 %v201
      %v419 = vunpack.c.l.b16 %v202
      %v420 = vunpack.c.l.b16 %v203
      %v421 = vunpack.c.l.b16 %v204
      %v422 = vpack.c.b16 %v414, %v414
      %v423 = vpack.c.b16 %v415, %v415
      %v424 = vpack.c.b16 %v416, %v416
      %v425 = vpack.c.b16 %v417, %v417
      %v426 = vpack.c.b16 %v418, %v418
      %v427 = vpack.c.b16 %v419, %v419
      %v428 = vpack.c.b16 %v420, %v420
      %v429 = vpack.c.b16 %v421, %v421
      %430 = vrot.lane.b32.xlu0 %v422, 96
      %v431 = vpop.permute.xlu0 %430
      %432 = vrot.lane.b32.xlu0 %v423, 96
      %v433 = vpop.permute.xlu0 %432
      %434 = vrot.lane.b32.xlu0 %v424, 96
      %v435 = vpop.permute.xlu0 %434
      %436 = vrot.lane.b32.xlu0 %v425, 96
      %v437 = vpop.permute.xlu0 %436
      %438 = vrot.lane.b32.xlu0 %v426, 96
      %v439 = vpop.permute.xlu0 %438
      %440 = vrot.lane.b32.xlu0 %v427, 96
      %v441 = vpop.permute.xlu0 %440
      %442 = vrot.lane.b32.xlu0 %v428, 96
      %v443 = vpop.permute.xlu0 %442
      %444 = vrot.lane.b32.xlu0 %v429, 96
      %v445 = vpop.permute.xlu0 %444
      %v454 = vunpack.c.l.b16 %v205
      %v455 = vunpack.c.l.b16 %v206
      %v456 = vunpack.c.l.b16 %v207
      %v457 = vunpack.c.l.b16 %v208
      %v458 = vunpack.c.l.b16 %v209
      %v459 = vunpack.c.l.b16 %v210
      %v460 = vunpack.c.l.b16 %v211
      %v461 = vunpack.c.l.b16 %v212
      %v462 = vpack.c.b16 %v454, %v414
      %v463 = vpack.c.b16 %v455, %v415
      %v464 = vpack.c.b16 %v456, %v416
      %v465 = vpack.c.b16 %v457, %v417
      %v466 = vpack.c.b16 %v458, %v418
      %v467 = vpack.c.b16 %v459, %v419
      %v468 = vpack.c.b16 %v460, %v420
      %v469 = vpack.c.b16 %v461, %v421
      %v471 = vshrl.u32 %v462, 16
      %v473 = vshll.u32 %v462, 16
      %v475 = vrot.slane %v473, 1
      %v476 = vor.u32 %v471, %v475
      %v478 = vshrl.u32 %v463, 16
      %v480 = vshll.u32 %v463, 16
      %v482 = vrot.slane %v480, 1
      %v483 = vor.u32 %v478, %v482
      %v485 = vshrl.u32 %v464, 16
      %v487 = vshll.u32 %v464, 16
      %v489 = vrot.slane %v487, 1
      %v490 = vor.u32 %v485, %v489
      %v492 = vshrl.u32 %v465, 16
      %v494 = vshll.u32 %v465, 16
      %v496 = vrot.slane %v494, 1
      %v497 = vor.u32 %v492, %v496
      %v499 = vshrl.u32 %v466, 16
      %v501 = vshll.u32 %v466, 16
      %v503 = vrot.slane %v501, 1
      %v504 = vor.u32 %v499, %v503
      %v506 = vshrl.u32 %v467, 16
      %v508 = vshll.u32 %v467, 16
      %v510 = vrot.slane %v508, 1
      %v511 = vor.u32 %v506, %v510
      %v513 = vshrl.u32 %v468, 16
      %v515 = vshll.u32 %v468, 16
      %v517 = vrot.slane %v515, 1
      %v518 = vor.u32 %v513, %v517
      %v520 = vshrl.u32 %v469, 16
      %v522 = vshll.u32 %v469, 16
      %v524 = vrot.slane %v522, 1
      %v525 = vor.u32 %v520, %v524
      %v534 = vunpack.c.l.b16 %v213
      %v535 = vunpack.c.l.b16 %v214
      %v536 = vunpack.c.l.b16 %v215
      %v537 = vunpack.c.l.b16 %v216
      %v538 = vunpack.c.l.b16 %v217
      %v539 = vunpack.c.l.b16 %v218
      %v540 = vunpack.c.l.b16 %v219
      %v541 = vunpack.c.l.b16 %v220
      %v542 = vpack.c.b16 %v454, %v534
      %v543 = vpack.c.b16 %v455, %v535
      %v544 = vpack.c.b16 %v456, %v536
      %v545 = vpack.c.b16 %v457, %v537
      %v546 = vpack.c.b16 %v458, %v538
      %v547 = vpack.c.b16 %v459, %v539
      %v548 = vpack.c.b16 %v460, %v540
      %v549 = vpack.c.b16 %v461, %v541
      %v550 = vrot.slane %v542, 1
      %v551 = vrot.slane %v543, 1
      %v552 = vrot.slane %v544, 1
      %v553 = vrot.slane %v545, 1
      %v554 = vrot.slane %v546, 1
      %v555 = vrot.slane %v547, 1
      %v556 = vrot.slane %v548, 1
      %v557 = vrot.slane %v549, 1
      %558 = vrot.lane.b32.xlu0 %v550, 32
      %v559 = vpop.permute.xlu0 %558
      %560 = vrot.lane.b32.xlu0 %v551, 32
      %v561 = vpop.permute.xlu0 %560
      %562 = vrot.lane.b32.xlu0 %v552, 32
      %v563 = vpop.permute.xlu0 %562
      %564 = vrot.lane.b32.xlu0 %v553, 32
      %v565 = vpop.permute.xlu0 %564
      %566 = vrot.lane.b32.xlu0 %v554, 32
      %v567 = vpop.permute.xlu0 %566
      %568 = vrot.lane.b32.xlu0 %v555, 32
      %v569 = vpop.permute.xlu0 %568
      %570 = vrot.lane.b32.xlu0 %v556, 32
      %v571 = vpop.permute.xlu0 %570
      %572 = vrot.lane.b32.xlu0 %v557, 32
      %v573 = vpop.permute.xlu0 %572
      %v582 = vunpack.c.l.b16 %v222
      %v583 = vunpack.c.l.b16 %v223
      %v584 = vunpack.c.l.b16 %v224
      %v585 = vunpack.c.l.b16 %v225
      %v586 = vunpack.c.l.b16 %v226
      %v587 = vunpack.c.l.b16 %v227
      %v588 = vunpack.c.l.b16 %v228
      %v589 = vunpack.c.l.b16 %v229
      %v590 = vpack.c.b16 %v582, %v582
      %v591 = vpack.c.b16 %v583, %v583
      %v592 = vpack.c.b16 %v584, %v584
      %v593 = vpack.c.b16 %v585, %v585
      %v594 = vpack.c.b16 %v586, %v586
      %v595 = vpack.c.b16 %v587, %v587
      %v596 = vpack.c.b16 %v588, %v588
      %v597 = vpack.c.b16 %v589, %v589
      %598 = vrot.lane.b32.xlu0 %v590, 64
      %v599 = vpop.permute.xlu0 %598
      %600 = vrot.lane.b32.xlu0 %v591, 64
      %v601 = vpop.permute.xlu0 %600
      %602 = vrot.lane.b32.xlu0 %v592, 64
      %v603 = vpop.permute.xlu0 %602
      %604 = vrot.lane.b32.xlu0 %v593, 64
      %v605 = vpop.permute.xlu0 %604
      %606 = vrot.lane.b32.xlu0 %v594, 64
      %v607 = vpop.permute.xlu0 %606
      %608 = vrot.lane.b32.xlu0 %v595, 64
      %v609 = vpop.permute.xlu0 %608
      %610 = vrot.lane.b32.xlu0 %v596, 64
      %v611 = vpop.permute.xlu0 %610
      %612 = vrot.lane.b32.xlu0 %v597, 64
      %v613 = vpop.permute.xlu0 %612
      %v622 = vunpack.c.l.b16 %v230
      %v623 = vunpack.c.l.b16 %v231
      %v624 = vunpack.c.l.b16 %v232
      %v625 = vunpack.c.l.b16 %v233
      %v626 = vunpack.c.l.b16 %v234
      %v627 = vunpack.c.l.b16 %v235
      %v628 = vunpack.c.l.b16 %v236
      %v629 = vunpack.c.l.b16 %v237
      %v630 = vpack.c.b16 %v622, %v582
      %v631 = vpack.c.b16 %v623, %v583
      %v632 = vpack.c.b16 %v624, %v584
      %v633 = vpack.c.b16 %v625, %v585
      %v634 = vpack.c.b16 %v626, %v586
      %v635 = vpack.c.b16 %v627, %v587
      %v636 = vpack.c.b16 %v628, %v588
      %v637 = vpack.c.b16 %v629, %v589
      %v639 = vshrl.u32 %v630, 16
      %v641 = vshll.u32 %v630, 16
      %v643 = vrot.slane %v641, 1
      %v644 = vor.u32 %v639, %v643
      %v646 = vshrl.u32 %v631, 16
      %v648 = vshll.u32 %v631, 16
      %v650 = vrot.slane %v648, 1
      %v651 = vor.u32 %v646, %v650
      %v653 = vshrl.u32 %v632, 16
      %v655 = vshll.u32 %v632, 16
      %v657 = vrot.slane %v655, 1
      %v658 = vor.u32 %v653, %v657
      %v660 = vshrl.u32 %v633, 16
      %v662 = vshll.u32 %v633, 16
      %v664 = vrot.slane %v662, 1
      %v665 = vor.u32 %v660, %v664
      %v667 = vshrl.u32 %v634, 16
      %v669 = vshll.u32 %v634, 16
      %v671 = vrot.slane %v669, 1
      %v672 = vor.u32 %v667, %v671
      %v674 = vshrl.u32 %v635, 16
      %v676 = vshll.u32 %v635, 16
      %v678 = vrot.slane %v676, 1
      %v679 = vor.u32 %v674, %v678
      %v681 = vshrl.u32 %v636, 16
      %v683 = vshll.u32 %v636, 16
      %v685 = vrot.slane %v683, 1
      %v686 = vor.u32 %v681, %v685
      %v688 = vshrl.u32 %v637, 16
      %v690 = vshll.u32 %v637, 16
      %v692 = vrot.slane %v690, 1
      %v693 = vor.u32 %v688, %v692
      %694 = vrot.lane.b32.xlu0 %v644, 96
      %v695 = vpop.permute.xlu0 %694
      %696 = vrot.lane.b32.xlu0 %v651, 96
      %v697 = vpop.permute.xlu0 %696
      %698 = vrot.lane.b32.xlu0 %v658, 96
      %v699 = vpop.permute.xlu0 %698
      %700 = vrot.lane.b32.xlu0 %v665, 96
      %v701 = vpop.permute.xlu0 %700
      %702 = vrot.lane.b32.xlu0 %v672, 96
      %v703 = vpop.permute.xlu0 %702
      %704 = vrot.lane.b32.xlu0 %v679, 96
      %v705 = vpop.permute.xlu0 %704
      %706 = vrot.lane.b32.xlu0 %v686, 96
      %v707 = vpop.permute.xlu0 %706
      %708 = vrot.lane.b32.xlu0 %v693, 96
      %v709 = vpop.permute.xlu0 %708
      %v718 = vunpack.c.l.b16 %v238
      %v719 = vunpack.c.l.b16 %v239
      %v720 = vunpack.c.l.b16 %v240
      %v721 = vunpack.c.l.b16 %v241
      %v722 = vunpack.c.l.b16 %v242
      %v723 = vunpack.c.l.b16 %v243
      %v724 = vunpack.c.l.b16 %v244
      %v725 = vunpack.c.l.b16 %v245
      %v726 = vpack.c.b16 %v622, %v718
      %v727 = vpack.c.b16 %v623, %v719
      %v728 = vpack.c.b16 %v624, %v720
      %v729 = vpack.c.b16 %v625, %v721
      %v730 = vpack.c.b16 %v626, %v722
      %v731 = vpack.c.b16 %v627, %v723
      %v732 = vpack.c.b16 %v628, %v724
      %v733 = vpack.c.b16 %v629, %v725
      %v734 = vrot.slane %v726, 1
      %v735 = vrot.slane %v727, 1
      %v736 = vrot.slane %v728, 1
      %v737 = vrot.slane %v729, 1
      %v738 = vrot.slane %v730, 1
      %v739 = vrot.slane %v731, 1
      %v740 = vrot.slane %v732, 1
      %v741 = vrot.slane %v733, 1
      %vm742 = vcmask 261120
      %v745 = vsel %vm742, %v172, %v343
      %v748 = vsel %vm742, %v173, %v345
      %v751 = vsel %vm742, %v174, %v347
      %v754 = vsel %vm742, %v175, %v349
      %v757 = vsel %vm742, %v176, %v351
      %v760 = vsel %vm742, %v177, %v353
      %v763 = vsel %vm742, %v178, %v355
      %v766 = vsel %vm742, %v179, %v357
      %vm767 = vcmask 523264
      %v769 = vsel %vm767, %v745, %v391
      %v771 = vsel %vm767, %v748, %v393
      %v773 = vsel %vm767, %v751, %v395
      %v775 = vsel %vm767, %v754, %v397
      %v777 = vsel %vm767, %v757, %v399
      %v779 = vsel %vm767, %v760, %v401
      %v781 = vsel %vm767, %v763, %v403
      %v783 = vsel %vm767, %v766, %v405
      %vm784 = vcmask 785408
      %v786 = vsel %vm784, %v769, %v431
      %v788 = vsel %vm784, %v771, %v433
      %v790 = vsel %vm784, %v773, %v435
      %v792 = vsel %vm784, %v775, %v437
      %v794 = vsel %vm784, %v777, %v439
      %v796 = vsel %vm784, %v779, %v441
      %v798 = vsel %vm784, %v781, %v443
      %v800 = vsel %vm784, %v783, %v445
      %v803 = vsel %vm742, %v476, %v559
      %v806 = vsel %vm742, %v483, %v561
      %v809 = vsel %vm742, %v490, %v563
      %v812 = vsel %vm742, %v497, %v565
      %v815 = vsel %vm742, %v504, %v567
      %v818 = vsel %vm742, %v511, %v569
      %v821 = vsel %vm742, %v518, %v571
      %v824 = vsel %vm742, %v525, %v573
      %v826 = vsel %vm767, %v803, %v599
      %v828 = vsel %vm767, %v806, %v601
      %v830 = vsel %vm767, %v809, %v603
      %v832 = vsel %vm767, %v812, %v605
      %v834 = vsel %vm767, %v815, %v607
      %v836 = vsel %vm767, %v818, %v609
      %v838 = vsel %vm767, %v821, %v611
      %v840 = vsel %vm767, %v824, %v613
      %v842 = vsel %vm784, %v826, %v695
      %v844 = vsel %vm784, %v828, %v697
      %v846 = vsel %vm784, %v830, %v699
      %v848 = vsel %vm784, %v832, %v701
      %v850 = vsel %vm784, %v834, %v703
      %v852 = vsel %vm784, %v836, %v705
      %v854 = vsel %vm784, %v838, %v707
      %v856 = vsel %vm784, %v840, %v709
      %v873 = vunpack.c.l.b16 %v786
      %v874 = vunpack.c.l.b16 %v842
      %v875 = vunpack.c.l.b16 %v734
      %v876 = vunpack.c.l.b16 %v788
      %v877 = vunpack.c.l.b16 %v844
      %v878 = vunpack.c.l.b16 %v735
      %v879 = vunpack.c.l.b16 %v790
      %v880 = vunpack.c.l.b16 %v846
      %v881 = vunpack.c.l.b16 %v736
      %v882 = vunpack.c.l.b16 %v792
      %v883 = vunpack.c.l.b16 %v848
      %v884 = vunpack.c.l.b16 %v737
      %v885 = vunpack.c.l.b16 %v794
      %v886 = vunpack.c.l.b16 %v850
      %v887 = vunpack.c.l.b16 %v738
      %v888 = vunpack.c.l.b16 %v796
      %v889 = vunpack.c.l.b16 %v852
      %v890 = vunpack.c.l.b16 %v739
      %v891 = vunpack.c.l.b16 %v798
      %v892 = vunpack.c.l.b16 %v854
      %v893 = vunpack.c.l.b16 %v740
      %v894 = vunpack.c.l.b16 %v800
      %v895 = vunpack.c.l.b16 %v856
      %v896 = vunpack.c.l.b16 %v741
      %v897 = vld [vmem:[%s1] sm:$0xf]
      %v898 = vld [vmem:[%s1 + $0x4] sm:$0xf]
      %v899 = vld [vmem:[%s1 + $0x8] sm:$0xf]
      %v900 = vld [vmem:[%s1 + $0xc] sm:$0xf]
      %v901 = vld [vmem:[%s1 + $0x10] sm:$0xf]
      %v902 = vld [vmem:[%s1 + $0x14] sm:$0xf]
      %v903 = vld [vmem:[%s1 + $0x18] sm:$0xf]
      %v904 = vld [vmem:[%s1 + $0x1c] sm:$0xf]
      %v905 = vld [vmem:[%s1 + $0x20] sm:$0xf]
      %v906 = vld [vmem:[%s1 + $0x24] sm:$0xf]
      %v907 = vld [vmem:[%s1 + $0x28] sm:$0xf]
      %v908 = vld [vmem:[%s1 + $0x2c] sm:$0xf]
      %v909 = vld [vmem:[%s1 + $0x30] sm:$0xf]
      %v910 = vld [vmem:[%s1 + $0x34] sm:$0xf]
      %v911 = vld [vmem:[%s1 + $0x38] sm:$0xf]
      %v912 = vld [vmem:[%s1 + $0x3c] sm:$0xf]
      %v913 = vld [vmem:[%s1 + $0x40] sm:$0xf]
      %v914 = vld [vmem:[%s1 + $0x44] sm:$0xf]
      %v915 = vld [vmem:[%s1 + $0x48] sm:$0xf]
      %v916 = vld [vmem:[%s1 + $0x4c] sm:$0xf]
      %v917 = vld [vmem:[%s1 + $0x50] sm:$0xf]
      %v918 = vld [vmem:[%s1 + $0x54] sm:$0xf]
      %v919 = vld [vmem:[%s1 + $0x58] sm:$0xf]
      %v920 = vld [vmem:[%s1 + $0x5c] sm:$0xf]
      %v921 = vld [vmem:[%s1 + $0x60] sm:$0xf]
      %v922 = vld [vmem:[%s1 + $0x64] sm:$0xf]
      %v923 = vld [vmem:[%s1 + $0x68] sm:$0xf]
      %v924 = vld [vmem:[%s1 + $0x6c] sm:$0xf]
      %v925 = vld [vmem:[%s1 + $0x70] sm:$0xf]
      %v926 = vld [vmem:[%s1 + $0x74] sm:$0xf]
      %v927 = vld [vmem:[%s1 + $0x78] sm:$0xf]
      %v928 = vld [vmem:[%s1 + $0x7c] sm:$0xf]
      %v929 = vld [vmem:[%s1 + $0x80] sm:$0xf]
      %v930 = vld [vmem:[%s1 + $0x84] sm:$0xf]
      %v931 = vld [vmem:[%s1 + $0x88] sm:$0xf]
      %v932 = vld [vmem:[%s1 + $0x8c] sm:$0xf]
      %v933 = vld [vmem:[%s2] sm:$0x1]
      %v935 = vlaneseq
      %v936 = vshrl.u32 %v935, 7
      %v937 = vsub.s32 0, %v936
      %v938 = vrot.slane %v933, %v937
      %v940 = vpack.c.b16 %v876, %v873
      %v941 = vpack.c.b16 %v877, %v874
      %v942 = vpack.c.b16 %v878, %v875
      %v943 = vpack.c.b16 %v882, %v879
      %v944 = vpack.c.b16 %v883, %v880
      %v945 = vpack.c.b16 %v884, %v881
      %v946 = vpack.c.b16 %v888, %v885
      %v947 = vpack.c.b16 %v889, %v886
      %v948 = vpack.c.b16 %v890, %v887
      %v949 = vpack.c.b16 %v894, %v891
      %v950 = vpack.c.b16 %v895, %v892
      %v951 = vpack.c.b16 %v896, %v893
      %v996 = vunpack.c.l.b16 %v897
      %v997 = vunpack.c.l.b16 %v898
      %v998 = vunpack.c.l.b16 %v899
      %v999 = vunpack.c.l.b16 %v900
      %v1000 = vunpack.c.l.b16 %v901
      %v1001 = vunpack.c.l.b16 %v902
      %v1002 = vunpack.c.l.b16 %v903
      %v1003 = vunpack.c.l.b16 %v904
      %v1004 = vunpack.c.l.b16 %v905
      %v1005 = vunpack.c.l.b16 %v906
      %v1006 = vunpack.c.l.b16 %v907
      %v1007 = vunpack.c.l.b16 %v908
      %v1008 = vunpack.c.l.b16 %v909
      %v1009 = vunpack.c.l.b16 %v910
      %v1010 = vunpack.c.l.b16 %v911
      %v1011 = vunpack.c.l.b16 %v912
      %v1012 = vunpack.c.l.b16 %v913
      %v1013 = vunpack.c.l.b16 %v914
      %v1014 = vunpack.c.l.b16 %v915
      %v1015 = vunpack.c.l.b16 %v916
      %v1016 = vunpack.c.l.b16 %v917
      %v1017 = vunpack.c.l.b16 %v918
      %v1018 = vunpack.c.l.b16 %v919
      %v1019 = vunpack.c.l.b16 %v920
      %v1020 = vunpack.c.l.b16 %v921
      %v1021 = vunpack.c.l.b16 %v922
      %v1022 = vunpack.c.l.b16 %v923
      %v1023 = vunpack.c.l.b16 %v924
      %v1024 = vunpack.c.l.b16 %v925
      %v1025 = vunpack.c.l.b16 %v926
      %v1026 = vunpack.c.l.b16 %v927
      %v1027 = vunpack.c.l.b16 %v928
      %v1028 = vunpack.c.l.b16 %v929
      %v1029 = vunpack.c.l.b16 %v930
      %v1030 = vunpack.c.l.b16 %v931
      %v1031 = vunpack.c.l.b16 %v932
      %v1032 = vpack.c.b16 %v997, %v996
      %v1033 = vpack.c.b16 %v999, %v998
      %v1034 = vpack.c.b16 %v1001, %v1000
      %v1035 = vpack.c.b16 %v1003, %v1002
      %v1036 = vpack.c.b16 %v1005, %v1004
      %v1037 = vpack.c.b16 %v1007, %v1006
      %v1038 = vpack.c.b16 %v1009, %v1008
      %v1039 = vpack.c.b16 %v1011, %v1010
      %v1040 = vpack.c.b16 %v1013, %v1012
      %v1041 = vpack.c.b16 %v1015, %v1014
      %v1042 = vpack.c.b16 %v1017, %v1016
      %v1043 = vpack.c.b16 %v1019, %v1018
      %v1044 = vpack.c.b16 %v1021, %v1020
      %v1045 = vpack.c.b16 %v1023, %v1022
      %v1046 = vpack.c.b16 %v1025, %v1024
      %v1047 = vpack.c.b16 %v1027, %v1026
      %v1048 = vpack.c.b16 %v1029, %v1028
      %v1049 = vpack.c.b16 %v1031, %v1030
      %v1069 = vsel %vm742, %v942, 0
      %v1072 = vsel %vm742, %v945, 0
      %v1075 = vsel %vm742, %v948, 0
      %v1078 = vsel %vm742, %v951, 0
      %1080 = vmatprep.subr.bf16.mxu0 0
      %1081 = vmatpush1.bf16.msra.mxu0 %v1039
      %1082 = vmatprep.subr.bf16.mxu0 0
      %1083 = vmatpush1.bf16.msra.mxu0 %v1038
      %1084 = vmatprep.subr.bf16.mxu0 0
      %1085 = vmatpush1.bf16.msra.mxu0 %v1037
      %1086 = vmatprep.subr.bf16.mxu0 0
      %1087 = vmatpush1.bf16.msra.mxu0 %v1036
      %1088 = vmatprep.subr.bf16.mxu0 0
      %1089 = vmatpush1.bf16.msra.mxu0 %v1035
      %1090 = vmatprep.subr.bf16.mxu0 0
      %1091 = vmatpush1.bf16.msra.mxu0 %v1034
      %1092 = vmatprep.subr.bf16.mxu0 0
      %1093 = vmatpush1.bf16.msra.mxu0 %v1033
      %1094 = vmatprep.subr.bf16.mxu0 0
      %1095 = vmatpush1.bf16.msra.mxu0 %v1032
      %1096 = vmatprep.subr.bf16.mxu0 0
      %1097 = vmatpush2.bf16.msra.mxu0 %v1047
      %1098 = vmatprep.subr.bf16.mxu0 0
      %1099 = vmatpush2.bf16.msra.mxu0 %v1046
      %1100 = vmatprep.subr.bf16.mxu0 0
      %1101 = vmatpush2.bf16.msra.mxu0 %v1045
      %1102 = vmatprep.subr.bf16.mxu0 0
      %1103 = vmatpush2.bf16.msra.mxu0 %v1044
      %1104 = vmatprep.subr.bf16.mxu0 0
      %1105 = vmatpush2.bf16.msra.mxu0 %v1043
      %1106 = vmatprep.subr.bf16.mxu0 0
      %1107 = vmatpush2.bf16.msra.mxu0 %v1042
      %1108 = vmatprep.subr.bf16.mxu0 0
      %1109 = vmatpush2.bf16.msra.mxu0 %v1041
      %1110 = vmatprep.subr.bf16.mxu0 0
      %1111 = vmatpush2.bf16.msra.mxu0 %v1040
      %1112 = vmatprep.mubr.bf16.mxu0 %v941
      %1113 = vmatmul.mubr.bf16.gmra.mxu0 %v940
      %v1114 = vpop.f32.mrf.mxu0
      %v1115 = vadd.f32 %v938, %v1114
      %v1116 = vpop.f32.mrf.mxu0
      %v1117 = vpop.f32.mrf.mxu0
      %v1118 = vadd.f32 %v938, %v1117
      %v1119 = vpop.f32.mrf.mxu0
      %1120 = vmatprep.mubr.bf16.mxu0 %v944
      %1121 = vmatmul.mubr.bf16.gmra.mxu0 %v943
      %v1122 = vpop.f32.mrf.mxu0
      %v1123 = vadd.f32 %v938, %v1122
      %v1124 = vpop.f32.mrf.mxu0
      %v1125 = vpop.f32.mrf.mxu0
      %v1126 = vadd.f32 %v938, %v1125
      %v1127 = vpop.f32.mrf.mxu0
      %1128 = vmatprep.mubr.bf16.mxu0 %v947
      %1129 = vmatmul.mubr.bf16.gmra.mxu0 %v946
      %v1130 = vpop.f32.mrf.mxu0
      %v1131 = vadd.f32 %v938, %v1130
      %v1132 = vpop.f32.mrf.mxu0
      %v1133 = vpop.f32.mrf.mxu0
      %v1134 = vadd.f32 %v938, %v1133
      %v1135 = vpop.f32.mrf.mxu0
      %1136 = vmatprep.mubr.bf16.mxu0 %v950
      %1137 = vmatmul.mubr.bf16.gmra.mxu0 %v949
      %v1138 = vpop.f32.mrf.mxu0
      %v1139 = vadd.f32 %v938, %v1138
      %v1140 = vpop.f32.mrf.mxu0
      %v1141 = vpop.f32.mrf.mxu0
      %v1142 = vadd.f32 %v938, %v1141
      %v1143 = vpop.f32.mrf.mxu0
      %1144 = vdwg.mxu0
      %1145 = vmatprep.subr.bf16.mxu0 0
      %1146 = vmatpush1.bf16.msra.mxu0 0
      %1147 = vmatprep.subr.bf16.mxu0 0
      %1148 = vmatpush1.bf16.msra.mxu0 0
      %1149 = vmatprep.subr.bf16.mxu0 0
      %1150 = vmatpush1.bf16.msra.mxu0 0
      %1151 = vmatprep.subr.bf16.mxu0 0
      %1152 = vmatpush1.bf16.msra.mxu0 0
      %1153 = vmatprep.subr.bf16.mxu0 0
      %1154 = vmatpush1.bf16.msra.mxu0 0
      %1155 = vmatprep.subr.bf16.mxu0 0
      %1156 = vmatpush1.bf16.msra.mxu0 0
      %1157 = vmatprep.subr.bf16.mxu0 0
      %1158 = vmatpush1.bf16.msra.mxu0 %v1049
      %1159 = vmatprep.subr.bf16.mxu0 0
      %1160 = vmatpush1.bf16.msra.mxu0 %v1048
      %1161 = vmatprep.subr.bf16.mxu0 0
      %1162 = vmatpush2.bf16.msra.mxu0 0
      %1163 = vmatprep.subr.bf16.mxu0 0
      %1164 = vmatpush2.bf16.msra.mxu0 0
      %1165 = vmatprep.subr.bf16.mxu0 0
      %1166 = vmatpush2.bf16.msra.mxu0 0
      %1167 = vmatprep.subr.bf16.mxu0 0
      %1168 = vmatpush2.bf16.msra.mxu0 0
      %1169 = vmatprep.subr.bf16.mxu0 0
      %1170 = vmatpush2.bf16.msra.mxu0 0
      %1171 = vmatprep.subr.bf16.mxu0 0
      %1172 = vmatpush2.bf16.msra.mxu0 0
      %1173 = vmatprep.subr.bf16.mxu0 0
      %1174 = vmatpush2.bf16.msra.mxu0 0
      %1175 = vmatprep.subr.bf16.mxu0 0
      %1176 = vmatpush2.bf16.msra.mxu0 0
      %1177 = vmatprep.mubr.bf16.mxu0 0
      %1178 = vmatmul.mubr.bf16.gmra.mxu0 %v1069
      %v1179 = vpop.f32.mrf.mxu0
      %v1180 = vadd.f32 %v1115, %v1179
      %v1181 = vpop.f32.mrf.mxu0
      %v1182 = vpop.f32.mrf.mxu0
      %v1183 = vadd.f32 %v1118, %v1182
      %v1184 = vpop.f32.mrf.mxu0
      %1185 = vmatprep.mubr.bf16.mxu0 0
      %1186 = vmatmul.mubr.bf16.gmra.mxu0 %v1072
      %v1187 = vpop.f32.mrf.mxu0
      %v1188 = vadd.f32 %v1123, %v1187
      %v1189 = vpop.f32.mrf.mxu0
      %v1190 = vpop.f32.mrf.mxu0
      %v1191 = vadd.f32 %v1126, %v1190
      %v1192 = vpop.f32.mrf.mxu0
      %1193 = vmatprep.mubr.bf16.mxu0 0
      %1194 = vmatmul.mubr.bf16.gmra.mxu0 %v1075
      %v1195 = vpop.f32.mrf.mxu0
      %v1196 = vadd.f32 %v1131, %v1195
      %v1197 = vpop.f32.mrf.mxu0
      %v1198 = vpop.f32.mrf.mxu0
      %v1199 = vadd.f32 %v1134, %v1198
      %v1200 = vpop.f32.mrf.mxu0
      %1201 = vmatprep.mubr.bf16.mxu0 0
      %1202 = vmatmul.mubr.bf16.gmra.mxu0 %v1078
      %v1203 = vpop.f32.mrf.mxu0
      %v1204 = vadd.f32 %v1139, %v1203
      %v1205 = vpop.f32.mrf.mxu0
      %v1206 = vpop.f32.mrf.mxu0
      %v1207 = vadd.f32 %v1142, %v1206
      %v1208 = vpop.f32.mrf.mxu0
      %1209 = vdwg.mxu0
      %v1210 = vmax.f32 %v1180, 0.0
      %v1211 = vmax.f32 %v1183, 0.0
      %v1212 = vmax.f32 %v1188, 0.0
      %v1213 = vmax.f32 %v1191, 0.0
      %v1214 = vmax.f32 %v1196, 0.0
      %v1215 = vmax.f32 %v1199, 0.0
      %v1216 = vmax.f32 %v1204, 0.0
      %v1217 = vmax.f32 %v1207, 0.0
      %1218 = vst.msk [vmem:[#allocation2] sm:$0xff] %vm767, %v1210
      %1219 = vst.msk [vmem:[#allocation2 + $0x8] sm:$0xff] %vm767, %v1211
      %1220 = vst.msk [vmem:[#allocation2 + $0x10] sm:$0xff] %vm767, %v1212
      %1221 = vst.msk [vmem:[#allocation2 + $0x18] sm:$0xff] %vm767, %v1213
      %1222 = vst.msk [vmem:[#allocation2 + $0x20] sm:$0xff] %vm767, %v1214
      %1223 = vst.msk [vmem:[#allocation2 + $0x28] sm:$0xff] %vm767, %v1215
      %1224 = vst.msk [vmem:[#allocation2 + $0x30] sm:$0xff] %vm767, %v1216
      %1225 = vst.msk [vmem:[#allocation2 + $0x38] sm:$0xff] %vm767, %v1217
      %v1226 = vld [vmem:[#allocation2] ss:$2 sm:$0xff]
      %s1227 = scalar_lea.vmem [#allocation2], 16
      %v1228 = vld [vmem:[%s1227] ss:$2 sm:$0xff]
      %s1229 = scalar_lea.vmem [#allocation2], 32
      %v1230 = vld [vmem:[%s1229] ss:$2 sm:$0xff]
      %s1231 = scalar_lea.vmem [#allocation2], 48
      %v1232 = vld [vmem:[%s1231] ss:$2 sm:$0xff]
      %s1233 = scalar_lea.vmem [#allocation2], 1
      %v1234 = vld [vmem:[%s1233] ss:$2 sm:$0xff]
      %s1235 = scalar_lea.vmem [#allocation2], 17
      %v1236 = vld [vmem:[%s1235] ss:$2 sm:$0xff]
      %s1237 = scalar_lea.vmem [#allocation2], 33
      %v1238 = vld [vmem:[%s1237] ss:$2 sm:$0xff]
      %s1239 = scalar_lea.vmem [#allocation2], 49
      %v1240 = vld [vmem:[%s1239] ss:$2 sm:$0xff]
      %v1241 = vmax.f32 %v1226, %v1234
      %v1242 = vmax.f32 %v1228, %v1236
      %v1243 = vmax.f32 %v1230, %v1238
      %v1244 = vmax.f32 %v1232, %v1240
      %1245 = vst.msk [vmem:[#allocation3] sm:$0xff] %vm767, %v1241
      %1246 = vst.msk [vmem:[#allocation3 + $0x8] sm:$0xff] %vm767, %v1242
      %1247 = vst.msk [vmem:[#allocation3 + $0x10] sm:$0xff] %vm767, %v1243
      %1248 = vst.msk [vmem:[#allocation3 + $0x18] sm:$0xff] %vm767, %v1244
      loop: start=0, step=1, limit=4
      $region33: #{pointnet_forward.4} parent=31 // loop_pre_header
        _
      $region34: #{pointnet_forward.4} parent=31 // loop_header
        %s1250 = sphi 0, %s1254
        %p1251 = scmp.ge.s32.totalorder %s1250, 4
      $region35: #{pointnet_forward.4} parent=31 // loop_header_branch
        %1253 = sbr.rel (%p1251) target = $region39
      $region36: #{pointnet_forward.4} parent=31 // loop_body
        %s1255 = smul.u32 %s1250, 8
        %s1256 = scalar_lea.vmem [#allocation3], %s1255
        %v1257 = vld [vmem:[%s1256] sm:$0xf]
        %s1258 = sadd.s32 %s1255, 4
        %s1259 = scalar_lea.vmem [#allocation3], %s1258
        %v1260 = vld [vmem:[%s1259] sm:$0xf]
        %v1261 = vmax.f32 %v1257, %v1260
        %v1262 = vpack.c.bf16 %v1261, %v1261
        %s1263 = smul.addr %s1250, 2
        %s1264 = scalar_lea.vmem %s170, %s1263
        %vm1265 = vcmask 517120
        %1266 = vst.msk [vmem:[%s1264] sm:$0x3] %vm1265, %v1262
      $region37: #{pointnet_forward.4} parent=31 // loop_footer
        %s1254 = sadd.s32 1, %s1250
      $region38: #{pointnet_forward.4} parent=31 // loop_footer_branch
        %1249 = sbr.rel target = $region34
      $region39: #{pointnet_forward.4} parent=31 // loop_exit
        _
      %p1267 = scmp.lt.s32.totalorder %s14, 1
      %s1268 = scalar_select %p1267, %s14, 1
      %s1269 = smul.addr %s1268, 4
      %s1270 = smul.addr %s1269, 2
      %s1271 = scalar_lea.vmem %s3, %s1270
      // Predicated region
      $region40: #{pointnet_forward.4} parent=31 // pred_check
        %p1272 = pneg %p100
      $region41: #{pointnet_forward.4} parent=31 // pred_check_branch
        %1274 = sbr.rel (%p1272) target = $region43
      $region42: #{pointnet_forward.4} parent=31 // pred_region
        _
      $region43: #{pointnet_forward.4} parent=31 // pred_fallthru
        _
    $region32: #{pointnet_forward.4} parent=5 // pred_fallthru
      _
    %p1275 = scmp.le.s32.totalorder 2, %s9
    // Predicated region
    $region44: #{pointnet_forward.4} parent=5 // pred_check
      %p1276 = pneg %p1275
    $region45: #{pointnet_forward.4} parent=5 // pred_check_branch
      %1278 = sbr.rel (%p1276) target = $region47
    $region46: #{pointnet_forward.4} parent=5 // pred_region
      %s1279 = ssub.s32 %s9, 2
      // Predicated region
      $region48: #{pointnet_forward.4} parent=46 // pred_check
        %p1280 = pneg %p106
      $region49: #{pointnet_forward.4} parent=46 // pred_check_branch
        %1282 = sbr.rel (%p1280) target = $region51
      $region50: #{pointnet_forward.4} parent=46 // pred_region
        %p1283 = scmp.lt.s32.totalorder %s15, 1
        %s1284 = scalar_select %p1283, %s15, 1
        %s1285 = smul.addr %s1284, 4
        %s1286 = smul.addr %s1285, 2
        %s1287 = scalar_lea.vmem %s3, %s1286
      $region51: #{pointnet_forward.4} parent=46 // pred_fallthru
        _
    $region47: #{pointnet_forward.4} parent=5 // pred_fallthru
      _
  $region6: #{pointnet_forward.4} parent=0 // loop_footer
    %s13 = sadd.s32 1, %s9
  $region7: #{pointnet_forward.4} parent=0 // loop_footer_branch
    %8 = sbr.rel target = $region3
  $region8: #{pointnet_forward.4} parent=0 // loop_exit
    _

// kernel: pointnet_forward.3
$region0: #{pointnet_forward.3}
  #allocation0 [shape = 'u32[]', space=smem, size = 0x4, offset = 0x4, fixed_abs, tag = 'smem constant byte address 0x4 - core index']
  #allocation1 [shape = 'u32[144,128]{1,0:T(1,128)}', space=vmem, size = 0x12000, scoped, tag = 'internal scratch']
  #allocation2 [shape = 'f32[256,32]{1,0:T(8,128)}', space=vmem, size = 0x20000, scoped, tag = 'scratch operand']
  #allocation3 [shape = 'f32[128,32]{1,0:T(8,128)}', space=vmem, size = 0x10000, scoped, tag = 'scratch operand']
  %s0 = inlined_call_operand.vmem [shape: bf16[2,18,18,3], index: 0, kind: input, shape index: {}]
  %s1 = inlined_call_operand.vmem [shape: bf16[27,32], index: 1, kind: input, shape index: {}]
  %s2 = inlined_call_operand.vmem [shape: f32[1,32], index: 2, kind: input, shape index: {}]
  %s3 = inlined_call_operand.vmem [shape: bf16[2,8,8,32], index: 3, kind: output, shape index: {}]
  %s4 = sld [smem:[#allocation0]]
  $region52: #{pointnet_forward.3} parent=0
    _
  %s6 = ssub.s32 1, %s4
  %s7 = scalar_select 0, %s6, %s4
  loop: start=0, step=1, limit=4
  $region2: #{pointnet_forward.3} parent=0 // loop_pre_header
    _
  $region3: #{pointnet_forward.3} parent=0 // loop_header
    %s9 = sphi 0, %s13
    %p10 = scmp.ge.s32.totalorder %s9, 4
    %s19 = sphi 0, %s21
    %s22 = sphi 0, %s19
    %s23 = sphi 0, %s22
    %s39 = sphi 0, %s23
    %s43 = sphi 0, %s43
    %s45 = sphi 0, %s43
    %s46 = sphi 0, %s45
    %s60 = sphi 0, %s46
    %s64 = sphi 0, %s64
    %s66 = sphi 0, %s64
    %s67 = sphi 0, %s66
    %s81 = sphi 0, %s67
    %s87 = sphi 0, %s89
    %s90 = sphi 0, %s87
    %s91 = sphi 0, %s90
    %s107 = sphi 0, %s91
  $region4: #{pointnet_forward.3} parent=0 // loop_header_branch
    %12 = sbr.rel (%p10) target = $region8
  $region5: #{pointnet_forward.3} parent=0 // loop_body
    %s14 = ssub.s32 %s9, 1
    %s15 = ssub.s32 %s9, 2
    %s16 = sadd.s32 %s9, 1
    %s17 = ssub.s32 %s9, %s16
    %p18 = scmp.eq.s32.totalorder %s17, 0
    %s20 = sadd.s32 %s19, 1
    %s21 = scalar_select %p18, %s19, %s20
    %p24 = pneg %p18
    %p25 = scmp.eq.s32.totalorder %s9, 1
    %p26 = por %p24, %p25
    %p27 = scmp.ne.s32.totalorder %s19, %s22
    %p28 = scmp.eq.s32.totalorder %s9, 0
    %p29 = por %p27, %p28
    %p30 = scmp.ne.s32.totalorder %s19, %s22
    %p31 = scmp.eq.s32.totalorder %s14, 1
    %p32 = por %p30, %p31
    %p33 = scmp.ne.s32.totalorder %s22, %s23
    %p34 = scmp.eq.s32.totalorder %s14, 0
    %p35 = por %p33, %p34
    %p36 = scmp.ne.s32.totalorder %s22, %s23
    %p37 = scmp.eq.s32.totalorder %s15, 1
    %p38 = por %p36, %p37
    %p40 = scmp.ne.s32.totalorder %s23, %s39
    %p41 = scmp.eq.s32.totalorder %s15, 0
    %p42 = por %p40, %p41
    %s44 = sadd.s32 %s43, 1
    %p47 = scmp.eq.s32.totalorder %s9, 1
    %p48 = scmp.ne.s32.totalorder %s43, %s45
    %p49 = scmp.eq.s32.totalorder %s9, 0
    %p50 = por %p48, %p49
    %p51 = scmp.ne.s32.totalorder %s43, %s45
    %p52 = scmp.eq.s32.totalorder %s14, 1
    %p53 = por %p51, %p52
    %p54 = scmp.ne.s32.totalorder %s45, %s46
    %p55 = scmp.eq.s32.totalorder %s14, 0
    %p56 = por %p54, %p55
    %p57 = scmp.ne.s32.totalorder %s45, %s46
    %p58 = scmp.eq.s32.totalorder %s15, 1
    %p59 = por %p57, %p58
    %p61 = scmp.ne.s32.totalorder %s46, %s60
    %p62 = scmp.eq.s32.totalorder %s15, 0
    %p63 = por %p61, %p62
    %s65 = sadd.s32 %s64, 1
    %p68 = scmp.eq.s32.totalorder %s9, 1
    %p69 = scmp.ne.s32.totalorder %s64, %s66
    %p70 = scmp.eq.s32.totalorder %s9, 0
    %p71 = por %p69, %p70
    %p72 = scmp.ne.s32.totalorder %s64, %s66
    %p73 = scmp.eq.s32.totalorder %s14, 1
    %p74 = por %p72, %p73
    %p75 = scmp.ne.s32.totalorder %s66, %s67
    %p76 = scmp.eq.s32.totalorder %s14, 0
    %p77 = por %p75, %p76
    %p78 = scmp.ne.s32.totalorder %s66, %s67
    %p79 = scmp.eq.s32.totalorder %s15, 1
    %p80 = por %p78, %p79
    %p82 = scmp.ne.s32.totalorder %s67, %s81
    %p83 = scmp.eq.s32.totalorder %s15, 0
    %p84 = por %p82, %p83
    %s85 = ssub.s32 %s9, %s16
    %p86 = scmp.eq.s32.totalorder %s85, 0
    %s88 = sadd.s32 %s87, 1
    %s89 = scalar_select %p86, %s87, %s88
    %p92 = pneg %p86
    %p93 = scmp.eq.s32.totalorder %s9, 1
    %p94 = por %p92, %p93
    %p95 = scmp.ne.s32.totalorder %s87, %s90
    %p96 = scmp.eq.s32.totalorder %s9, 0
    %p97 = por %p95, %p96
    %p98 = scmp.ne.s32.totalorder %s87, %s90
    %p99 = scmp.eq.s32.totalorder %s14, 1
    %p100 = por %p98, %p99
    %p101 = scmp.ne.s32.totalorder %s90, %s91
    %p102 = scmp.eq.s32.totalorder %s14, 0
    %p103 = por %p101, %p102
    %p104 = scmp.ne.s32.totalorder %s90, %s91
    %p105 = scmp.eq.s32.totalorder %s15, 1
    %p106 = por %p104, %p105
    %p108 = scmp.ne.s32.totalorder %s91, %s107
    %p109 = scmp.eq.s32.totalorder %s15, 0
    %p110 = por %p108, %p109
    %p111 = scmp.le.s32.totalorder 1, %s9
    %p112 = scmp.lt.s32.totalorder %s9, 3
    %p113 = pnand %p111, %p112
    %p114 = pneg %p113
    // Predicated region
    $region9: #{pointnet_forward.3} parent=5 // pred_check
      _
    $region10: #{pointnet_forward.3} parent=5 // pred_check_branch
      %116 = sbr.rel (%p113) target = $region12
    $region11: #{pointnet_forward.3} parent=5 // pred_region
      %s117 = ssub.s32 %s9, 1
      // Predicated region
      $region13: #{pointnet_forward.3} parent=11 // pred_check
        %p118 = pneg %p56
      $region14: #{pointnet_forward.3} parent=11 // pred_check_branch
        %120 = sbr.rel (%p118) target = $region16
      $region15: #{pointnet_forward.3} parent=11 // pred_region
        _
      $region16: #{pointnet_forward.3} parent=11 // pred_fallthru
        _
      // Predicated region
      $region17: #{pointnet_forward.3} parent=11 // pred_check
        %p121 = pneg %p77
      $region18: #{pointnet_forward.3} parent=11 // pred_check_branch
        %123 = sbr.rel (%p121) target = $region20
      $region19: #{pointnet_forward.3} parent=11 // pred_region
        _
      $region20: #{pointnet_forward.3} parent=11 // pred_fallthru
        _
    $region12: #{pointnet_forward.3} parent=5 // pred_fallthru
      _
    %p124 = scmp.lt.s32.totalorder %s9, 2
    // Predicated region
    $region21: #{pointnet_forward.3} parent=5 // pred_check
      %p125 = pneg %p124
    $region22: #{pointnet_forward.3} parent=5 // pred_check_branch
      %127 = sbr.rel (%p125) target = $region24
    $region23: #{pointnet_forward.3} parent=5 // pred_region
      // Predicated region
      $region25: #{pointnet_forward.3} parent=23 // pred_check
        %p128 = pneg %p29
      $region26: #{pointnet_forward.3} parent=23 // pred_check_branch
        %130 = sbr.rel (%p128) target = $region28
      $region27: #{pointnet_forward.3} parent=23 // pred_region
        %p131 = scmp.lt.s32.totalorder %s9, 1
        %s132 = scalar_select %p131, %s9, 1
        %s133 = smul.addr %s132, 54
        %s134 = smul.addr %s133, 4
        %s135 = scalar_lea.vmem %s0, %s134
      $region28: #{pointnet_forward.3} parent=23 // pred_fallthru
        _
    $region24: #{pointnet_forward.3} parent=5 // pred_fallthru
      _
    %p136 = scmp.le.s32.totalorder 1, %s9
    %p137 = scmp.lt.s32.totalorder %s9, 3
    %p138 = pnand %p136, %p137
    %p139 = pneg %p138
    // Predicated region
    $region29: #{pointnet_forward.3} parent=5 // pred_check
      _
    $region30: #{pointnet_forward.3} parent=5 // pred_check_branch
      %141 = sbr.rel (%p138) target = $region32
    $region31: #{pointnet_forward.3} parent=5 // pred_region
      %s142 = ssub.s32 %s9, 1
      %p143 = scmp.lt.s32.totalorder %s14, 1
      %s144 = scalar_select %p143, %s14, 1
      %s145 = smul.addr %s144, 54
      %s146 = smul.addr %s145, 4
      %s147 = scalar_lea.vmem %s0, %s146
      %p148 = pneg %p35
      %p149 = pneg %p32
      %p150 = pneg %p56
      %p151 = pneg %p53
      %p152 = pneg %p77
      %p153 = pneg %p74
      %p154 = pneg %p103
      %p155 = pneg %p100
      %p156 = scmp.lt.s32.totalorder %s14, 1
      %s157 = scalar_select %p156, %s14, 1
      %s158 = smul.addr %s157, 8
      %s159 = smul.addr %s158, 4
      %s160 = scalar_lea.vmem %s3, %s159
      %p161 = scmp.lt.s32.totalorder %s14, 1
      %s162 = scalar_select %p161, %s14, 1
      %s163 = smul.addr %s162, 54
      %s164 = smul.addr %s163, 4
      %s165 = scalar_lea.vmem %s0, %s164
      %p166 = scmp.lt.s32.totalorder %s14, 1
      %s167 = scalar_select %p166, %s14, 1
      %s168 = smul.addr %s167, 8
      %s169 = smul.addr %s168, 4
      %s170 = scalar_lea.vmem %s3, %s169
      %v172 = vld [vmem:[%s165] sm:$0xf]
      %v173 = vld [vmem:[%s165 + $0x4] sm:$0xf]
      %v174 = vld [vmem:[%s165 + $0xc] sm:$0xf]
      %v175 = vld [vmem:[%s165 + $0x10] sm:$0xf]
      %v176 = vld [vmem:[%s165 + $0x18] sm:$0xf]
      %v177 = vld [vmem:[%s165 + $0x1c] sm:$0xf]
      %v178 = vld [vmem:[%s165 + $0x24] sm:$0xf]
      %v179 = vld [vmem:[%s165 + $0x28] sm:$0xf]
      %v180 = vld [vmem:[%s165 + $0x30] sm:$0xf]
      %v181 = vld [vmem:[%s165 + $0x34] sm:$0xf]
      %v182 = vld [vmem:[%s165 + $0x3c] sm:$0xf]
      %v183 = vld [vmem:[%s165 + $0x40] sm:$0xf]
      %v184 = vld [vmem:[%s165 + $0x48] sm:$0xf]
      %v185 = vld [vmem:[%s165 + $0x4c] sm:$0xf]
      %v186 = vld [vmem:[%s165 + $0x54] sm:$0xf]
      %v187 = vld [vmem:[%s165 + $0x58] sm:$0xf]
      %v188 = vld [vmem:[%s165 + $0x60] sm:$0xf]
      %v189 = vld [vmem:[%s165 + $0x64] sm:$0xf]
      %v190 = vld [vmem:[%s165 + $0x6c] sm:$0xf]
      %v191 = vld [vmem:[%s165 + $0x70] sm:$0xf]
      %v192 = vld [vmem:[%s165 + $0x78] sm:$0xf]
      %v193 = vld [vmem:[%s165 + $0x7c] sm:$0xf]
      %v194 = vld [vmem:[%s165 + $0x84] sm:$0xf]
      %v195 = vld [vmem:[%s165 + $0x88] sm:$0xf]
      %v196 = vld [vmem:[%s165 + $0x90] sm:$0xf]
      %v197 = vld [vmem:[%s165 + $0x94] sm:$0xf]
      %v198 = vld [vmem:[%s165 + $0x9c] sm:$0xf]
      %v199 = vld [vmem:[%s165 + $0xa0] sm:$0xf]
      %v200 = vld [vmem:[%s165 + $0xa8] sm:$0xf]
      %v201 = vld [vmem:[%s165 + $0xac] sm:$0xf]
      %v202 = vld [vmem:[%s165 + $0xb4] sm:$0xf]
      %v203 = vld [vmem:[%s165 + $0xb8] sm:$0xf]
      %v204 = vld [vmem:[%s165 + $0x8] sm:$0x1]
      %v205 = vld [vmem:[%s165 + $0x14] sm:$0x1]
      %v206 = vld [vmem:[%s165 + $0x20] sm:$0x1]
      %v207 = vld [vmem:[%s165 + $0x2c] sm:$0x1]
      %v208 = vld [vmem:[%s165 + $0x38] sm:$0x1]
      %v209 = vld [vmem:[%s165 + $0x44] sm:$0x1]
      %v210 = vld [vmem:[%s165 + $0x50] sm:$0x1]
      %v211 = vld [vmem:[%s165 + $0x5c] sm:$0x1]
      %v212 = vld [vmem:[%s165 + $0x68] sm:$0x1]
      %v213 = vld [vmem:[%s165 + $0x74] sm:$0x1]
      %v214 = vld [vmem:[%s165 + $0x80] sm:$0x1]
      %v215 = vld [vmem:[%s165 + $0x8c] sm:$0x1]
      %v216 = vld [vmem:[%s165 + $0x98] sm:$0x1]
      %v217 = vld [vmem:[%s165 + $0xa4] sm:$0x1]
      %v218 = vld [vmem:[%s165 + $0xb0] sm:$0x1]
      %v219 = vld [vmem:[%s165 + $0xbc] sm:$0x1]
      %v220 = vld [vmem:[%s165] sm:$0xe]
      %v221 = vld [vmem:[%s165 + $0xc] sm:$0xe]
      %v222 = vld [vmem:[%s165 + $0x18] sm:$0xe]
      %v223 = vld [vmem:[%s165 + $0x24] sm:$0xe]
      %v224 = vld [vmem:[%s165 + $0x30] sm:$0xe]
      %v225 = vld [vmem:[%s165 + $0x3c] sm:$0xe]
      %v226 = vld [vmem:[%s165 + $0x48] sm:$0xe]
      %v227 = vld [vmem:[%s165 + $0x54] sm:$0xe]
      %v228 = vld [vmem:[%s165 + $0x60] sm:$0xe]
      %v229 = vld [vmem:[%s165 + $0x6c] sm:$0xe]
      %v230 = vld [vmem:[%s165 + $0x78] sm:$0xe]
      %v231 = vld [vmem:[%s165 + $0x84] sm:$0xe]
      %v232 = vld [vmem:[%s165 + $0x90] sm:$0xe]
      %v233 = vld [vmem:[%s165 + $0x9c] sm:$0xe]
      %v234 = vld [vmem:[%s165 + $0xa8] sm:$0xe]
      %v235 = vld [vmem:[%s165 + $0xb4] sm:$0xe]
      %s236 = scalar_lea.vmem %s165, 12
      %v237 = vld [vmem:[%s236] sm:$0xf]
      %v238 = vld [vmem:[%s236 + $0x4] sm:$0xf]
      %v239 = vld [vmem:[%s236 + $0xc] sm:$0xf]
      %v240 = vld [vmem:[%s236 + $0x10] sm:$0xf]
      %v241 = vld [vmem:[%s236 + $0x18] sm:$0xf]
      %v242 = vld [vmem:[%s236 + $0x1c] sm:$0xf]
      %v243 = vld [vmem:[%s236 + $0x24] sm:$0xf]
      %v244 = vld [vmem:[%s236 + $0x28] sm:$0xf]
      %v245 = vld [vmem:[%s236 + $0x30] sm:$0xf]
      %v246 = vld [vmem:[%s236 + $0x34] sm:$0xf]
      %v247 = vld [vmem:[%s236 + $0x3c] sm:$0xf]
      %v248 = vld [vmem:[%s236 + $0x40] sm:$0xf]
      %v249 = vld [vmem:[%s236 + $0x48] sm:$0xf]
      %v250 = vld [vmem:[%s236 + $0x4c] sm:$0xf]
      %v251 = vld [vmem:[%s236 + $0x54] sm:$0xf]
      %v252 = vld [vmem:[%s236 + $0x58] sm:$0xf]
      %v253 = vld [vmem:[%s236 + $0x60] sm:$0xf]
      %v254 = vld [vmem:[%s236 + $0x64] sm:$0xf]
      %v255 = vld [vmem:[%s236 + $0x6c] sm:$0xf]
      %v256 = vld [vmem:[%s236 + $0x70] sm:$0xf]
      %v257 = vld [vmem:[%s236 + $0x78] sm:$0xf]
      %v258 = vld [vmem:[%s236 + $0x7c] sm:$0xf]
      %v259 = vld [vmem:[%s236 + $0x84] sm:$0xf]
      %v260 = vld [vmem:[%s236 + $0x88] sm:$0xf]
      %v261 = vld [vmem:[%s236 + $0x90] sm:$0xf]
      %v262 = vld [vmem:[%s236 + $0x94] sm:$0xf]
      %v263 = vld [vmem:[%s236 + $0x9c] sm:$0xf]
      %v264 = vld [vmem:[%s236 + $0xa0] sm:$0xf]
      %v265 = vld [vmem:[%s236 + $0xa8] sm:$0xf]
      %v266 = vld [vmem:[%s236 + $0xac] sm:$0xf]
      %v267 = vld [vmem:[%s236 + $0xb4] sm:$0xf]
      %v268 = vld [vmem:[%s236 + $0xb8] sm:$0xf]
      %v269 = vld [vmem:[%s236 + $0x8] sm:$0x1]
      %v270 = vld [vmem:[%s236 + $0x14] sm:$0x1]
      %v271 = vld [vmem:[%s236 + $0x20] sm:$0x1]
      %v272 = vld [vmem:[%s236 + $0x2c] sm:$0x1]
      %v273 = vld [vmem:[%s236 + $0x38] sm:$0x1]
      %v274 = vld [vmem:[%s236 + $0x44] sm:$0x1]
      %v275 = vld [vmem:[%s236 + $0x50] sm:$0x1]
      %v276 = vld [vmem:[%s236 + $0x5c] sm:$0x1]
      %v277 = vld [vmem:[%s236 + $0x68] sm:$0x1]
      %v278 = vld [vmem:[%s236 + $0x74] sm:$0x1]
      %v279 = vld [vmem:[%s236 + $0x80] sm:$0x1]
      %v280 = vld [vmem:[%s236 + $0x8c] sm:$0x1]
      %v281 = vld [vmem:[%s236 + $0x98] sm:$0x1]
      %v282 = vld [vmem:[%s236 + $0xa4] sm:$0x1]
      %v283 = vld [vmem:[%s236 + $0xb0] sm:$0x1]
      %v284 = vld [vmem:[%s236 + $0xbc] sm:$0x1]
      %v285 = vld [vmem:[%s236] sm:$0xe]
      %v286 = vld [vmem:[%s236 + $0xc] sm:$0xe]
      %v287 = vld [vmem:[%s236 + $0x18] sm:$0xe]
      %v288 = vld [vmem:[%s236 + $0x24] sm:$0xe]
      %v289 = vld [vmem:[%s236 + $0x30] sm:$0xe]
      %v290 = vld [vmem:[%s236 + $0x3c] sm:$0xe]
      %v291 = vld [vmem:[%s236 + $0x48] sm:$0xe]
      %v292 = vld [vmem:[%s236 + $0x54] sm:$0xe]
      %v293 = vld [vmem:[%s236 + $0x60] sm:$0xe]
      %v294 = vld [vmem:[%s236 + $0x6c] sm:$0xe]
      %v295 = vld [vmem:[%s236 + $0x78] sm:$0xe]
      %v296 = vld [vmem:[%s236 + $0x84] sm:$0xe]
      %v297 = vld [vmem:[%s236 + $0x90] sm:$0xe]
      %v298 = vld [vmem:[%s236 + $0x9c] sm:$0xe]
      %v299 = vld [vmem:[%s236 + $0xa8] sm:$0xe]
      %v300 = vld [vmem:[%s236 + $0xb4] sm:$0xe]
      %s301 = scalar_lea.vmem %s165, 24
      %v302 = vld [vmem:[%s301] sm:$0xf]
      %v303 = vld [vmem:[%s301 + $0x4] sm:$0xf]
      %v304 = vld [vmem:[%s301 + $0xc] sm:$0xf]
      %v305 = vld [vmem:[%s301 + $0x10] sm:$0xf]
      %v306 = vld [vmem:[%s301 + $0x18] sm:$0xf]
      %v307 = vld [vmem:[%s301 + $0x1c] sm:$0xf]
      %v308 = vld [vmem:[%s301 + $0x24] sm:$0xf]
      %v309 = vld [vmem:[%s301 + $0x28] sm:$0xf]
      %v310 = vld [vmem:[%s301 + $0x30] sm:$0xf]
      %v311 = vld [vmem:[%s301 + $0x34] sm:$0xf]
      %v312 = vld [vmem:[%s301 + $0x3c] sm:$0xf]
      %v313 = vld [vmem:[%s301 + $0x40] sm:$0xf]
      %v314 = vld [vmem:[%s301 + $0x48] sm:$0xf]
      %v315 = vld [vmem:[%s301 + $0x4c] sm:$0xf]
      %v316 = vld [vmem:[%s301 + $0x54] sm:$0xf]
      %v317 = vld [vmem:[%s301 + $0x58] sm:$0xf]
      %v318 = vld [vmem:[%s301 + $0x60] sm:$0xf]
      %v319 = vld [vmem:[%s301 + $0x64] sm:$0xf]
      %v320 = vld [vmem:[%s301 + $0x6c] sm:$0xf]
      %v321 = vld [vmem:[%s301 + $0x70] sm:$0xf]
      %v322 = vld [vmem:[%s301 + $0x78] sm:$0xf]
      %v323 = vld [vmem:[%s301 + $0x7c] sm:$0xf]
      %v324 = vld [vmem:[%s301 + $0x84] sm:$0xf]
      %v325 = vld [vmem:[%s301 + $0x88] sm:$0xf]
      %v326 = vld [vmem:[%s301 + $0x90] sm:$0xf]
      %v327 = vld [vmem:[%s301 + $0x94] sm:$0xf]
      %v328 = vld [vmem:[%s301 + $0x9c] sm:$0xf]
      %v329 = vld [vmem:[%s301 + $0xa0] sm:$0xf]
      %v330 = vld [vmem:[%s301 + $0xa8] sm:$0xf]
      %v331 = vld [vmem:[%s301 + $0xac] sm:$0xf]
      %v332 = vld [vmem:[%s301 + $0xb4] sm:$0xf]
      %v333 = vld [vmem:[%s301 + $0xb8] sm:$0xf]
      %v334 = vld [vmem:[%s301 + $0x8] sm:$0x1]
      %v335 = vld [vmem:[%s301 + $0x14] sm:$0x1]
      %v336 = vld [vmem:[%s301 + $0x20] sm:$0x1]
      %v337 = vld [vmem:[%s301 + $0x2c] sm:$0x1]
      %v338 = vld [vmem:[%s301 + $0x38] sm:$0x1]
      %v339 = vld [vmem:[%s301 + $0x44] sm:$0x1]
      %v340 = vld [vmem:[%s301 + $0x50] sm:$0x1]
      %v341 = vld [vmem:[%s301 + $0x5c] sm:$0x1]
      %v342 = vld [vmem:[%s301 + $0x68] sm:$0x1]
      %v343 = vld [vmem:[%s301 + $0x74] sm:$0x1]
      %v344 = vld [vmem:[%s301 + $0x80] sm:$0x1]
      %v345 = vld [vmem:[%s301 + $0x8c] sm:$0x1]
      %v346 = vld [vmem:[%s301 + $0x98] sm:$0x1]
      %v347 = vld [vmem:[%s301 + $0xa4] sm:$0x1]
      %v348 = vld [vmem:[%s301 + $0xb0] sm:$0x1]
      %v349 = vld [vmem:[%s301 + $0xbc] sm:$0x1]
      %v350 = vld [vmem:[%s301] sm:$0xe]
      %v351 = vld [vmem:[%s301 + $0xc] sm:$0xe]
      %v352 = vld [vmem:[%s301 + $0x18] sm:$0xe]
      %v353 = vld [vmem:[%s301 + $0x24] sm:$0xe]
      %v354 = vld [vmem:[%s301 + $0x30] sm:$0xe]
      %v355 = vld [vmem:[%s301 + $0x3c] sm:$0xe]
      %v356 = vld [vmem:[%s301 + $0x48] sm:$0xe]
      %v357 = vld [vmem:[%s301 + $0x54] sm:$0xe]
      %v358 = vld [vmem:[%s301 + $0x60] sm:$0xe]
      %v359 = vld [vmem:[%s301 + $0x6c] sm:$0xe]
      %v360 = vld [vmem:[%s301 + $0x78] sm:$0xe]
      %v361 = vld [vmem:[%s301 + $0x84] sm:$0xe]
      %v362 = vld [vmem:[%s301 + $0x90] sm:$0xe]
      %v363 = vld [vmem:[%s301 + $0x9c] sm:$0xe]
      %v364 = vld [vmem:[%s301 + $0xa8] sm:$0xe]
      %v365 = vld [vmem:[%s301 + $0xb4] sm:$0xe]
      %v398 = vunpack.c.l.b16 %v172
      %v399 = vunpack.c.l.b16 %v173
      %v400 = vunpack.c.l.b16 %v174
      %v401 = vunpack.c.l.b16 %v175
      %v402 = vunpack.c.l.b16 %v176
      %v403 = vunpack.c.l.b16 %v177
      %v404 = vunpack.c.l.b16 %v178
      %v405 = vunpack.c.l.b16 %v179
      %v406 = vunpack.c.l.b16 %v180
      %v407 = vunpack.c.l.b16 %v181
      %v408 = vunpack.c.l.b16 %v182
      %v409 = vunpack.c.l.b16 %v183
      %v410 = vunpack.c.l.b16 %v184
      %v411 = vunpack.c.l.b16 %v185
      %v412 = vunpack.c.l.b16 %v186
      %v413 = vunpack.c.l.b16 %v187
      %v414 = vunpack.c.l.b16 %v188
      %v415 = vunpack.c.l.b16 %v189
      %v416 = vunpack.c.l.b16 %v190
      %v417 = vunpack.c.l.b16 %v191
      %v418 = vunpack.c.l.b16 %v192
      %v419 = vunpack.c.l.b16 %v193
      %v420 = vunpack.c.l.b16 %v194
      %v421 = vunpack.c.l.b16 %v195
      %v422 = vunpack.c.l.b16 %v196
      %v423 = vunpack.c.l.b16 %v197
      %v424 = vunpack.c.l.b16 %v198
      %v425 = vunpack.c.l.b16 %v199
      %v426 = vunpack.c.l.b16 %v200
      %v427 = vunpack.c.l.b16 %v201
      %v428 = vunpack.c.l.b16 %v202
      %v429 = vunpack.c.l.b16 %v203
      %v430 = vpack.c.b16 %v399, %v398
      %v431 = vpack.c.b16 %v401, %v400
      %v432 = vpack.c.b16 %v403, %v402
      %v433 = vpack.c.b16 %v405, %v404
      %v434 = vpack.c.b16 %v407, %v406
      %v435 = vpack.c.b16 %v409, %v408
      %v436 = vpack.c.b16 %v411, %v410
      %v437 = vpack.c.b16 %v413, %v412
      %v438 = vpack.c.b16 %v415, %v414
      %v439 = vpack.c.b16 %v417, %v416
      %v440 = vpack.c.b16 %v419, %v418
      %v441 = vpack.c.b16 %v421, %v420
      %v442 = vpack.c.b16 %v423, %v422
      %v443 = vpack.c.b16 %v425, %v424
      %v444 = vpack.c.b16 %v427, %v426
      %v445 = vpack.c.b16 %v429, %v428
      %v462 = vunpack.c.l.b16 %v204
      %v463 = vunpack.c.l.b16 %v205
      %v464 = vunpack.c.l.b16 %v206
      %v465 = vunpack.c.l.b16 %v207
      %v466 = vunpack.c.l.b16 %v208
      %v467 = vunpack.c.l.b16 %v209
      %v468 = vunpack.c.l.b16 %v210
      %v469 = vunpack.c.l.b16 %v211
      %v470 = vunpack.c.l.b16 %v212
      %v471 = vunpack.c.l.b16 %v213
      %v472 = vunpack.c.l.b16 %v214
      %v473 = vunpack.c.l.b16 %v215
      %v474 = vunpack.c.l.b16 %v216
      %v475 = vunpack.c.l.b16 %v217
      %v476 = vunpack.c.l.b16 %v218
      %v477 = vunpack.c.l.b16 %v219
      %v478 = vpack.c.b16 %v462, %v462
      %v479 = vpack.c.b16 %v463, %v463
      %v480 = vpack.c.b16 %v464, %v464
      %v481 = vpack.c.b16 %v465, %v465
      %v482 = vpack.c.b16 %v466, %v466
      %v483 = vpack.c.b16 %v467, %v467
      %v484 = vpack.c.b16 %v468, %v468
      %v485 = vpack.c.b16 %v469, %v469
      %v486 = vpack.c.b16 %v470, %v470
      %v487 = vpack.c.b16 %v471, %v471
      %v488 = vpack.c.b16 %v472, %v472
      %v489 = vpack.c.b16 %v473, %v473
      %v490 = vpack.c.b16 %v474, %v474
      %v491 = vpack.c.b16 %v475, %v475
      %v492 = vpack.c.b16 %v476, %v476
      %v493 = vpack.c.b16 %v477, %v477
      %vm494 = vsmask.f32 7424
      %v496 = vshrl.u32 %v430, 16
      %v498 = vshll.u32 %v430, 16
      %v500 = vrot.slane %v498, 1
      %v501 = vor.u32 %v496, %v500
      %v503 = vshll.u32 %v478, 16
      %v505 = vrot.slane %v503, 1
      %v506 = vsel %vm494, %v501, %v505
      %v508 = vshrl.u32 %v431, 16
      %v510 = vshll.u32 %v431, 16
      %v512 = vrot.slane %v510, 1
      %v513 = vor.u32 %v508, %v512
      %v515 = vshll.u32 %v479, 16
      %v517 = vrot.slane %v515, 1
      %v518 = vsel %vm494, %v513, %v517
      %v520 = vshrl.u32 %v432, 16
      %v522 = vshll.u32 %v432, 16
      %v524 = vrot.slane %v522, 1
      %v525 = vor.u32 %v520, %v524
      %v527 = vshll.u32 %v480, 16
      %v529 = vrot.slane %v527, 1
      %v530 = vsel %vm494, %v525, %v529
      %v532 = vshrl.u32 %v433, 16
      %v534 = vshll.u32 %v433, 16
      %v536 = vrot.slane %v534, 1
      %v537 = vor.u32 %v532, %v536
      %v539 = vshll.u32 %v481, 16
      %v541 = vrot.slane %v539, 1
      %v542 = vsel %vm494, %v537, %v541
      %v544 = vshrl.u32 %v434, 16
      %v546 = vshll.u32 %v434, 16
      %v548 = vrot.slane %v546, 1
      %v549 = vor.u32 %v544, %v548
      %v551 = vshll.u32 %v482, 16
      %v553 = vrot.slane %v551, 1
      %v554 = vsel %vm494, %v549, %v553
      %v556 = vshrl.u32 %v435, 16
      %v558 = vshll.u32 %v435, 16
      %v560 = vrot.slane %v558, 1
      %v561 = vor.u32 %v556, %v560
      %v563 = vshll.u32 %v483, 16
      %v565 = vrot.slane %v563, 1
      %v566 = vsel %vm494, %v561, %v565
      %v568 = vshrl.u32 %v436, 16
      %v570 = vshll.u32 %v436, 16
      %v572 = vrot.slane %v570, 1
      %v573 = vor.u32 %v568, %v572
      %v575 = vshll.u32 %v484, 16
      %v577 = vrot.slane %v575, 1
      %v578 = vsel %vm494, %v573, %v577
      %v580 = vshrl.u32 %v437, 16
      %v582 = vshll.u32 %v437, 16
      %v584 = vrot.slane %v582, 1
      %v585 = vor.u32 %v580, %v584
      %v587 = vshll.u32 %v485, 16
      %v589 = vrot.slane %v587, 1
      %v590 = vsel %vm494, %v585, %v589
      %v592 = vshrl.u32 %v438, 16
      %v594 = vshll.u32 %v438, 16
      %v596 = vrot.slane %v594, 1
      %v597 = vor.u32 %v592, %v596
      %v599 = vshll.u32 %v486, 16
      %v601 = vrot.slane %v599, 1
      %v602 = vsel %vm494, %v597, %v601
      %v604 = vshrl.u32 %v439, 16
      %v606 = vshll.u32 %v439, 16
      %v608 = vrot.slane %v606, 1
      %v609 = vor.u32 %v604, %v608
      %v611 = vshll.u32 %v487, 16
      %v613 = vrot.slane %v611, 1
      %v614 = vsel %vm494, %v609, %v613
      %v616 = vshrl.u32 %v440, 16
      %v618 = vshll.u32 %v440, 16
      %v620 = vrot.slane %v618, 1
      %v621 = vor.u32 %v616, %v620
      %v623 = vshll.u32 %v488, 16
      %v625 = vrot.slane %v623, 1
      %v626 = vsel %vm494, %v621, %v625
      %v628 = vshrl.u32 %v441, 16
      %v630 = vshll.u32 %v441, 16
      %v632 = vrot.slane %v630, 1
      %v633 = vor.u32 %v628, %v632
      %v635 = vshll.u32 %v489, 16
      %v637 = vrot.slane %v635, 1
      %v638 = vsel %vm494, %v633, %v637
      %v640 = vshrl.u32 %v442, 16
      %v642 = vshll.u32 %v442, 16
      %v644 = vrot.slane %v642, 1
      %v645 = vor.u32 %v640, %v644
      %v647 = vshll.u32 %v490, 16
      %v649 = vrot.slane %v647, 1
      %v650 = vsel %vm494, %v645, %v649
      %v652 = vshrl.u32 %v443, 16
      %v654 = vshll.u32 %v443, 16
      %v656 = vrot.slane %v654, 1
      %v657 = vor.u32 %v652, %v656
      %v659 = vshll.u32 %v491, 16
      %v661 = vrot.slane %v659, 1
      %v662 = vsel %vm494, %v657, %v661
      %v664 = vshrl.u32 %v444, 16
      %v666 = vshll.u32 %v444, 16
      %v668 = vrot.slane %v666, 1
      %v669 = vor.u32 %v664, %v668
      %v671 = vshll.u32 %v492, 16
      %v673 = vrot.slane %v671, 1
      %v674 = vsel %vm494, %v669, %v673
      %v676 = vshrl.u32 %v445, 16
      %v678 = vshll.u32 %v445, 16
      %v680 = vrot.slane %v678, 1
      %v681 = vor.u32 %v676, %v680
      %v683 = vshll.u32 %v493, 16
      %v685 = vrot.slane %v683, 1
      %v686 = vsel %vm494, %v681, %v685
      %687 = vrot.lane.b32.xlu0 %v506, 3
      %v688 = vpop.permute.xlu0 %687
      %689 = vrot.lane.b32.xlu0 %v518, 3
      %v690 = vpop.permute.xlu0 %689
      %691 = vrot.lane.b32.xlu0 %v530, 3
      %v692 = vpop.permute.xlu0 %691
      %693 = vrot.lane.b32.xlu0 %v542, 3
      %v694 = vpop.permute.xlu0 %693
      %695 = vrot.lane.b32.xlu0 %v554, 3
      %v696 = vpop.permute.xlu0 %695
      %697 = vrot.lane.b32.xlu0 %v566, 3
      %v698 = vpop.permute.xlu0 %697
      %699 = vrot.lane.b32.xlu0 %v578, 3
      %v700 = vpop.permute.xlu0 %699
      %701 = vrot.lane.b32.xlu0 %v590, 3
      %v702 = vpop.permute.xlu0 %701
      %703 = vrot.lane.b32.xlu0 %v602, 3
      %v704 = vpop.permute.xlu0 %703
      %705 = vrot.lane.b32.xlu0 %v614, 3
      %v706 = vpop.permute.xlu0 %705
      %707 = vrot.lane.b32.xlu0 %v626, 3
      %v708 = vpop.permute.xlu0 %707
      %709 = vrot.lane.b32.xlu0 %v638, 3
      %v710 = vpop.permute.xlu0 %709
      %711 = vrot.lane.b32.xlu0 %v650, 3
      %v712 = vpop.permute.xlu0 %711
      %713 = vrot.lane.b32.xlu0 %v662, 3
      %v714 = vpop.permute.xlu0 %713
      %715 = vrot.lane.b32.xlu0 %v674, 3
      %v716 = vpop.permute.xlu0 %715
      %717 = vrot.lane.b32.xlu0 %v686, 3
      %v718 = vpop.permute.xlu0 %717
      %v735 = vunpack.c.l.b16 %v220
      %v736 = vunpack.c.l.b16 %v221
      %v737 = vunpack.c.l.b16 %v222
      %v738 = vunpack.c.l.b16 %v223
      %v739 = vunpack.c.l.b16 %v224
      %v740 = vunpack.c.l.b16 %v225
      %v741 = vunpack.c.l.b16 %v226
      %v742 = vunpack.c.l.b16 %v227
      %v743 = vunpack.c.l.b16 %v228
      %v744 = vunpack.c.l.b16 %v229
      %v745 = vunpack.c.l.b16 %v230
      %v746 = vunpack.c.l.b16 %v231
      %v747 = vunpack.c.l.b16 %v232
      %v748 = vunpack.c.l.b16 %v233
      %v749 = vunpack.c.l.b16 %v234
      %v750 = vunpack.c.l.b16 %v235
      %v751 = vpack.c.b16 %v399, %v735
      %v752 = vpack.c.b16 %v401, %v736
      %v753 = vpack.c.b16 %v403, %v737
      %v754 = vpack.c.b16 %v405, %v738
      %v755 = vpack.c.b16 %v407, %v739
      %v756 = vpack.c.b16 %v409, %v740
      %v757 = vpack.c.b16 %v411, %v741
      %v758 = vpack.c.b16 %v413, %v742
      %v759 = vpack.c.b16 %v415, %v743
      %v760 = vpack.c.b16 %v417, %v744
      %v761 = vpack.c.b16 %v419, %v745
      %v762 = vpack.c.b16 %v421, %v746
      %v763 = vpack.c.b16 %v423, %v747
      %v764 = vpack.c.b16 %v425, %v748
      %v765 = vpack.c.b16 %v427, %v749
      %v766 = vpack.c.b16 %v429, %v750
      %vm767 = vcmask 1046528
      %v768 = vrot.slane %v751, 1
      %v769 = vrot.slane %v478, 1
      %v770 = vsel %vm767, %v768, %v769
      %v771 = vrot.slane %v752, 1
      %v772 = vrot.slane %v479, 1
      %v773 = vsel %vm767, %v771, %v772
      %v774 = vrot.slane %v753, 1
      %v775 = vrot.slane %v480, 1
      %v776 = vsel %vm767, %v774, %v775
      %v777 = vrot.slane %v754, 1
      %v778 = vrot.slane %v481, 1
      %v779 = vsel %vm767, %v777, %v778
      %v780 = vrot.slane %v755, 1
      %v781 = vrot.slane %v482, 1
      %v782 = vsel %vm767, %v780, %v781
      %v783 = vrot.slane %v756, 1
      %v784 = vrot.slane %v483, 1
      %v785 = vsel %vm767, %v783, %v784
      %v786 = vrot.slane %v757, 1
      %v787 = vrot.slane %v484, 1
      %v788 = vsel %vm767, %v786, %v787
      %v789 = vrot.slane %v758, 1
      %v790 = vrot.slane %v485, 1
      %v791 = vsel %vm767, %v789, %v790
      %v792 = vrot.slane %v759, 1
      %v793 = vrot.slane %v486, 1
      %v794 = vsel %vm767, %v792, %v793
      %v795 = vrot.slane %v760, 1
      %v796 = vrot.slane %v487, 1
      %v797 = vsel %vm767, %v795, %v796
      %v798 = vrot.slane %v761, 1
      %v799 = vrot.slane %v488, 1
      %v800 = vsel %vm767, %v798, %v799
      %v801 = vrot.slane %v762, 1
      %v802 = vrot.slane %v489, 1
      %v803 = vsel %vm767, %v801, %v802
      %v804 = vrot.slane %v763, 1
      %v805 = vrot.slane %v490, 1
      %v806 = vsel %vm767, %v804, %v805
      %v807 = vrot.slane %v764, 1
      %v808 = vrot.slane %v491, 1
      %v809 = vsel %vm767, %v807, %v808
      %v810 = vrot.slane %v765, 1
      %v811 = vrot.slane %v492, 1
      %v812 = vsel %vm767, %v810, %v811
      %v813 = vrot.slane %v766, 1
      %v814 = vrot.slane %v493, 1
      %v815 = vsel %vm767, %v813, %v814
      %816 = vrot.lane.b32.xlu0 %v770, 6
      %v817 = vpop.permute.xlu0 %816
      %818 = vrot.lane.b32.xlu0 %v773, 6
      %v819 = vpop.permute.xlu0 %818
      %820 = vrot.lane.b32.xlu0 %v776, 6
      %v821 = vpop.permute.xlu0 %820
      %822 = vrot.lane.b32.xlu0 %v779, 6
      %v823 = vpop.permute.xlu0 %822
      %824 = vrot.lane.b32.xlu0 %v782, 6
      %v825 = vpop.permute.xlu0 %824
      %826 = vrot.lane.b32.xlu0 %v785, 6
      %v827 = vpop.permute.xlu0 %826
      %828 = vrot.lane.b32.xlu0 %v788, 6
      %v829 = vpop.permute.xlu0 %828
      %830 = vrot.lane.b32.xlu0 %v791, 6
      %v831 = vpop.permute.xlu0 %830
      %832 = vrot.lane.b32.xlu0 %v794, 6
      %v833 = vpop.permute.xlu0 %832
      %834 = vrot.lane.b32.xlu0 %v797, 6
      %v835 = vpop.permute.xlu0 %834
      %836 = vrot.lane.b32.xlu0 %v800, 6
      %v837 = vpop.permute.xlu0 %836
      %838 = vrot.lane.b32.xlu0 %v803, 6
      %v839 = vpop.permute.xlu0 %838
      %840 = vrot.lane.b32.xlu0 %v806, 6
      %v841 = vpop.permute.xlu0 %840
      %842 = vrot.lane.b32.xlu0 %v809, 6
      %v843 = vpop.permute.xlu0 %842
      %844 = vrot.lane.b32.xlu0 %v812, 6
      %v845 = vpop.permute.xlu0 %844
      %846 = vrot.lane.b32.xlu0 %v815, 6
      %v847 = vpop.permute.xlu0 %846
      %v880 = vunpack.c.l.b16 %v237
      %v881 = vunpack.c.l.b16 %v238
      %v882 = vunpack.c.l.b16 %v239
      %v883 = vunpack.c.l.b16 %v240
      %v884 = vunpack.c.l.b16 %v241
      %v885 = vunpack.c.l.b16 %v242
      %v886 = vunpack.c.l.b16 %v243
      %v887 = vunpack.c.l.b16 %v244
      %v888 = vunpack.c.l.b16 %v245
      %v889 = vunpack.c.l.b16 %v246
      %v890 = vunpack.c.l.b16 %v247
      %v891 = vunpack.c.l.b16 %v248
      %v892 = vunpack.c.l.b16 %v249
      %v893 = vunpack.c.l.b16 %v250
      %v894 = vunpack.c.l.b16 %v251
      %v895 = vunpack.c.l.b16 %v252
      %v896 = vunpack.c.l.b16 %v253
      %v897 = vunpack.c.l.b16 %v254
      %v898 = vunpack.c.l.b16 %v255
      %v899 = vunpack.c.l.b16 %v256
      %v900 = vunpack.c.l.b16 %v257
      %v901 = vunpack.c.l.b16 %v258
      %v902 = vunpack.c.l.b16 %v259
      %v903 = vunpack.c.l.b16 %v260
      %v904 = vunpack.c.l.b16 %v261
      %v905 = vunpack.c.l.b16 %v262
      %v906 = vunpack.c.l.b16 %v263
      %v907 = vunpack.c.l.b16 %v264
      %v908 = vunpack.c.l.b16 %v265
      %v909 = vunpack.c.l.b16 %v266
      %v910 = vunpack.c.l.b16 %v267
      %v911 = vunpack.c.l.b16 %v268
      %v912 = vpack.c.b16 %v881, %v880
      %v913 = vpack.c.b16 %v883, %v882
      %v914 = vpack.c.b16 %v885, %v884
      %v915 = vpack.c.b16 %v887, %v886
      %v916 = vpack.c.b16 %v889, %v888
      %v917 = vpack.c.b16 %v891, %v890
      %v918 = vpack.c.b16 %v893, %v892
      %v919 = vpack.c.b16 %v895, %v894
      %v920 = vpack.c.b16 %v897, %v896
      %v921 = vpack.c.b16 %v899, %v898
      %v922 = vpack.c.b16 %v901, %v900
      %v923 = vpack.c.b16 %v903, %v902
      %v924 = vpack.c.b16 %v905, %v904
      %v925 = vpack.c.b16 %v907, %v906
      %v926 = vpack.c.b16 %v909, %v908
      %v927 = vpack.c.b16 %v911, %v910
      %928 = vrot.lane.b32.xlu0 %v912, 9
      %v929 = vpop.permute.xlu0 %928
      %930 = vrot.lane.b32.xlu0 %v913, 9
      %v931 = vpop.permute.xlu0 %930
      %932 = vrot.lane.b32.xlu0 %v914, 9
      %v933 = vpop.permute.xlu0 %932
      %934 = vrot.lane.b32.xlu0 %v915, 9
      %v935 = vpop.permute.xlu0 %934
      %936 = vrot.lane.b32.xlu0 %v916, 9
      %v937 = vpop.permute.xlu0 %936
      %938 = vrot.lane.b32.xlu0 %v917, 9
      %v939 = vpop.permute.xlu0 %938
      %940 = vrot.lane.b32.xlu0 %v918, 9
      %v941 = vpop.permute.xlu0 %940
      %942 = vrot.lane.b32.xlu0 %v919, 9
      %v943 = vpop.permute.xlu0 %942
      %944 = vrot.lane.b32.xlu0 %v920, 9
      %v945 = vpop.permute.xlu0 %944
      %946 = vrot.lane.b32.xlu0 %v921, 9
      %v947 = vpop.permute.xlu0 %946
      %948 = vrot.lane.b32.xlu0 %v922, 9
      %v949 = vpop.permute.xlu0 %948
      %950 = vrot.lane.b32.xlu0 %v923, 9
      %v951 = vpop.permute.xlu0 %950
      %952 = vrot.lane.b32.xlu0 %v924, 9
      %v953 = vpop.permute.xlu0 %952
      %954 = vrot.lane.b32.xlu0 %v925, 9
      %v955 = vpop.permute.xlu0 %954
      %956 = vrot.lane.b32.xlu0 %v926, 9
      %v957 = vpop.permute.xlu0 %956
      %958 = vrot.lane.b32.xlu0 %v927, 9
      %v959 = vpop.permute.xlu0 %958
      %v976 = vunpack.c.l.b16 %v269
      %v977 = vunpack.c.l.b16 %v270
      %v978 = vunpack.c.l.b16 %v271
      %v979 = vunpack.c.l.b16 %v272
      %v980 = vunpack.c.l.b16 %v273
      %v981 = vunpack.c.l.b16 %v274
      %v982 = vunpack.c.l.b16 %v275
      %v983 = vunpack.c.l.b16 %v276
      %v984 = vunpack.c.l.b16 %v277
      %v985 = vunpack.c.l.b16 %v278
      %v986 = vunpack.c.l.b16 %v279
      %v987 = vunpack.c.l.b16 %v280
      %v988 = vunpack.c.l.b16 %v281
      %v989 = vunpack.c.l.b16 %v282
      %v990 = vunpack.c.l.b16 %v283
      %v991 = vunpack.c.l.b16 %v284
      %v992 = vpack.c.b16 %v976, %v976
      %v993 = vpack.c.b16 %v977, %v977
      %v994 = vpack.c.b16 %v978, %v978
      %v995 = vpack.c.b16 %v979, %v979
      %v996 = vpack.c.b16 %v980, %v980
      %v997 = vpack.c.b16 %v981, %v981
      %v998 = vpack.c.b16 %v982, %v982
      %v999 = vpack.c.b16 %v983, %v983
      %v1000 = vpack.c.b16 %v984, %v984
      %v1001 = vpack.c.b16 %v985, %v985
      %v1002 = vpack.c.b16 %v986, %v986
      %v1003 = vpack.c.b16 %v987, %v987
      %v1004 = vpack.c.b16 %v988, %v988
      %v1005 = vpack.c.b16 %v989, %v989
      %v1006 = vpack.c.b16 %v990, %v990
      %v1007 = vpack.c.b16 %v991, %v991
      %v1009 = vshrl.u32 %v912, 16
      %v1011 = vshll.u32 %v912, 16
      %v1013 = vrot.slane %v1011, 1
      %v1014 = vor.u32 %v1009, %v1013
      %v1016 = vshll.u32 %v992, 16
      %v1018 = vrot.slane %v1016, 1
      %v1019 = vsel %vm494, %v1014, %v1018
      %v1021 = vshrl.u32 %v913, 16
      %v1023 = vshll.u32 %v913, 16
      %v1025 = vrot.slane %v1023, 1
      %v1026 = vor.u32 %v1021, %v1025
      %v1028 = vshll.u32 %v993, 16
      %v1030 = vrot.slane %v1028, 1
      %v1031 = vsel %vm494, %v1026, %v1030
      %v1033 = vshrl.u32 %v914, 16
      %v1035 = vshll.u32 %v914, 16
      %v1037 = vrot.slane %v1035, 1
      %v1038 = vor.u32 %v1033, %v1037
      %v1040 = vshll.u32 %v994, 16
      %v1042 = vrot.slane %v1040, 1
      %v1043 = vsel %vm494, %v1038, %v1042
      %v1045 = vshrl.u32 %v915, 16
      %v1047 = vshll.u32 %v915, 16
      %v1049 = vrot.slane %v1047, 1
      %v1050 = vor.u32 %v1045, %v1049
      %v1052 = vshll.u32 %v995, 16
      %v1054 = vrot.slane %v1052, 1
      %v1055 = vsel %vm494, %v1050, %v1054
      %v1057 = vshrl.u32 %v916, 16
      %v1059 = vshll.u32 %v916, 16
      %v1061 = vrot.slane %v1059, 1
      %v1062 = vor.u32 %v1057, %v1061
      %v1064 = vshll.u32 %v996, 16
      %v1066 = vrot.slane %v1064, 1
      %v1067 = vsel %vm494, %v1062, %v1066
      %v1069 = vshrl.u32 %v917, 16
      %v1071 = vshll.u32 %v917, 16
      %v1073 = vrot.slane %v1071, 1
      %v1074 = vor.u32 %v1069, %v1073
      %v1076 = vshll.u32 %v997, 16
      %v1078 = vrot.slane %v1076, 1
      %v1079 = vsel %vm494, %v1074, %v1078
      %v1081 = vshrl.u32 %v918, 16
      %v1083 = vshll.u32 %v918, 16
      %v1085 = vrot.slane %v1083, 1
      %v1086 = vor.u32 %v1081, %v1085
      %v1088 = vshll.u32 %v998, 16
      %v1090 = vrot.slane %v1088, 1
      %v1091 = vsel %vm494, %v1086, %v1090
      %v1093 = vshrl.u32 %v919, 16
      %v1095 = vshll.u32 %v919, 16
      %v1097 = vrot.slane %v1095, 1
      %v1098 = vor.u32 %v1093, %v1097
      %v1100 = vshll.u32 %v999, 16
      %v1102 = vrot.slane %v1100, 1
      %v1103 = vsel %vm494, %v1098, %v1102
      %v1105 = vshrl.u32 %v920, 16
      %v1107 = vshll.u32 %v920, 16
      %v1109 = vrot.slane %v1107, 1
      %v1110 = vor.u32 %v1105, %v1109
      %v1112 = vshll.u32 %v1000, 16
      %v1114 = vrot.slane %v1112, 1
      %v1115 = vsel %vm494, %v1110, %v1114
      %v1117 = vshrl.u32 %v921, 16
      %v1119 = vshll.u32 %v921, 16
      %v1121 = vrot.slane %v1119, 1
      %v1122 = vor.u32 %v1117, %v1121
      %v1124 = vshll.u32 %v1001, 16
      %v1126 = vrot.slane %v1124, 1
      %v1127 = vsel %vm494, %v1122, %v1126
      %v1129 = vshrl.u32 %v922, 16
      %v1131 = vshll.u32 %v922, 16
      %v1133 = vrot.slane %v1131, 1
      %v1134 = vor.u32 %v1129, %v1133
      %v1136 = vshll.u32 %v1002, 16
      %v1138 = vrot.slane %v1136, 1
      %v1139 = vsel %vm494, %v1134, %v1138
      %v1141 = vshrl.u32 %v923, 16
      %v1143 = vshll.u32 %v923, 16
      %v1145 = vrot.slane %v1143, 1
      %v1146 = vor.u32 %v1141, %v1145
      %v1148 = vshll.u32 %v1003, 16
      %v1150 = vrot.slane %v1148, 1
      %v1151 = vsel %vm494, %v1146, %v1150
      %v1153 = vshrl.u32 %v924, 16
      %v1155 = vshll.u32 %v924, 16
      %v1157 = vrot.slane %v1155, 1
      %v1158 = vor.u32 %v1153, %v1157
      %v1160 = vshll.u32 %v1004, 16
      %v1162 = vrot.slane %v1160, 1
      %v1163 = vsel %vm494, %v1158, %v1162
      %v1165 = vshrl.u32 %v925, 16
      %v1167 = vshll.u32 %v925, 16
      %v1169 = vrot.slane %v1167, 1
      %v1170 = vor.u32 %v1165, %v1169
      %v1172 = vshll.u32 %v1005, 16
      %v1174 = vrot.slane %v1172, 1
      %v1175 = vsel %vm494, %v1170, %v1174
      %v1177 = vshrl.u32 %v926, 16
      %v1179 = vshll.u32 %v926, 16
      %v1181 = vrot.slane %v1179, 1
      %v1182 = vor.u32 %v1177, %v1181
      %v1184 = vshll.u32 %v1006, 16
      %v1186 = vrot.slane %v1184, 1
      %v1187 = vsel %vm494, %v1182, %v1186
      %v1189 = vshrl.u32 %v927, 16
      %v1191 = vshll.u32 %v927, 16
      %v1193 = vrot.slane %v1191, 1
      %v1194 = vor.u32 %v1189, %v1193
      %v1196 = vshll.u32 %v1007, 16
      %v1198 = vrot.slane %v1196, 1
      %v1199 = vsel %vm494, %v1194, %v1198
      %1200 = vrot.lane.b32.xlu0 %v1019, 12
      %v1201 = vpop.permute.xlu0 %1200
      %1202 = vrot.lane.b32.xlu0 %v1031, 12
      %v1203 = vpop.permute.xlu0 %1202
      %1204 = vrot.lane.b32.xlu0 %v1043, 12
      %v1205 = vpop.permute.xlu0 %1204
      %1206 = vrot.lane.b32.xlu0 %v1055, 12
      %v1207 = vpop.permute.xlu0 %1206
      %1208 = vrot.lane.b32.xlu0 %v1067, 12
      %v1209 = vpop.permute.xlu0 %1208
      %1210 = vrot.lane.b32.xlu0 %v1079, 12
      %v1211 = vpop.permute.xlu0 %1210
      %1212 = vrot.lane.b32.xlu0 %v1091, 12
      %v1213 = vpop.permute.xlu0 %1212
      %1214 = vrot.lane.b32.xlu0 %v1103, 12
      %v1215 = vpop.permute.xlu0 %1214
      %1216 = vrot.lane.b32.xlu0 %v1115, 12
      %v1217 = vpop.permute.xlu0 %1216
      %1218 = vrot.lane.b32.xlu0 %v1127, 12
      %v1219 = vpop.permute.xlu0 %1218
      %1220 = vrot.lane.b32.xlu0 %v1139, 12
      %v1221 = vpop.permute.xlu0 %1220
      %1222 = vrot.lane.b32.xlu0 %v1151, 12
      %v1223 = vpop.permute.xlu0 %1222
      %1224 = vrot.lane.b32.xlu0 %v1163, 12
      %v1225 = vpop.permute.xlu0 %1224
      %1226 = vrot.lane.b32.xlu0 %v1175, 12
      %v1227 = vpop.permute.xlu0 %1226
      %1228 = vrot.lane.b32.xlu0 %v1187, 12
      %v1229 = vpop.permute.xlu0 %1228
      %1230 = vrot.lane.b32.xlu0 %v1199, 12
      %v1231 = vpop.permute.xlu0 %1230
      %v1248 = vunpack.c.l.b16 %v285
      %v1249 = vunpack.c.l.b16 %v286
      %v1250 = vunpack.c.l.b16 %v287
      %v1251 = vunpack.c.l.b16 %v288
      %v1252 = vunpack.c.l.b16 %v289
      %v1253 = vunpack.c.l.b16 %v290
      %v1254 = vunpack.c.l.b16 %v291
      %v1255 = vunpack.c.l.b16 %v292
      %v1256 = vunpack.c.l.b16 %v293
      %v1257 = vunpack.c.l.b16 %v294
      %v1258 = vunpack.c.l.b16 %v295
      %v1259 = vunpack.c.l.b16 %v296
      %v1260 = vunpack.c.l.b16 %v297
      %v1261 = vunpack.c.l.b16 %v298
      %v1262 = vunpack.c.l.b16 %v299
      %v1263 = vunpack.c.l.b16 %v300
      %v1264 = vpack.c.b16 %v881, %v1248
      %v1265 = vpack.c.b16 %v883, %v1249
      %v1266 = vpack.c.b16 %v885, %v1250
      %v1267 = vpack.c.b16 %v887, %v1251
      %v1268 = vpack.c.b16 %v889, %v1252
      %v1269 = vpack.c.b16 %v891, %v1253
      %v1270 = vpack.c.b16 %v893, %v1254
      %v1271 = vpack.c.b16 %v895, %v1255
      %v1272 = vpack.c.b16 %v897, %v1256
      %v1273 = vpack.c.b16 %v899, %v1257
      %v1274 = vpack.c.b16 %v901, %v1258
      %v1275 = vpack.c.b16 %v903, %v1259
      %v1276 = vpack.c.b16 %v905, %v1260
      %v1277 = vpack.c.b16 %v907, %v1261
      %v1278 = vpack.c.b16 %v909, %v1262
      %v1279 = vpack.c.b16 %v911, %v1263
      %v1280 = vrot.slane %v1264, 1
      %v1281 = vrot.slane %v992, 1
      %v1282 = vsel %vm767, %v1280, %v1281
      %v1283 = vrot.slane %v1265, 1
      %v1284 = vrot.slane %v993, 1
      %v1285 = vsel %vm767, %v1283, %v1284
      %v1286 = vrot.slane %v1266, 1
      %v1287 = vrot.slane %v994, 1
      %v1288 = vsel %vm767, %v1286, %v1287
      %v1289 = vrot.slane %v1267, 1
      %v1290 = vrot.slane %v995, 1
      %v1291 = vsel %vm767, %v1289, %v1290
      %v1292 = vrot.slane %v1268, 1
      %v1293 = vrot.slane %v996, 1
      %v1294 = vsel %vm767, %v1292, %v1293
      %v1295 = vrot.slane %v1269, 1
      %v1296 = vrot.slane %v997, 1
      %v1297 = vsel %vm767, %v1295, %v1296
      %v1298 = vrot.slane %v1270, 1
      %v1299 = vrot.slane %v998, 1
      %v1300 = vsel %vm767, %v1298, %v1299
      %v1301 = vrot.slane %v1271, 1
      %v1302 = vrot.slane %v999, 1
      %v1303 = vsel %vm767, %v1301, %v1302
      %v1304 = vrot.slane %v1272, 1
      %v1305 = vrot.slane %v1000, 1
      %v1306 = vsel %vm767, %v1304, %v1305
      %v1307 = vrot.slane %v1273, 1
      %v1308 = vrot.slane %v1001, 1
      %v1309 = vsel %vm767, %v1307, %v1308
      %v1310 = vrot.slane %v1274, 1
      %v1311 = vrot.slane %v1002, 1
      %v1312 = vsel %vm767, %v1310, %v1311
      %v1313 = vrot.slane %v1275, 1
      %v1314 = vrot.slane %v1003, 1
      %v1315 = vsel %vm767, %v1313, %v1314
      %v1316 = vrot.slane %v1276, 1
      %v1317 = vrot.slane %v1004, 1
      %v1318 = vsel %vm767, %v1316, %v1317
      %v1319 = vrot.slane %v1277, 1
      %v1320 = vrot.slane %v1005, 1
      %v1321 = vsel %vm767, %v1319, %v1320
      %v1322 = vrot.slane %v1278, 1
      %v1323 = vrot.slane %v1006, 1
      %v1324 = vsel %vm767, %v1322, %v1323
      %v1325 = vrot.slane %v1279, 1
      %v1326 = vrot.slane %v1007, 1
      %v1327 = vsel %vm767, %v1325, %v1326
      %1328 = vrot.lane.b32.xlu0 %v1282, 15
      %v1329 = vpop.permute.xlu0 %1328
      %1330 = vrot.lane.b32.xlu0 %v1285, 15
      %v1331 = vpop.permute.xlu0 %1330
      %1332 = vrot.lane.b32.xlu0 %v1288, 15
      %v1333 = vpop.permute.xlu0 %1332
      %1334 = vrot.lane.b32.xlu0 %v1291, 15
      %v1335 = vpop.permute.xlu0 %1334
      %1336 = vrot.lane.b32.xlu0 %v1294, 15
      %v1337 = vpop.permute.xlu0 %1336
      %1338 = vrot.lane.b32.xlu0 %v1297, 15
      %v1339 = vpop.permute.xlu0 %1338
      %1340 = vrot.lane.b32.xlu0 %v1300, 15
      %v1341 = vpop.permute.xlu0 %1340
      %1342 = vrot.lane.b32.xlu0 %v1303, 15
      %v1343 = vpop.permute.xlu0 %1342
      %1344 = vrot.lane.b32.xlu0 %v1306, 15
      %v1345 = vpop.permute.xlu0 %1344
      %1346 = vrot.lane.b32.xlu0 %v1309, 15
      %v1347 = vpop.permute.xlu0 %1346
      %1348 = vrot.lane.b32.xlu0 %v1312, 15
      %v1349 = vpop.permute.xlu0 %1348
      %1350 = vrot.lane.b32.xlu0 %v1315, 15
      %v1351 = vpop.permute.xlu0 %1350
      %1352 = vrot.lane.b32.xlu0 %v1318, 15
      %v1353 = vpop.permute.xlu0 %1352
      %1354 = vrot.lane.b32.xlu0 %v1321, 15
      %v1355 = vpop.permute.xlu0 %1354
      %1356 = vrot.lane.b32.xlu0 %v1324, 15
      %v1357 = vpop.permute.xlu0 %1356
      %1358 = vrot.lane.b32.xlu0 %v1327, 15
      %v1359 = vpop.permute.xlu0 %1358
      %v1392 = vunpack.c.l.b16 %v302
      %v1393 = vunpack.c.l.b16 %v303
      %v1394 = vunpack.c.l.b16 %v304
      %v1395 = vunpack.c.l.b16 %v305
      %v1396 = vunpack.c.l.b16 %v306
      %v1397 = vunpack.c.l.b16 %v307
      %v1398 = vunpack.c.l.b16 %v308
      %v1399 = vunpack.c.l.b16 %v309
      %v1400 = vunpack.c.l.b16 %v310
      %v1401 = vunpack.c.l.b16 %v311
      %v1402 = vunpack.c.l.b16 %v312
      %v1403 = vunpack.c.l.b16 %v313
      %v1404 = vunpack.c.l.b16 %v314
      %v1405 = vunpack.c.l.b16 %v315
      %v1406 = vunpack.c.l.b16 %v316
      %v1407 = vunpack.c.l.b16 %v317
      %v1408 = vunpack.c.l.b16 %v318
      %v1409 = vunpack.c.l.b16 %v319
      %v1410 = vunpack.c.l.b16 %v320
      %v1411 = vunpack.c.l.b16 %v321
      %v1412 = vunpack.c.l.b16 %v322
      %v1413 = vunpack.c.l.b16 %v323
      %v1414 = vunpack.c.l.b16 %v324
      %v1415 = vunpack.c.l.b16 %v325
      %v1416 = vunpack.c.l.b16 %v326
      %v1417 = vunpack.c.l.b16 %v327
      %v1418 = vunpack.c.l.b16 %v328
      %v1419 = vunpack.c.l.b16 %v329
      %v1420 = vunpack.c.l.b16 %v330
      %v1421 = vunpack.c.l.b16 %v331
      %v1422 = vunpack.c.l.b16 %v332
      %v1423 = vunpack.c.l.b16 %v333
      %v1424 = vpack.c.b16 %v1393, %v1392
      %v1425 = vpack.c.b16 %v1395, %v1394
      %v1426 = vpack.c.b16 %v1397, %v1396
      %v1427 = vpack.c.b16 %v1399, %v1398
      %v1428 = vpack.c.b16 %v1401, %v1400
      %v1429 = vpack.c.b16 %v1403, %v1402
      %v1430 = vpack.c.b16 %v1405, %v1404
      %v1431 = vpack.c.b16 %v1407, %v1406
      %v1432 = vpack.c.b16 %v1409, %v1408
      %v1433 = vpack.c.b16 %v1411, %v1410
      %v1434 = vpack.c.b16 %v1413, %v1412
      %v1435 = vpack.c.b16 %v1415, %v1414
      %v1436 = vpack.c.b16 %v1417, %v1416
      %v1437 = vpack.c.b16 %v1419, %v1418
      %v1438 = vpack.c.b16 %v1421, %v1420
      %v1439 = vpack.c.b16 %v1423, %v1422
      %1440 = vrot.lane.b32.xlu0 %v1424, 18
      %v1441 = vpop.permute.xlu0 %1440
      %1442 = vrot.lane.b32.xlu0 %v1425, 18
      %v1443 = vpop.permute.xlu0 %1442
      %1444 = vrot.lane.b32.xlu0 %v1426, 18
      %v1445 = vpop.permute.xlu0 %1444
      %1446 = vrot.lane.b32.xlu0 %v1427, 18
      %v1447 = vpop.permute.xlu0 %1446
      %1448 = vrot.lane.b32.xlu0 %v1428, 18
      %v1449 = vpop.permute.xlu0 %1448
      %1450 = vrot.lane.b32.xlu0 %v1429, 18
      %v1451 = vpop.permute.xlu0 %1450
      %1452 = vrot.lane.b32.xlu0 %v1430, 18
      %v1453 = vpop.permute.xlu0 %1452
      %1454 = vrot.lane.b32.xlu0 %v1431, 18
      %v1455 = vpop.permute.xlu0 %1454
      %1456 = vrot.lane.b32.xlu0 %v1432, 18
      %v1457 = vpop.permute.xlu0 %1456
      %1458 = vrot.lane.b32.xlu0 %v1433, 18
      %v1459 = vpop.permute.xlu0 %1458
      %1460 = vrot.lane.b32.xlu0 %v1434, 18
      %v1461 = vpop.permute.xlu0 %1460
      %1462 = vrot.lane.b32.xlu0 %v1435, 18
      %v1463 = vpop.permute.xlu0 %1462
      %1464 = vrot.lane.b32.xlu0 %v1436, 18
      %v1465 = vpop.permute.xlu0 %1464
      %1466 = vrot.lane.b32.xlu0 %v1437, 18
      %v1467 = vpop.permute.xlu0 %1466
      %1468 = vrot.lane.b32.xlu0 %v1438, 18
      %v1469 = vpop.permute.xlu0 %1468
      %1470 = vrot.lane.b32.xlu0 %v1439, 18
      %v1471 = vpop.permute.xlu0 %1470
      %v1488 = vunpack.c.l.b16 %v334
      %v1489 = vunpack.c.l.b16 %v335
      %v1490 = vunpack.c.l.b16 %v336
      %v1491 = vunpack.c.l.b16 %v337
      %v1492 = vunpack.c.l.b16 %v338
      %v1493 = vunpack.c.l.b16 %v339
      %v1494 = vunpack.c.l.b16 %v340
      %v1495 = vunpack.c.l.b16 %v341
      %v1496 = vunpack.c.l.b16 %v342
      %v1497 = vunpack.c.l.b16 %v343
      %v1498 = vunpack.c.l.b16 %v344
      %v1499 = vunpack.c.l.b16 %v345
      %v1500 = vunpack.c.l.b16 %v346
      %v1501 = vunpack.c.l.b16 %v347
      %v1502 = vunpack.c.l.b16 %v348
      %v1503 = vunpack.c.l.b16 %v349
      %v1504 = vpack.c.b16 %v1488, %v1488
      %v1505 = vpack.c.b16 %v1489, %v1489
      %v1506 = vpack.c.b16 %v1490, %v1490
      %v1507 = vpack.c.b16 %v1491, %v1491
      %v1508 = vpack.c.b16 %v1492, %v1492
      %v1509 = vpack.c.b16 %v1493, %v1493
      %v1510 = vpack.c.b16 %v1494, %v1494
      %v1511 = vpack.c.b16 %v1495, %v1495
      %v1512 = vpack.c.b16 %v1496, %v1496
      %v1513 = vpack.c.b16 %v1497, %v1497
      %v1514 = vpack.c.b16 %v1498, %v1498
      %v1515 = vpack.c.b16 %v1499, %v1499
      %v1516 = vpack.c.b16 %v1500, %v1500
      %v1517 = vpack.c.b16 %v1501, %v1501
      %v1518 = vpack.c.b16 %v1502, %v1502
      %v1519 = vpack.c.b16 %v1503, %v1503
      %v1521 = vshrl.u32 %v1424, 16
      %v1523 = vshll.u32 %v1424, 16
      %v1525 = vrot.slane %v1523, 1
      %v1526 = vor.u32 %v1521, %v1525
      %v1528 = vshll.u32 %v1504, 16
      %v1530 = vrot.slane %v1528, 1
      %v1531 = vsel %vm494, %v1526, %v1530
      %v1533 = vshrl.u32 %v1425, 16
      %v1535 = vshll.u32 %v1425, 16
      %v1537 = vrot.slane %v1535, 1
      %v1538 = vor.u32 %v1533, %v1537
      %v1540 = vshll.u32 %v1505, 16
      %v1542 = vrot.slane %v1540, 1
      %v1543 = vsel %vm494, %v1538, %v1542
      %v1545 = vshrl.u32 %v1426, 16
      %v1547 = vshll.u32 %v1426, 16
      %v1549 = vrot.slane %v1547, 1
      %v1550 = vor.u32 %v1545, %v1549
      %v1552 = vshll.u32 %v1506, 16
      %v1554 = vrot.slane %v1552, 1
      %v1555 = vsel %vm494, %v1550, %v1554
      %v1557 = vshrl.u32 %v1427, 16
      %v1559 = vshll.u32 %v1427, 16
      %v1561 = vrot.slane %v1559, 1
      %v1562 = vor.u32 %v1557, %v1561
      %v1564 = vshll.u32 %v1507, 16
      %v1566 = vrot.slane %v1564, 1
      %v1567 = vsel %vm494, %v1562, %v1566
      %v1569 = vshrl.u32 %v1428, 16
      %v1571 = vshll.u32 %v1428, 16
      %v1573 = vrot.slane %v1571, 1
      %v1574 = vor.u32 %v1569, %v1573
      %v1576 = vshll.u32 %v1508, 16
      %v1578 = vrot.slane %v1576, 1
      %v1579 = vsel %vm494, %v1574, %v1578
      %v1581 = vshrl.u32 %v1429, 16
      %v1583 = vshll.u32 %v1429, 16
      %v1585 = vrot.slane %v1583, 1
      %v1586 = vor.u32 %v1581, %v1585
      %v1588 = vshll.u32 %v1509, 16
      %v1590 = vrot.slane %v1588, 1
      %v1591 = vsel %vm494, %v1586, %v1590
      %v1593 = vshrl.u32 %v1430, 16
      %v1595 = vshll.u32 %v1430, 16
      %v1597 = vrot.slane %v1595, 1
      %v1598 = vor.u32 %v1593, %v1597
      %v1600 = vshll.u32 %v1510, 16
      %v1602 = vrot.slane %v1600, 1
      %v1603 = vsel %vm494, %v1598, %v1602
      %v1605 = vshrl.u32 %v1431, 16
      %v1607 = vshll.u32 %v1431, 16
      %v1609 = vrot.slane %v1607, 1
      %v1610 = vor.u32 %v1605, %v1609
      %v1612 = vshll.u32 %v1511, 16
      %v1614 = vrot.slane %v1612, 1
      %v1615 = vsel %vm494, %v1610, %v1614
      %v1617 = vshrl.u32 %v1432, 16
      %v1619 = vshll.u32 %v1432, 16
      %v1621 = vrot.slane %v1619, 1
      %v1622 = vor.u32 %v1617, %v1621
      %v1624 = vshll.u32 %v1512, 16
      %v1626 = vrot.slane %v1624, 1
      %v1627 = vsel %vm494, %v1622, %v1626
      %v1629 = vshrl.u32 %v1433, 16
      %v1631 = vshll.u32 %v1433, 16
      %v1633 = vrot.slane %v1631, 1
      %v1634 = vor.u32 %v1629, %v1633
      %v1636 = vshll.u32 %v1513, 16
      %v1638 = vrot.slane %v1636, 1
      %v1639 = vsel %vm494, %v1634, %v1638
      %v1641 = vshrl.u32 %v1434, 16
      %v1643 = vshll.u32 %v1434, 16
      %v1645 = vrot.slane %v1643, 1
      %v1646 = vor.u32 %v1641, %v1645
      %v1648 = vshll.u32 %v1514, 16
      %v1650 = vrot.slane %v1648, 1
      %v1651 = vsel %vm494, %v1646, %v1650
      %v1653 = vshrl.u32 %v1435, 16
      %v1655 = vshll.u32 %v1435, 16
      %v1657 = vrot.slane %v1655, 1
      %v1658 = vor.u32 %v1653, %v1657
      %v1660 = vshll.u32 %v1515, 16
      %v1662 = vrot.slane %v1660, 1
      %v1663 = vsel %vm494, %v1658, %v1662
      %v1665 = vshrl.u32 %v1436, 16
      %v1667 = vshll.u32 %v1436, 16
      %v1669 = vrot.slane %v1667, 1
      %v1670 = vor.u32 %v1665, %v1669
      %v1672 = vshll.u32 %v1516, 16
      %v1674 = vrot.slane %v1672, 1
      %v1675 = vsel %vm494, %v1670, %v1674
      %v1677 = vshrl.u32 %v1437, 16
      %v1679 = vshll.u32 %v1437, 16
      %v1681 = vrot.slane %v1679, 1
      %v1682 = vor.u32 %v1677, %v1681
      %v1684 = vshll.u32 %v1517, 16
      %v1686 = vrot.slane %v1684, 1
      %v1687 = vsel %vm494, %v1682, %v1686
      %v1689 = vshrl.u32 %v1438, 16
      %v1691 = vshll.u32 %v1438, 16
      %v1693 = vrot.slane %v1691, 1
      %v1694 = vor.u32 %v1689, %v1693
      %v1696 = vshll.u32 %v1518, 16
      %v1698 = vrot.slane %v1696, 1
      %v1699 = vsel %vm494, %v1694, %v1698
      %v1701 = vshrl.u32 %v1439, 16
      %v1703 = vshll.u32 %v1439, 16
      %v1705 = vrot.slane %v1703, 1
      %v1706 = vor.u32 %v1701, %v1705
      %v1708 = vshll.u32 %v1519, 16
      %v1710 = vrot.slane %v1708, 1
      %v1711 = vsel %vm494, %v1706, %v1710
      %1712 = vrot.lane.b32.xlu0 %v1531, 21
      %v1713 = vpop.permute.xlu0 %1712
      %1714 = vrot.lane.b32.xlu0 %v1543, 21
      %v1715 = vpop.permute.xlu0 %1714
      %1716 = vrot.lane.b32.xlu0 %v1555, 21
      %v1717 = vpop.permute.xlu0 %1716
      %1718 = vrot.lane.b32.xlu0 %v1567, 21
      %v1719 = vpop.permute.xlu0 %1718
      %1720 = vrot.lane.b32.xlu0 %v1579, 21
      %v1721 = vpop.permute.xlu0 %1720
      %1722 = vrot.lane.b32.xlu0 %v1591, 21
      %v1723 = vpop.permute.xlu0 %1722
      %1724 = vrot.lane.b32.xlu0 %v1603, 21
      %v1725 = vpop.permute.xlu0 %1724
      %1726 = vrot.lane.b32.xlu0 %v1615, 21
      %v1727 = vpop.permute.xlu0 %1726
      %1728 = vrot.lane.b32.xlu0 %v1627, 21
      %v1729 = vpop.permute.xlu0 %1728
      %1730 = vrot.lane.b32.xlu0 %v1639, 21
      %v1731 = vpop.permute.xlu0 %1730
      %1732 = vrot.lane.b32.xlu0 %v1651, 21
      %v1733 = vpop.permute.xlu0 %1732
      %1734 = vrot.lane.b32.xlu0 %v1663, 21
      %v1735 = vpop.permute.xlu0 %1734
      %1736 = vrot.lane.b32.xlu0 %v1675, 21
      %v1737 = vpop.permute.xlu0 %1736
      %1738 = vrot.lane.b32.xlu0 %v1687, 21
      %v1739 = vpop.permute.xlu0 %1738
      %1740 = vrot.lane.b32.xlu0 %v1699, 21
      %v1741 = vpop.permute.xlu0 %1740
      %1742 = vrot.lane.b32.xlu0 %v1711, 21
      %v1743 = vpop.permute.xlu0 %1742
      %v1760 = vunpack.c.l.b16 %v350
      %v1761 = vunpack.c.l.b16 %v351
      %v1762 = vunpack.c.l.b16 %v352
      %v1763 = vunpack.c.l.b16 %v353
      %v1764 = vunpack.c.l.b16 %v354
      %v1765 = vunpack.c.l.b16 %v355
      %v1766 = vunpack.c.l.b16 %v356
      %v1767 = vunpack.c.l.b16 %v357
      %v1768 = vunpack.c.l.b16 %v358
      %v1769 = vunpack.c.l.b16 %v359
      %v1770 = vunpack.c.l.b16 %v360
      %v1771 = vunpack.c.l.b16 %v361
      %v1772 = vunpack.c.l.b16 %v362
      %v1773 = vunpack.c.l.b16 %v363
      %v1774 = vunpack.c.l.b16 %v364
      %v1775 = vunpack.c.l.b16 %v365
      %v1776 = vpack.c.b16 %v1393, %v1760
      %v1777 = vpack.c.b16 %v1395, %v1761
      %v1778 = vpack.c.b16 %v1397, %v1762
      %v1779 = vpack.c.b16 %v1399, %v1763
      %v1780 = vpack.c.b16 %v1401, %v1764
      %v1781 = vpack.c.b16 %v1403, %v1765
      %v1782 = vpack.c.b16 %v1405, %v1766
      %v1783 = vpack.c.b16 %v1407, %v1767
      %v1784 = vpack.c.b16 %v1409, %v1768
      %v1785 = vpack.c.b16 %v1411, %v1769
      %v1786 = vpack.c.b16 %v1413, %v1770
      %v1787 = vpack.c.b16 %v1415, %v1771
      %v1788 = vpack.c.b16 %v1417, %v1772
      %v1789 = vpack.c.b16 %v1419, %v1773
      %v1790 = vpack.c.b16 %v1421, %v1774
      %v1791 = vpack.c.b16 %v1423, %v1775
      %v1792 = vrot.slane %v1776, 1
      %v1793 = vrot.slane %v1504, 1
      %v1794 = vsel %vm767, %v1792, %v1793
      %v1795 = vrot.slane %v1777, 1
      %v1796 = vrot.slane %v1505, 1
      %v1797 = vsel %vm767, %v1795, %v1796
      %v1798 = vrot.slane %v1778, 1
      %v1799 = vrot.slane %v1506, 1
      %v1800 = vsel %vm767, %v1798, %v1799
      %v1801 = vrot.slane %v1779, 1
      %v1802 = vrot.slane %v1507, 1
      %v1803 = vsel %vm767, %v1801, %v1802
      %v1804 = vrot.slane %v1780, 1
      %v1805 = vrot.slane %v1508, 1
      %v1806 = vsel %vm767, %v1804, %v1805
      %v1807 = vrot.slane %v1781, 1
      %v1808 = vrot.slane %v1509, 1
      %v1809 = vsel %vm767, %v1807, %v1808
      %v1810 = vrot.slane %v1782, 1
      %v1811 = vrot.slane %v1510, 1
      %v1812 = vsel %vm767, %v1810, %v1811
      %v1813 = vrot.slane %v1783, 1
      %v1814 = vrot.slane %v1511, 1
      %v1815 = vsel %vm767, %v1813, %v1814
      %v1816 = vrot.slane %v1784, 1
      %v1817 = vrot.slane %v1512, 1
      %v1818 = vsel %vm767, %v1816, %v1817
      %v1819 = vrot.slane %v1785, 1
      %v1820 = vrot.slane %v1513, 1
      %v1821 = vsel %vm767, %v1819, %v1820
      %v1822 = vrot.slane %v1786, 1
      %v1823 = vrot.slane %v1514, 1
      %v1824 = vsel %vm767, %v1822, %v1823
      %v1825 = vrot.slane %v1787, 1
      %v1826 = vrot.slane %v1515, 1
      %v1827 = vsel %vm767, %v1825, %v1826
      %v1828 = vrot.slane %v1788, 1
      %v1829 = vrot.slane %v1516, 1
      %v1830 = vsel %vm767, %v1828, %v1829
      %v1831 = vrot.slane %v1789, 1
      %v1832 = vrot.slane %v1517, 1
      %v1833 = vsel %vm767, %v1831, %v1832
      %v1834 = vrot.slane %v1790, 1
      %v1835 = vrot.slane %v1518, 1
      %v1836 = vsel %vm767, %v1834, %v1835
      %v1837 = vrot.slane %v1791, 1
      %v1838 = vrot.slane %v1519, 1
      %v1839 = vsel %vm767, %v1837, %v1838
      %1840 = vrot.lane.b32.xlu0 %v1794, 24
      %v1841 = vpop.permute.xlu0 %1840
      %1842 = vrot.lane.b32.xlu0 %v1797, 24
      %v1843 = vpop.permute.xlu0 %1842
      %1844 = vrot.lane.b32.xlu0 %v1800, 24
      %v1845 = vpop.permute.xlu0 %1844
      %1846 = vrot.lane.b32.xlu0 %v1803, 24
      %v1847 = vpop.permute.xlu0 %1846
      %1848 = vrot.lane.b32.xlu0 %v1806, 24
      %v1849 = vpop.permute.xlu0 %1848
      %1850 = vrot.lane.b32.xlu0 %v1809, 24
      %v1851 = vpop.permute.xlu0 %1850
      %1852 = vrot.lane.b32.xlu0 %v1812, 24
      %v1853 = vpop.permute.xlu0 %1852
      %1854 = vrot.lane.b32.xlu0 %v1815, 24
      %v1855 = vpop.permute.xlu0 %1854
      %1856 = vrot.lane.b32.xlu0 %v1818, 24
      %v1857 = vpop.permute.xlu0 %1856
      %1858 = vrot.lane.b32.xlu0 %v1821, 24
      %v1859 = vpop.permute.xlu0 %1858
      %1860 = vrot.lane.b32.xlu0 %v1824, 24
      %v1861 = vpop.permute.xlu0 %1860
      %1862 = vrot.lane.b32.xlu0 %v1827, 24
      %v1863 = vpop.permute.xlu0 %1862
      %1864 = vrot.lane.b32.xlu0 %v1830, 24
      %v1865 = vpop.permute.xlu0 %1864
      %1866 = vrot.lane.b32.xlu0 %v1833, 24
      %v1867 = vpop.permute.xlu0 %1866
      %1868 = vrot.lane.b32.xlu0 %v1836, 24
      %v1869 = vpop.permute.xlu0 %1868
      %1870 = vrot.lane.b32.xlu0 %v1839, 24
      %v1871 = vpop.permute.xlu0 %1870
      %vm1872 = vcmask 23552
      %v1874 = vsel %vm1872, %v430, %v688
      %v1876 = vsel %vm1872, %v431, %v690
      %v1878 = vsel %vm1872, %v432, %v692
      %v1880 = vsel %vm1872, %v433, %v694
      %v1882 = vsel %vm1872, %v434, %v696
      %v1884 = vsel %vm1872, %v435, %v698
      %v1886 = vsel %vm1872, %v436, %v700
      %v1888 = vsel %vm1872, %v437, %v702
      %v1890 = vsel %vm1872, %v438, %v704
      %v1892 = vsel %vm1872, %v439, %v706
      %v1894 = vsel %vm1872, %v440, %v708
      %v1896 = vsel %vm1872, %v441, %v710
      %v1898 = vsel %vm1872, %v442, %v712
      %v1900 = vsel %vm1872, %v443, %v714
      %v1902 = vsel %vm1872, %v444, %v716
      %v1904 = vsel %vm1872, %v445, %v718
      %vm1905 = vcmask 48128
      %v1907 = vsel %vm1905, %v1874, %v817
      %v1909 = vsel %vm1905, %v1876, %v819
      %v1911 = vsel %vm1905, %v1878, %v821
      %v1913 = vsel %vm1905, %v1880, %v823
      %v1915 = vsel %vm1905, %v1882, %v825
      %v1917 = vsel %vm1905, %v1884, %v827
      %v1919 = vsel %vm1905, %v1886, %v829
      %v1921 = vsel %vm1905, %v1888, %v831
      %v1923 = vsel %vm1905, %v1890, %v833
      %v1925 = vsel %vm1905, %v1892, %v835
      %v1927 = vsel %vm1905, %v1894, %v837
      %v1929 = vsel %vm1905, %v1896, %v839
      %v1931 = vsel %vm1905, %v1898, %v841
      %v1933 = vsel %vm1905, %v1900, %v843
      %v1935 = vsel %vm1905, %v1902, %v845
      %v1937 = vsel %vm1905, %v1904, %v847
      %vm1938 = vcmask 72704
      %v1940 = vsel %vm1938, %v1907, %v929
      %v1942 = vsel %vm1938, %v1909, %v931
      %v1944 = vsel %vm1938, %v1911, %v933
      %v1946 = vsel %vm1938, %v1913, %v935
      %v1948 = vsel %vm1938, %v1915, %v937
      %v1950 = vsel %vm1938, %v1917, %v939
      %v1952 = vsel %vm1938, %v1919, %v941
      %v1954 = vsel %vm1938, %v1921, %v943
      %v1956 = vsel %vm1938, %v1923, %v945
      %v1958 = vsel %vm1938, %v1925, %v947
      %v1960 = vsel %vm1938, %v1927, %v949
      %v1962 = vsel %vm1938, %v1929, %v951
      %v1964 = vsel %vm1938, %v1931, %v953
      %v1966 = vsel %vm1938, %v1933, %v955
      %v1968 = vsel %vm1938, %v1935, %v957
      %v1970 = vsel %vm1938, %v1937, %v959
      %vm1971 = vcmask 97280
      %v1973 = vsel %vm1971, %v1940, %v1201
      %v1975 = vsel %vm1971, %v1942, %v1203
      %v1977 = vsel %vm1971, %v1944, %v1205
      %v1979 = vsel %vm1971, %v1946, %v1207
      %v1981 = vsel %vm1971, %v1948, %v1209
      %v1983 = vsel %vm1971, %v1950, %v1211
      %v1985 = vsel %vm1971, %v1952, %v1213
      %v1987 = vsel %vm1971, %v1954, %v1215
      %v1989 = vsel %vm1971, %v1956, %v1217
      %v1991 = vsel %vm1971, %v1958, %v1219
      %v1993 = vsel %vm1971, %v1960, %v1221
      %v1995 = vsel %vm1971, %v1962, %v1223
      %v1997 = vsel %vm1971, %v1964, %v1225
      %v1999 = vsel %vm1971, %v1966, %v1227
      %v2001 = vsel %vm1971, %v1968, %v1229
      %v2003 = vsel %vm1971, %v1970, %v1231
      %vm2004 = vcmask 121856
      %v2006 = vsel %vm2004, %v1973, %v1329
      %v2008 = vsel %vm2004, %v1975, %v1331
      %v2010 = vsel %vm2004, %v1977, %v1333
      %v2012 = vsel %vm2004, %v1979, %v1335
      %v2014 = vsel %vm2004, %v1981, %v1337
      %v2016 = vsel %vm2004, %v1983, %v1339
      %v2018 = vsel %vm2004, %v1985, %v1341
      %v2020 = vsel %vm2004, %v1987, %v1343
      %v2022 = vsel %vm2004, %v1989, %v1345
      %v2024 = vsel %vm2004, %v1991, %v1347
      %v2026 = vsel %vm2004, %v1993, %v1349
      %v2028 = vsel %vm2004, %v1995, %v1351
      %v2030 = vsel %vm2004, %v1997, %v1353
      %v2032 = vsel %vm2004, %v1999, %v1355
      %v2034 = vsel %vm2004, %v2001, %v1357
      %v2036 = vsel %vm2004, %v2003, %v1359
      %vm2037 = vcmask 146432
      %v2039 = vsel %vm2037, %v2006, %v1441
      %v2041 = vsel %vm2037, %v2008, %v1443
      %v2043 = vsel %vm2037, %v2010, %v1445
      %v2045 = vsel %vm2037, %v2012, %v1447
      %v2047 = vsel %vm2037, %v2014, %v1449
      %v2049 = vsel %vm2037, %v2016, %v1451
      %v2051 = vsel %vm2037, %v2018, %v1453
      %v2053 = vsel %vm2037, %v2020, %v1455
      %v2055 = vsel %vm2037, %v2022, %v1457
      %v2057 = vsel %vm2037, %v2024, %v1459
      %v2059 = vsel %vm2037, %v2026, %v1461
      %v2061 = vsel %vm2037, %v2028, %v1463
      %v2063 = vsel %vm2037, %v2030, %v1465
      %v2065 = vsel %vm2037, %v2032, %v1467
      %v2067 = vsel %vm2037, %v2034, %v1469
      %v2069 = vsel %vm2037, %v2036, %v1471
      %vm2070 = vcmask 171008
      %v2072 = vsel %vm2070, %v2039, %v1713
      %v2074 = vsel %vm2070, %v2041, %v1715
      %v2076 = vsel %vm2070, %v2043, %v1717
      %v2078 = vsel %vm2070, %v2045, %v1719
      %v2080 = vsel %vm2070, %v2047, %v1721
      %v2082 = vsel %vm2070, %v2049, %v1723
      %v2084 = vsel %vm2070, %v2051, %v1725
      %v2086 = vsel %vm2070, %v2053, %v1727
      %v2088 = vsel %vm2070, %v2055, %v1729
      %v2090 = vsel %vm2070, %v2057, %v1731
      %v2092 = vsel %vm2070, %v2059, %v1733
      %v2094 = vsel %vm2070, %v2061, %v1735
      %v2096 = vsel %vm2070, %v2063, %v1737
      %v2098 = vsel %vm2070, %v2065, %v1739
      %v2100 = vsel %vm2070, %v2067, %v1741
      %v2102 = vsel %vm2070, %v2069, %v1743
      %vm2103 = vcmask 195584
      %v2105 = vsel %vm2103, %v2072, %v1841
      %v2107 = vsel %vm2103, %v2074, %v1843
      %v2109 = vsel %vm2103, %v2076, %v1845
      %v2111 = vsel %vm2103, %v2078, %v1847
      %v2113 = vsel %vm2103, %v2080, %v1849
      %v2115 = vsel %vm2103, %v2082, %v1851
      %v2117 = vsel %vm2103, %v2084, %v1853
      %v2119 = vsel %vm2103, %v2086, %v1855
      %v2121 = vsel %vm2103, %v2088, %v1857
      %v2123 = vsel %vm2103, %v2090, %v1859
      %v2125 = vsel %vm2103, %v2092, %v1861
      %v2127 = vsel %vm2103, %v2094, %v1863
      %v2129 = vsel %vm2103, %v2096, %v1865
      %v2131 = vsel %vm2103, %v2098, %v1867
      %v2133 = vsel %vm2103, %v2100, %v1869
      %v2135 = vsel %vm2103, %v2102, %v1871
      %v2136 = vld [vmem:[%s1] sm:$0xf]
      %v2137 = vld [vmem:[%s1 + $0x4] sm:$0xf]
      %v2138 = vld [vmem:[%s1 + $0x8] sm:$0xf]
      %v2139 = vld [vmem:[%s1 + $0xc] sm:$0x3]
      %v2140 = vld [vmem:[%s2] sm:$0x1]
      %v2142 = vlaneseq
      %v2143 = vshrl.u32 %v2142, 7
      %v2144 = vsub.s32 0, %v2143
      %v2145 = vrot.slane %v2140, %v2144
      %v2151 = vunpack.c.l.b16 %v2136
      %v2152 = vunpack.c.l.b16 %v2137
      %v2153 = vunpack.c.l.b16 %v2138
      %v2154 = vunpack.c.l.b16 %v2139
      %v2155 = vpack.c.b16 %v2152, %v2151
      %v2156 = vpack.c.b16 %v2154, %v2153
      %vm2158 = vcmask 220160
      %v2159 = vsel %vm2158, %v2105, 0
      %v2161 = vsel %vm2158, %v2107, 0
      %v2163 = vsel %vm2158, %v2109, 0
      %v2165 = vsel %vm2158, %v2111, 0
      %v2167 = vsel %vm2158, %v2113, 0
      %v2169 = vsel %vm2158, %v2115, 0
      %v2171 = vsel %vm2158, %v2117, 0
      %v2173 = vsel %vm2158, %v2119, 0
      %v2175 = vsel %vm2158, %v2121, 0
      %v2177 = vsel %vm2158, %v2123, 0
      %v2179 = vsel %vm2158, %v2125, 0
      %v2181 = vsel %vm2158, %v2127, 0
      %v2183 = vsel %vm2158, %v2129, 0
      %v2185 = vsel %vm2158, %v2131, 0
      %v2187 = vsel %vm2158, %v2133, 0
      %v2189 = vsel %vm2158, %v2135, 0
      %vm2191 = vcmask 1044480
      %vm2192 = vcmask 1045504
      %v2193 = vsel %vm2191, 4294967295, 65535
      %v2194 = vsel %vm2192, %v2193, 0
      %v2196 = vand.u32 %v2156, %v2194
      %2198 = vmatprep.subr.bf16.mxu0 0
      %2199 = vmatpush1.bf16.msra.mxu0 0
      %2200 = vmatprep.subr.bf16.mxu0 0
      %2201 = vmatpush1.bf16.msra.mxu0 0
      %2202 = vmatprep.subr.bf16.mxu0 0
      %2203 = vmatpush1.bf16.msra.mxu0 0
      %2204 = vmatprep.subr.bf16.mxu0 0
      %2205 = vmatpush1.bf16.msra.mxu0 0
      %2206 = vmatprep.subr.bf16.mxu0 0
      %2207 = vmatpush1.bf16.msra.mxu0 0
      %2208 = vmatprep.subr.bf16.mxu0 0
      %2209 = vmatpush1.bf16.msra.mxu0 0
      %2210 = vmatprep.subr.bf16.mxu0 0
      %2211 = vmatpush1.bf16.msra.mxu0 %v2196
      %2212 = vmatprep.subr.bf16.mxu0 0
      %2213 = vmatpush1.bf16.msra.mxu0 %v2155
      %2214 = vmatprep.subr.bf16.mxu0 0
      %2215 = vmatpush2.bf16.msra.mxu0 0
      %2216 = vmatprep.subr.bf16.mxu0 0
      %2217 = vmatpush2.bf16.msra.mxu0 0
      %2218 = vmatprep.subr.bf16.mxu0 0
      %2219 = vmatpush2.bf16.msra.mxu0 0
      %2220 = vmatprep.subr.bf16.mxu0 0
      %2221 = vmatpush2.bf16.msra.mxu0 0
      %2222 = vmatprep.subr.bf16.mxu0 0
      %2223 = vmatpush2.bf16.msra.mxu0 0
      %2224 = vmatprep.subr.bf16.mxu0 0
      %2225 = vmatpush2.bf16.msra.mxu0 0
      %2226 = vmatprep.subr.bf16.mxu0 0
      %2227 = vmatpush2.bf16.msra.mxu0 0
      %2228 = vmatprep.subr.bf16.mxu0 0
      %2229 = vmatpush2.bf16.msra.mxu0 0
      %2230 = vmatprep.mubr.bf16.mxu0 0
      %2231 = vmatmul.mubr.bf16.gmra.mxu0 %v2159
      %v2232 = vpop.f32.mrf.mxu0
      %v2233 = vadd.f32 %v2145, %v2232
      %v2234 = vpop.f32.mrf.mxu0
      %v2235 = vpop.f32.mrf.mxu0
      %v2236 = vadd.f32 %v2145, %v2235
      %v2237 = vpop.f32.mrf.mxu0
      %2238 = vmatprep.mubr.bf16.mxu0 0
      %2239 = vmatmul.mubr.bf16.gmra.mxu0 %v2161
      %v2240 = vpop.f32.mrf.mxu0
      %v2241 = vadd.f32 %v2145, %v2240
      %v2242 = vpop.f32.mrf.mxu0
      %v2243 = vpop.f32.mrf.mxu0
      %v2244 = vadd.f32 %v2145, %v2243
      %v2245 = vpop.f32.mrf.mxu0
      %2246 = vmatprep.mubr.bf16.mxu0 0
      %2247 = vmatmul.mubr.bf16.gmra.mxu0 %v2163
      %v2248 = vpop.f32.mrf.mxu0
      %v2249 = vadd.f32 %v2145, %v2248
      %v2250 = vpop.f32.mrf.mxu0
      %v2251 = vpop.f32.mrf.mxu0
      %v2252 = vadd.f32 %v2145, %v2251
      %v2253 = vpop.f32.mrf.mxu0
      %2254 = vmatprep.mubr.bf16.mxu0 0
      %2255 = vmatmul.mubr.bf16.gmra.mxu0 %v2165
      %v2256 = vpop.f32.mrf.mxu0
      %v2257 = vadd.f32 %v2145, %v2256
      %v2258 = vpop.f32.mrf.mxu0
      %v2259 = vpop.f32.mrf.mxu0
      %v2260 = vadd.f32 %v2145, %v2259
      %v2261 = vpop.f32.mrf.mxu0
      %2262 = vmatprep.mubr.bf16.mxu0 0
      %2263 = vmatmul.mubr.bf16.gmra.mxu0 %v2167
      %v2264 = vpop.f32.mrf.mxu0
      %v2265 = vadd.f32 %v2145, %v2264
      %v2266 = vpop.f32.mrf.mxu0
      %v2267 = vpop.f32.mrf.mxu0
      %v2268 = vadd.f32 %v2145, %v2267
      %v2269 = vpop.f32.mrf.mxu0
      %2270 = vmatprep.mubr.bf16.mxu0 0
      %2271 = vmatmul.mubr.bf16.gmra.mxu0 %v2169
      %v2272 = vpop.f32.mrf.mxu0
      %v2273 = vadd.f32 %v2145, %v2272
      %v2274 = vpop.f32.mrf.mxu0
      %v2275 = vpop.f32.mrf.mxu0
      %v2276 = vadd.f32 %v2145, %v2275
      %v2277 = vpop.f32.mrf.mxu0
      %2278 = vmatprep.mubr.bf16.mxu0 0
      %2279 = vmatmul.mubr.bf16.gmra.mxu0 %v2171
      %v2280 = vpop.f32.mrf.mxu0
      %v2281 = vadd.f32 %v2145, %v2280
      %v2282 = vpop.f32.mrf.mxu0
      %v2283 = vpop.f32.mrf.mxu0
      %v2284 = vadd.f32 %v2145, %v2283
      %v2285 = vpop.f32.mrf.mxu0
      %2286 = vmatprep.mubr.bf16.mxu0 0
      %2287 = vmatmul.mubr.bf16.gmra.mxu0 %v2173
      %v2288 = vpop.f32.mrf.mxu0
      %v2289 = vadd.f32 %v2145, %v2288
      %v2290 = vpop.f32.mrf.mxu0
      %v2291 = vpop.f32.mrf.mxu0
      %v2292 = vadd.f32 %v2145, %v2291
      %v2293 = vpop.f32.mrf.mxu0
      %2294 = vmatprep.mubr.bf16.mxu0 0
      %2295 = vmatmul.mubr.bf16.gmra.mxu0 %v2175
      %v2296 = vpop.f32.mrf.mxu0
      %v2297 = vadd.f32 %v2145, %v2296
      %v2298 = vpop.f32.mrf.mxu0
      %v2299 = vpop.f32.mrf.mxu0
      %v2300 = vadd.f32 %v2145, %v2299
      %v2301 = vpop.f32.mrf.mxu0
      %2302 = vmatprep.mubr.bf16.mxu0 0
      %2303 = vmatmul.mubr.bf16.gmra.mxu0 %v2177
      %v2304 = vpop.f32.mrf.mxu0
      %v2305 = vadd.f32 %v2145, %v2304
      %v2306 = vpop.f32.mrf.mxu0
      %v2307 = vpop.f32.mrf.mxu0
      %v2308 = vadd.f32 %v2145, %v2307
      %v2309 = vpop.f32.mrf.mxu0
      %2310 = vmatprep.mubr.bf16.mxu0 0
      %2311 = vmatmul.mubr.bf16.gmra.mxu0 %v2179
      %v2312 = vpop.f32.mrf.mxu0
      %v2313 = vadd.f32 %v2145, %v2312
      %v2314 = vpop.f32.mrf.mxu0
      %v2315 = vpop.f32.mrf.mxu0
      %v2316 = vadd.f32 %v2145, %v2315
      %v2317 = vpop.f32.mrf.mxu0
      %2318 = vmatprep.mubr.bf16.mxu0 0
      %2319 = vmatmul.mubr.bf16.gmra.mxu0 %v2181
      %v2320 = vpop.f32.mrf.mxu0
      %v2321 = vadd.f32 %v2145, %v2320
      %v2322 = vpop.f32.mrf.mxu0
      %v2323 = vpop.f32.mrf.mxu0
      %v2324 = vadd.f32 %v2145, %v2323
      %v2325 = vpop.f32.mrf.mxu0
      %2326 = vmatprep.mubr.bf16.mxu0 0
      %2327 = vmatmul.mubr.bf16.gmra.mxu0 %v2183
      %v2328 = vpop.f32.mrf.mxu0
      %v2329 = vadd.f32 %v2145, %v2328
      %v2330 = vpop.f32.mrf.mxu0
      %v2331 = vpop.f32.mrf.mxu0
      %v2332 = vadd.f32 %v2145, %v2331
      %v2333 = vpop.f32.mrf.mxu0
      %2334 = vmatprep.mubr.bf16.mxu0 0
      %2335 = vmatmul.mubr.bf16.gmra.mxu0 %v2185
      %v2336 = vpop.f32.mrf.mxu0
      %v2337 = vadd.f32 %v2145, %v2336
      %v2338 = vpop.f32.mrf.mxu0
      %v2339 = vpop.f32.mrf.mxu0
      %v2340 = vadd.f32 %v2145, %v2339
      %v2341 = vpop.f32.mrf.mxu0
      %2342 = vmatprep.mubr.bf16.mxu0 0
      %2343 = vmatmul.mubr.bf16.gmra.mxu0 %v2187
      %v2344 = vpop.f32.mrf.mxu0
      %v2345 = vadd.f32 %v2145, %v2344
      %v2346 = vpop.f32.mrf.mxu0
      %v2347 = vpop.f32.mrf.mxu0
      %v2348 = vadd.f32 %v2145, %v2347
      %v2349 = vpop.f32.mrf.mxu0
      %2350 = vmatprep.mubr.bf16.mxu0 0
      %2351 = vmatmul.mubr.bf16.gmra.mxu0 %v2189
      %v2352 = vpop.f32.mrf.mxu0
      %v2353 = vadd.f32 %v2145, %v2352
      %v2354 = vpop.f32.mrf.mxu0
      %v2355 = vpop.f32.mrf.mxu0
      %v2356 = vadd.f32 %v2145, %v2355
      %v2357 = vpop.f32.mrf.mxu0
      %2358 = vdwg.mxu0
      %v2359 = vmax.f32 %v2233, 0.0
      %v2360 = vmax.f32 %v2236, 0.0
      %v2361 = vmax.f32 %v2241, 0.0
      %v2362 = vmax.f32 %v2244, 0.0
      %v2363 = vmax.f32 %v2249, 0.0
      %v2364 = vmax.f32 %v2252, 0.0
      %v2365 = vmax.f32 %v2257, 0.0
      %v2366 = vmax.f32 %v2260, 0.0
      %v2367 = vmax.f32 %v2265, 0.0
      %v2368 = vmax.f32 %v2268, 0.0
      %v2369 = vmax.f32 %v2273, 0.0
      %v2370 = vmax.f32 %v2276, 0.0
      %v2371 = vmax.f32 %v2281, 0.0
      %v2372 = vmax.f32 %v2284, 0.0
      %v2373 = vmax.f32 %v2289, 0.0
      %v2374 = vmax.f32 %v2292, 0.0
      %v2375 = vmax.f32 %v2297, 0.0
      %v2376 = vmax.f32 %v2300, 0.0
      %v2377 = vmax.f32 %v2305, 0.0
      %v2378 = vmax.f32 %v2308, 0.0
      %v2379 = vmax.f32 %v2313, 0.0
      %v2380 = vmax.f32 %v2316, 0.0
      %v2381 = vmax.f32 %v2321, 0.0
      %v2382 = vmax.f32 %v2324, 0.0
      %v2383 = vmax.f32 %v2329, 0.0
      %v2384 = vmax.f32 %v2332, 0.0
      %v2385 = vmax.f32 %v2337, 0.0
      %v2386 = vmax.f32 %v2340, 0.0
      %v2387 = vmax.f32 %v2345, 0.0
      %v2388 = vmax.f32 %v2348, 0.0
      %v2389 = vmax.f32 %v2353, 0.0
      %v2390 = vmax.f32 %v2356, 0.0
      %vm2391 = vcmask 261120
      %2392 = vst.msk [vmem:[#allocation2] sm:$0xff] %vm2391, %v2359
      %2393 = vst.msk [vmem:[#allocation2 + $0x8] sm:$0xff] %vm2391, %v2360
      %2394 = vst.msk [vmem:[#allocation2 + $0x10] sm:$0xff] %vm2391, %v2361
      %2395 = vst.msk [vmem:[#allocation2 + $0x18] sm:$0xff] %vm2391, %v2362
      %2396 = vst.msk [vmem:[#allocation2 + $0x20] sm:$0xff] %vm2391, %v2363
      %2397 = vst.msk [vmem:[#allocation2 + $0x28] sm:$0xff] %vm2391, %v2364
      %2398 = vst.msk [vmem:[#allocation2 + $0x30] sm:$0xff] %vm2391, %v2365
      %2399 = vst.msk [vmem:[#allocation2 + $0x38] sm:$0xff] %vm2391, %v2366
      %2400 = vst.msk [vmem:[#allocation2 + $0x40] sm:$0xff] %vm2391, %v2367
      %2401 = vst.msk [vmem:[#allocation2 + $0x48] sm:$0xff] %vm2391, %v2368
      %2402 = vst.msk [vmem:[#allocation2 + $0x50] sm:$0xff] %vm2391, %v2369
      %2403 = vst.msk [vmem:[#allocation2 + $0x58] sm:$0xff] %vm2391, %v2370
      %2404 = vst.msk [vmem:[#allocation2 + $0x60] sm:$0xff] %vm2391, %v2371
      %2405 = vst.msk [vmem:[#allocation2 + $0x68] sm:$0xff] %vm2391, %v2372
      %2406 = vst.msk [vmem:[#allocation2 + $0x70] sm:$0xff] %vm2391, %v2373
      %2407 = vst.msk [vmem:[#allocation2 + $0x78] sm:$0xff] %vm2391, %v2374
      %2408 = vst.msk [vmem:[#allocation2 + $0x80] sm:$0xff] %vm2391, %v2375
      %2409 = vst.msk [vmem:[#allocation2 + $0x88] sm:$0xff] %vm2391, %v2376
      %2410 = vst.msk [vmem:[#allocation2 + $0x90] sm:$0xff] %vm2391, %v2377
      %2411 = vst.msk [vmem:[#allocation2 + $0x98] sm:$0xff] %vm2391, %v2378
      %2412 = vst.msk [vmem:[#allocation2 + $0xa0] sm:$0xff] %vm2391, %v2379
      %2413 = vst.msk [vmem:[#allocation2 + $0xa8] sm:$0xff] %vm2391, %v2380
      %2414 = vst.msk [vmem:[#allocation2 + $0xb0] sm:$0xff] %vm2391, %v2381
      %2415 = vst.msk [vmem:[#allocation2 + $0xb8] sm:$0xff] %vm2391, %v2382
      %2416 = vst.msk [vmem:[#allocation2 + $0xc0] sm:$0xff] %vm2391, %v2383
      %2417 = vst.msk [vmem:[#allocation2 + $0xc8] sm:$0xff] %vm2391, %v2384
      %2418 = vst.msk [vmem:[#allocation2 + $0xd0] sm:$0xff] %vm2391, %v2385
      %2419 = vst.msk [vmem:[#allocation2 + $0xd8] sm:$0xff] %vm2391, %v2386
      %2420 = vst.msk [vmem:[#allocation2 + $0xe0] sm:$0xff] %vm2391, %v2387
      %2421 = vst.msk [vmem:[#allocation2 + $0xe8] sm:$0xff] %vm2391, %v2388
      %2422 = vst.msk [vmem:[#allocation2 + $0xf0] sm:$0xff] %vm2391, %v2389
      %2423 = vst.msk [vmem:[#allocation2 + $0xf8] sm:$0xff] %vm2391, %v2390
      %v2424 = vld [vmem:[#allocation2] ss:$2 sm:$0xff]
      %s2425 = scalar_lea.vmem [#allocation2], 16
      %v2426 = vld [vmem:[%s2425] ss:$2 sm:$0xff]
      %s2427 = scalar_lea.vmem [#allocation2], 32
      %v2428 = vld [vmem:[%s2427] ss:$2 sm:$0xff]
      %s2429 = scalar_lea.vmem [#allocation2], 48
      %v2430 = vld [vmem:[%s2429] ss:$2 sm:$0xff]
      %s2431 = scalar_lea.vmem [#allocation2], 64
      %v2432 = vld [vmem:[%s2431] ss:$2 sm:$0xff]
      %s2433 = scalar_lea.vmem [#allocation2], 80
      %v2434 = vld [vmem:[%s2433] ss:$2 sm:$0xff]
      %s2435 = scalar_lea.vmem [#allocation2], 96
      %v2436 = vld [vmem:[%s2435] ss:$2 sm:$0xff]
      %s2437 = scalar_lea.vmem [#allocation2], 112
      %v2438 = vld [vmem:[%s2437] ss:$2 sm:$0xff]
      %s2439 = scalar_lea.vmem [#allocation2], 128
      %v2440 = vld [vmem:[%s2439] ss:$2 sm:$0xff]
      %s2441 = scalar_lea.vmem [#allocation2], 144
      %v2442 = vld [vmem:[%s2441] ss:$2 sm:$0xff]
      %s2443 = scalar_lea.vmem [#allocation2], 160
      %v2444 = vld [vmem:[%s2443] ss:$2 sm:$0xff]
      %s2445 = scalar_lea.vmem [#allocation2], 176
      %v2446 = vld [vmem:[%s2445] ss:$2 sm:$0xff]
      %s2447 = scalar_lea.vmem [#allocation2], 192
      %v2448 = vld [vmem:[%s2447] ss:$2 sm:$0xff]
      %s2449 = scalar_lea.vmem [#allocation2], 208
      %v2450 = vld [vmem:[%s2449] ss:$2 sm:$0xff]
      %s2451 = scalar_lea.vmem [#allocation2], 224
      %v2452 = vld [vmem:[%s2451] ss:$2 sm:$0xff]
      %s2453 = scalar_lea.vmem [#allocation2], 240
      %v2454 = vld [vmem:[%s2453] ss:$2 sm:$0xff]
      %s2455 = scalar_lea.vmem [#allocation2], 1
      %v2456 = vld [vmem:[%s2455] ss:$2 sm:$0xff]
      %s2457 = scalar_lea.vmem [#allocation2], 17
      %v2458 = vld [vmem:[%s2457] ss:$2 sm:$0xff]
      %s2459 = scalar_lea.vmem [#allocation2], 33
      %v2460 = vld [vmem:[%s2459] ss:$2 sm:$0xff]
      %s2461 = scalar_lea.vmem [#allocation2], 49
      %v2462 = vld [vmem:[%s2461] ss:$2 sm:$0xff]
      %s2463 = scalar_lea.vmem [#allocation2], 65
      %v2464 = vld [vmem:[%s2463] ss:$2 sm:$0xff]
      %s2465 = scalar_lea.vmem [#allocation2], 81
      %v2466 = vld [vmem:[%s2465] ss:$2 sm:$0xff]
      %s2467 = scalar_lea.vmem [#allocation2], 97
      %v2468 = vld [vmem:[%s2467] ss:$2 sm:$0xff]
      %s2469 = scalar_lea.vmem [#allocation2], 113
      %v2470 = vld [vmem:[%s2469] ss:$2 sm:$0xff]
      %s2471 = scalar_lea.vmem [#allocation2], 129
      %v2472 = vld [vmem:[%s2471] ss:$2 sm:$0xff]
      %s2473 = scalar_lea.vmem [#allocation2], 145
      %v2474 = vld [vmem:[%s2473] ss:$2 sm:$0xff]
      %s2475 = scalar_lea.vmem [#allocation2], 161
      %v2476 = vld [vmem:[%s2475] ss:$2 sm:$0xff]
      %s2477 = scalar_lea.vmem [#allocation2], 177
      %v2478 = vld [vmem:[%s2477] ss:$2 sm:$0xff]
      %s2479 = scalar_lea.vmem [#allocation2], 193
      %v2480 = vld [vmem:[%s2479] ss:$2 sm:$0xff]
      %s2481 = scalar_lea.vmem [#allocation2], 209
      %v2482 = vld [vmem:[%s2481] ss:$2 sm:$0xff]
      %s2483 = scalar_lea.vmem [#allocation2], 225
      %v2484 = vld [vmem:[%s2483] ss:$2 sm:$0xff]
      %s2485 = scalar_lea.vmem [#allocation2], 241
      %v2486 = vld [vmem:[%s2485] ss:$2 sm:$0xff]
      %v2487 = vmax.f32 %v2424, %v2456
      %v2488 = vmax.f32 %v2426, %v2458
      %v2489 = vmax.f32 %v2428, %v2460
      %v2490 = vmax.f32 %v2430, %v2462
      %v2491 = vmax.f32 %v2432, %v2464
      %v2492 = vmax.f32 %v2434, %v2466
      %v2493 = vmax.f32 %v2436, %v2468
      %v2494 = vmax.f32 %v2438, %v2470
      %v2495 = vmax.f32 %v2440, %v2472
      %v2496 = vmax.f32 %v2442, %v2474
      %v2497 = vmax.f32 %v2444, %v2476
      %v2498 = vmax.f32 %v2446, %v2478
      %v2499 = vmax.f32 %v2448, %v2480
      %v2500 = vmax.f32 %v2450, %v2482
      %v2501 = vmax.f32 %v2452, %v2484
      %v2502 = vmax.f32 %v2454, %v2486
      %2503 = vst.msk [vmem:[#allocation3] sm:$0xff] %vm2391, %v2487
      %2504 = vst.msk [vmem:[#allocation3 + $0x8] sm:$0xff] %vm2391, %v2488
      %2505 = vst.msk [vmem:[#allocation3 + $0x10] sm:$0xff] %vm2391, %v2489
      %2506 = vst.msk [vmem:[#allocation3 + $0x18] sm:$0xff] %vm2391, %v2490
      %2507 = vst.msk [vmem:[#allocation3 + $0x20] sm:$0xff] %vm2391, %v2491
      %2508 = vst.msk [vmem:[#allocation3 + $0x28] sm:$0xff] %vm2391, %v2492
      %2509 = vst.msk [vmem:[#allocation3 + $0x30] sm:$0xff] %vm2391, %v2493
      %2510 = vst.msk [vmem:[#allocation3 + $0x38] sm:$0xff] %vm2391, %v2494
      %2511 = vst.msk [vmem:[#allocation3 + $0x40] sm:$0xff] %vm2391, %v2495
      %2512 = vst.msk [vmem:[#allocation3 + $0x48] sm:$0xff] %vm2391, %v2496
      %2513 = vst.msk [vmem:[#allocation3 + $0x50] sm:$0xff] %vm2391, %v2497
      %2514 = vst.msk [vmem:[#allocation3 + $0x58] sm:$0xff] %vm2391, %v2498
      %2515 = vst.msk [vmem:[#allocation3 + $0x60] sm:$0xff] %vm2391, %v2499
      %2516 = vst.msk [vmem:[#allocation3 + $0x68] sm:$0xff] %vm2391, %v2500
      %2517 = vst.msk [vmem:[#allocation3 + $0x70] sm:$0xff] %vm2391, %v2501
      %2518 = vst.msk [vmem:[#allocation3 + $0x78] sm:$0xff] %vm2391, %v2502
      loop: start=0, step=1, limit=8
      $region33: #{pointnet_forward.3} parent=31 // loop_pre_header
        _
      $region34: #{pointnet_forward.3} parent=31 // loop_header
        %s2520 = sphi 0, %s2524
        %p2521 = scmp.ge.s32.totalorder %s2520, 8
      $region35: #{pointnet_forward.3} parent=31 // loop_header_branch
        %2523 = sbr.rel (%p2521) target = $region39
      $region36: #{pointnet_forward.3} parent=31 // loop_body
        %s2525 = smul.u32 %s2520, 16
        %s2526 = scalar_lea.vmem [#allocation3], %s2525
        %v2527 = vld [vmem:[%s2526] sm:$0xff]
        %s2528 = sadd.s32 %s2525, 8
        %s2529 = scalar_lea.vmem [#allocation3], %s2528
        %v2530 = vld [vmem:[%s2529] sm:$0xff]
        %v2531 = vmax.f32 %v2527, %v2530
        %v2532 = vpack.c.bf16 %v2531, %v2531
        %s2533 = smul.addr %s2520, 4
        %s2534 = scalar_lea.vmem %s170, %s2533
        %vm2535 = vcmask 257024
        %2536 = vst.msk [vmem:[%s2534] sm:$0xf] %vm2535, %v2532
      $region37: #{pointnet_forward.3} parent=31 // loop_footer
        %s2524 = sadd.s32 1, %s2520
      $region38: #{pointnet_forward.3} parent=31 // loop_footer_branch
        %2519 = sbr.rel target = $region34
      $region39: #{pointnet_forward.3} parent=31 // loop_exit
        _
      %p2537 = scmp.lt.s32.totalorder %s14, 1
      %s2538 = scalar_select %p2537, %s14, 1
      %s2539 = smul.addr %s2538, 8
      %s2540 = smul.addr %s2539, 4
      %s2541 = scalar_lea.vmem %s3, %s2540
      // Predicated region
      $region40: #{pointnet_forward.3} parent=31 // pred_check
        %p2542 = pneg %p100
      $region41: #{pointnet_forward.3} parent=31 // pred_check_branch
        %2544 = sbr.rel (%p2542) target = $region43
      $region42: #{pointnet_forward.3} parent=31 // pred_region
        _
      $region43: #{pointnet_forward.3} parent=31 // pred_fallthru
        _
    $region32: #{pointnet_forward.3} parent=5 // pred_fallthru
      _
    %p2545 = scmp.le.s32.totalorder 2, %s9
    // Predicated region
    $region44: #{pointnet_forward.3} parent=5 // pred_check
      %p2546 = pneg %p2545
    $region45: #{pointnet_forward.3} parent=5 // pred_check_branch
      %2548 = sbr.rel (%p2546) target = $region47
    $region46: #{pointnet_forward.3} parent=5 // pred_region
      %s2549 = ssub.s32 %s9, 2
      // Predicated region
      $region48: #{pointnet_forward.3} parent=46 // pred_check
        %p2550 = pneg %p106
      $region49: #{pointnet_forward.3} parent=46 // pred_check_branch
        %2552 = sbr.rel (%p2550) target = $region51
      $region50: #{pointnet_forward.3} parent=46 // pred_region
        %p2553 = scmp.lt.s32.totalorder %s15, 1
        %s2554 = scalar_select %p2553, %s15, 1
        %s2555 = smul.addr %s2554, 8
        %s2556 = smul.addr %s2555, 4
        %s2557 = scalar_lea.vmem %s3, %s2556
      $region51: #{pointnet_forward.3} parent=46 // pred_fallthru
        _
    $region47: #{pointnet_forward.3} parent=5 // pred_fallthru
      _
  $region6: #{pointnet_forward.3} parent=0 // loop_footer
    %s13 = sadd.s32 1, %s9
  $region7: #{pointnet_forward.3} parent=0 // loop_footer_branch
    %8 = sbr.rel target = $region3
  $region8: #{pointnet_forward.3} parent=0 // loop_exit
    _

</llo_original>
